<compile_context>
chip_gen: v7x
topology: tpu7x:2x2x1
jax: 0.10.0
libtpu: 0.0.40
codegen_flags: <defaults>
</compile_context>

<pallas_src>
import functools
import math

import jax
import jax.numpy as jnp
from jax.experimental import pallas as pl
from jax.experimental.pallas import tpu as pltpu

EPS = 1e-6
PAD = 128          # lane-dense padded width carried end-to-end
EXP_SCALE = 10.0   # fixed HyboNet-style scale (see TODO above)


# ----------------------- in-kernel helpers (masks hoisted) ----------------------- #
def _lorentz_rescale(y, is_time, exp_scale):
    """Project raw linear output y onto the Lorentz manifold (HyboNet style)."""
    t_raw = y[:, 0:1]
    time = jax.nn.sigmoid(t_raw) * exp_scale + 1.1
    space_sq = jnp.maximum(jnp.sum(y * y, axis=-1, keepdims=True) - t_raw * t_raw, 1e-8)
    factor = jnp.sqrt(time * time - 1.0) * jax.lax.rsqrt(space_sq)
    return jnp.where(is_time, time, y * factor)


def _lorentz_linear(x, w, b, is_time, *, relu, exp_scale):
    if relu:
        x = jnp.maximum(x, 0.0)
    y = jnp.dot(x, w, preferred_element_type=jnp.float32) + b
    return _lorentz_rescale(y, is_time, exp_scale)


def _lorentz_normalize(s):
    """s / sqrt(|<s,s>_L|)  (Lorentz centroid normalization)."""
    t = s[:, 0:1]
    inner = jnp.sum(s * s, axis=-1, keepdims=True) - 2.0 * t * t
    return s * jax.lax.rsqrt(jnp.maximum(jnp.abs(inner), 1e-8))


def _lorentz_agg(adj, h):
    return _lorentz_normalize(jnp.dot(adj, h, preferred_element_type=jnp.float32))


def _poincare_normalize(z, scale, is_time):
    """to_poincare -> L2 normalize * clamp(scale) -> from_poincare."""
    t = z[:, 0:1]
    space_sq = jnp.maximum(jnp.sum(z * z, axis=-1, keepdims=True) - t * t, 0.0)
    inv_nrm = jax.lax.rsqrt(jnp.maximum(space_sq, 1e-24))
    s = jnp.clip(scale, 0.01, 0.999)
    s_sq = s * s
    denom = 1.0 - s_sq + EPS
    new_time = (1.0 + s_sq) / denom
    factor = (2.0 * s / denom) * inv_nrm
    return jnp.where(is_time, new_time, z * factor)


def _onehot_argmax(v, col):
    """Row-wise one-hot at the first max column (hard assignment)."""
    mx = jnp.max(v, axis=-1, keepdims=True)
    sentinel = v.shape[-1]
    first = jnp.min(jnp.where(v >= mx, col, sentinel), axis=-1, keepdims=True)
    return jnp.where(col == first, 1.0, 0.0).astype(jnp.float32)


# ------------------------------ the fused kernel ------------------------------ #
def _hyperse_kernel(*refs, n_layers, m_list, tau, exp_scale):
    it = iter(refs)
    # inputs
    x_ref, adj_ref = next(it), next(it)
    w1_ref, b1_ref, w2_ref, b2_ref = next(it), next(it), next(it), next(it)
    scale_ref = next(it)                                       # SMEM scalar
    layer_refs = [(next(it), next(it), next(it), next(it)) for _ in range(n_layers)]
    # outputs
    z_enc_ref = next(it)
    z_lvl_refs = [next(it) for _ in range(n_layers)]
    frechet_ref = next(it)
    hard_refs = [next(it) for _ in range(n_layers)]

    n = x_ref.shape[0]
    inv_tau = jnp.float32(1.0 / tau)

    # hoisted iota / boolean masks (JAX does not CSE broadcast_in_dim)
    col_np = jax.lax.broadcasted_iota(jnp.int32, (n, PAD), 1)
    col_pp = jax.lax.broadcasted_iota(jnp.int32, (PAD, PAD), 1)
    row_pp = jax.lax.broadcasted_iota(jnp.int32, (PAD, PAD), 0)
    is_time_np = col_np == 0
    is_time_pp = col_pp == 0
    diag_pp = row_pp == col_pp

    # ---- lift features onto the Lorentz manifold (expmap0 at the origin) ----
    x = x_ref[...]                               # (n, PAD): col 0 == 0, feats at 1..F
    nrm = jnp.sqrt(jnp.maximum(jnp.sum(x * x, axis=-1, keepdims=True), 1e-8))
    e_pos = jnp.exp(nrm)                         # cosh/sinh built from exp (EUP-friendly)
    e_neg = 1.0 / e_pos
    cosh = 0.5 * (e_pos + e_neg)
    sinh = 0.5 * (e_pos - e_neg)
    x = jnp.where(is_time_np, cosh, x * (sinh / nrm))

    adj = adj_ref[...]                           # (n, n) dense adjacency
    scale = scale_ref[0]

    # ---- GraphEncoder (LorentzLinear -> Agg -> LorentzLinear -> Agg) + normalize ----
    h = _lorentz_linear(x, w1_ref[...], b1_ref[...], is_time_np,
                        relu=False, exp_scale=exp_scale)
    h = _lorentz_agg(adj, h)
    h = _lorentz_linear(h, w2_ref[...], b2_ref[...], is_time_np,
                        relu=True, exp_scale=exp_scale)
    z = _lorentz_agg(adj, h)
    z = _poincare_normalize(z, scale, is_time_np)
    z_enc_ref[...] = z                           # embeddings[height] (padded)

    # ---- LSENet layers: assignment softmax + pooling + soft/hard chain ----
    c0 = (((0,), (0,)), ((), ()))                # contract the leading (node) dim
    cur_z, cur_adj = z, adj
    soft_chain = None
    for l in range(n_layers):
        pw_ref, pb_ref, aw_ref, ab_ref = layer_refs[l]
        m = m_list[l]                            # valid cluster count this level
        rows = cur_z.shape[0]
        col = col_np if rows == n else col_pp
        is_time = is_time_np if rows == n else is_time_pp

        hh = _lorentz_linear(cur_z, pw_ref[...], pb_ref[...], is_time,
                             relu=False, exp_scale=exp_scale)
        hh = _lorentz_linear(hh, aw_ref[...], ab_ref[...], is_time,
                             relu=True, exp_scale=exp_scale)
        hh = _lorentz_agg(cur_adj, hh)

        # soft assignment: softmax(logits / tau) over cluster columns 1..m
        # (Lorentz time column 0 and lane padding masked out, stay exactly 0)
        valid = (col >= 1) & (col <= m)
        logits = jnp.where(valid, hh * inv_tau, jnp.float32(-1e30))
        logits = logits - jnp.max(logits, axis=-1, keepdims=True)
        e = jnp.where(valid, jnp.exp(logits), 0.0)
        ass = e * pl.reciprocal(jnp.sum(e, axis=-1, keepdims=True), approx=True)

        # pooled embeddings AND pooled adjacency with a single ass^T contraction:
        #   [z' | A'] = ass^T @ [cur_z | cur_adj @ ass]
        mid = jnp.dot(cur_adj, ass, preferred_element_type=jnp.float32)     # (rows, PAD)
        pooled = jax.lax.dot_general(ass, jnp.concatenate([cur_z, mid], axis=-1),
                                     c0, preferred_element_type=jnp.float32)  # (PAD, 2*PAD)

        new_z = _lorentz_normalize(pooled[:, :PAD])
        z_lvl_refs[l][...] = new_z

        na = jnp.where(diag_pp, 0.0, pooled[:, PAD:])     # zero diag (before sigmoid)
        new_adj = jax.nn.sigmoid(na * inv_tau)
        node_ok = (row_pp >= 1) & (row_pp <= m) & (col_pp >= 1) & (col_pp <= m)
        new_adj = jnp.where(node_ok, new_adj, 0.0)        # keep padded rows/cols inert

        # ass_mat chain (soft products) + hard one-hot, fused in-kernel
        soft_chain = ass if l == 0 else jnp.dot(soft_chain, ass,
                                                preferred_element_type=jnp.float32)
        hard_refs[l][...] = _onehot_argmax(soft_chain, col_np)

        cur_z, cur_adj = new_z, new_adj

    # ---- Frechet mean of the coarsest level (padded rows are zero, sum is exact) ----
    frechet_ref[...] = _lorentz_normalize(jnp.sum(cur_z, axis=0, keepdims=True))


# ------------------------------ wrapper / builder ------------------------------ #
def build_hyperse_forward(num_nodes, in_features, embed_dim, m_list, *,
                          height, temperature, exp_scale=EXP_SCALE):
    n_layers = height - 1
    assert len(m_list) == n_layers
    n = num_nodes
    d_real = embed_dim + 1

    kernel = functools.partial(_hyperse_kernel, n_layers=n_layers,
                               m_list=tuple(int(m) for m in m_list),
                               tau=float(temperature), exp_scale=float(exp_scale))

    vmem = pl.BlockSpec(memory_space=pltpu.MemorySpace.VMEM)
    smem = pl.BlockSpec(memory_space=pltpu.MemorySpace.SMEM)

    in_specs = [vmem, vmem, vmem, vmem, vmem, vmem, smem] + [vmem] * (4 * n_layers)
    out_specs = tuple([vmem] * (2 * n_layers + 2))
    out_shape = tuple(
        [jax.ShapeDtypeStruct((n, PAD), jnp.float32)]                       # z at height
        + [jax.ShapeDtypeStruct((PAD, PAD), jnp.float32)] * n_layers        # pooled z's
        + [jax.ShapeDtypeStruct((1, PAD), jnp.float32)]                     # Frechet mean
        + [jax.ShapeDtypeStruct((n, PAD), jnp.float32)] * n_layers)         # hard ass_mat

    fused = pl.pallas_call(kernel, out_shape=out_shape,
                           in_specs=in_specs, out_specs=out_specs)

    def forward(features, adj, params):
        # one-time XLA prep: zero time slot at col 0 + zero lane padding
        f = features.shape[1]
        x_pad = jnp.pad(features.astype(jnp.float32), ((0, 0), (1, PAD - 1 - f)))

        args = [x_pad, adj.astype(jnp.float32),
                params["enc_w1"], params["enc_b1"], params["enc_w2"], params["enc_b2"],
                params["scale"]]
        for lp in params["layers"]:
            args += [lp["proj_w"], lp["proj_b"], lp["ass_w"], lp["ass_b"]]
        outs = fused(*args)

        z_enc = outs[0]
        z_lvls = outs[1:1 + n_layers]
        frechet = outs[1 + n_layers]
        hards = outs[2 + n_layers:2 + 2 * n_layers]

        # single end-of-forward slices back to reference (unpadded) shapes
        embeddings = {height: z_enc[:, :d_real]}
        for l in range(n_layers):
            embeddings[height - 1 - l] = z_lvls[l][1:m_list[l] + 1, :d_real]
        embeddings[0] = frechet[:, :d_real]

        ass_mat = {height: jnp.eye(n, dtype=jnp.float32)}
        for l in range(n_layers):
            ass_mat[height - 1 - l] = hards[l][:, 1:m_list[l] + 1]

        return embeddings[height], embeddings, ass_mat

    return forward


# --------------------------------- parameters --------------------------------- #
def init_params(key, in_features, hidden_dim_enc, hidden_features, embed_dim, m_list):
    """All weights are initialized directly in the lane-dense PAD x PAD layout."""
    assert max(in_features + 1, hidden_dim_enc, hidden_features, embed_dim + 1,
               max(m_list) + 1) <= PAD

    def w(k, rows, cols):
        v = 0.1 * jax.random.normal(k, (rows, cols), jnp.float32)
        return jnp.zeros((PAD, PAD), jnp.float32).at[:rows, :cols].set(v)

    n_layers = len(m_list)
    keys = jax.random.split(key, 2 + 2 * n_layers)
    params = {
        "scale": jnp.array([0.999], jnp.float32),           # lives in SMEM
        "enc_w1": w(keys[0], in_features + 1, hidden_dim_enc),
        "enc_b1": jnp.zeros((1, PAD), jnp.float32),
        "enc_w2": w(keys[1], hidden_dim_enc, embed_dim + 1),
        "enc_b2": jnp.zeros((1, PAD), jnp.float32),
        "layers": [],
    }
    for i, m in enumerate(m_list):
        params["layers"].append({
            "proj_w": w(keys[2 + 2 * i], embed_dim + 1, hidden_features),
            "proj_b": jnp.zeros((1, PAD), jnp.float32),
            "ass_w": w(keys[3 + 2 * i], hidden_features, m + 1),
            "ass_b": jnp.zeros((1, PAD), jnp.float32),
        })
    return params


# ------------------------------------ main ------------------------------------ #
if __name__ == "__main__":
    in_features, hidden_dim_enc, hidden_features = 16, 32, 32
    num_nodes, height, temperature, embed_dim = 32, 3, 0.2, 2

    decay_rate = int(math.exp(math.log(num_nodes) / height))
    m_list = tuple(int(num_nodes / decay_rate ** i) for i in range(1, height))

    root = jax.random.PRNGKey(0)
    k_feat, k_adj, k_par = jax.random.split(root, 3)
    features = jax.random.normal(k_feat, (num_nodes, in_features), jnp.float32)
    r = jax.random.uniform(k_adj, (num_nodes, num_nodes))
    a = (r < 0.2).astype(jnp.float32)
    adj = jnp.clip(a + a.T + jnp.eye(num_nodes, dtype=jnp.float32), 0.0, 1.0)

    params = init_params(k_par, in_features, hidden_dim_enc, hidden_features,
                         embed_dim, m_list)

    forward = jax.jit(build_hyperse_forward(num_nodes, in_features, embed_dim, m_list,
                                            height=height, temperature=temperature))
    out, embeddings, ass_mat = forward(features, adj, params)
    jax.block_until_ready(out)

    assert out.shape == (num_nodes, embed_dim + 1)
    assert all(int(k) in embeddings for k in range(height + 1))
    assert ass_mat[height].shape == (num_nodes, num_nodes)
    assert ass_mat[height - 1].shape == (num_nodes, m_list[0])
    assert ass_mat[1].shape == (num_nodes, m_list[-1])
    # every node gets exactly one hard cluster (one-hot never lands in padding)
    assert bool(jnp.allclose(jnp.sum(ass_mat[height - 1], axis=1), 1.0))
    assert bool(jnp.allclose(jnp.sum(ass_mat[1], axis=1), 1.0))
    assert not bool(jnp.any(jnp.isnan(out)))
    assert not bool(jnp.any(jnp.isnan(embeddings[0])))
    print("KERNEL_OK")
</pallas_src>

<mosaic_0001>
module attributes {stable_mosaic.version = 11 : i64} {
  func.func @_hyperse_kernel(%arg0: memref<32x128xf32, #tpu.memory_space<vmem>>, %arg1: memref<32x32xf32, #tpu.memory_space<vmem>>, %arg2: memref<128x128xf32, #tpu.memory_space<vmem>>, %arg3: memref<1x128xf32, #tpu.memory_space<vmem>>, %arg4: memref<128x128xf32, #tpu.memory_space<vmem>>, %arg5: memref<1x128xf32, #tpu.memory_space<vmem>>, %arg6: memref<1xf32, #tpu.memory_space<smem>>, %arg7: memref<128x128xf32, #tpu.memory_space<vmem>>, %arg8: memref<1x128xf32, #tpu.memory_space<vmem>>, %arg9: memref<128x128xf32, #tpu.memory_space<vmem>>, %arg10: memref<1x128xf32, #tpu.memory_space<vmem>>, %arg11: memref<128x128xf32, #tpu.memory_space<vmem>>, %arg12: memref<1x128xf32, #tpu.memory_space<vmem>>, %arg13: memref<128x128xf32, #tpu.memory_space<vmem>>, %arg14: memref<1x128xf32, #tpu.memory_space<vmem>>, %arg15: memref<32x128xf32, #tpu.memory_space<vmem>>, %arg16: memref<128x128xf32, #tpu.memory_space<vmem>>, %arg17: memref<128x128xf32, #tpu.memory_space<vmem>>, %arg18: memref<1x128xf32, #tpu.memory_space<vmem>>, %arg19: memref<32x128xf32, #tpu.memory_space<vmem>>, %arg20: memref<32x128xf32, #tpu.memory_space<vmem>>) attributes {dimension_semantics = [], scalar_prefetch = 0 : i64, scratch_operands = 0 : i64, tpu.core_type = #tpu.core_type<tc>} {
    %0 = tpu.iota {dimensions = array<i32: 1>} : vector<32x128xi32>
    %1 = tpu.iota {dimensions = array<i32: 1>} : vector<128x128xi32>
    %2 = tpu.iota {dimensions = array<i32: 0>} : vector<128x128xi32>
    %c0_i32 = arith.constant 0 : i32
    %3 = vector.broadcast %c0_i32 : i32 to vector<32x128xi32>
    %4 = arith.cmpi eq, %0, %3 : vector<32x128xi32>
    %c0_i32_0 = arith.constant 0 : i32
    %5 = vector.broadcast %c0_i32_0 : i32 to vector<128x128xi32>
    %6 = arith.cmpi eq, %1, %5 : vector<128x128xi32>
    %7 = arith.cmpi eq, %2, %1 : vector<128x128xi32>
    %c0 = arith.constant 0 : index
    %c0_1 = arith.constant 0 : index
    %8 = vector.load %arg0[%c0, %c0_1] : memref<32x128xf32, #tpu.memory_space<vmem>>, vector<32x128xf32>
    %9 = arith.mulf %8, %8 : vector<32x128xf32>
    %cst = arith.constant dense<0.000000e+00> : vector<32xf32>
    %10 = vector.multi_reduction <add>, %9, %cst [1] : vector<32x128xf32> to vector<32xf32>
    %11 = vector.shape_cast %10 : vector<32xf32> to vector<32x1xf32>
    %cst_2 = arith.constant 9.99999993E-9 : f32
    %12 = vector.broadcast %cst_2 : f32 to vector<32x1xf32>
    %13 = arith.maximumf %11, %12 : vector<32x1xf32>
    %14 = math.sqrt %13 : vector<32x1xf32>
    %15 = math.exp %14 : vector<32x1xf32>
    %cst_3 = arith.constant 1.000000e+00 : f32
    %16 = vector.broadcast %cst_3 : f32 to vector<32x1xf32>
    %17 = arith.divf %16, %15 : vector<32x1xf32>
    %18 = arith.addf %15, %17 : vector<32x1xf32>
    %cst_4 = arith.constant 5.000000e-01 : f32
    %19 = vector.broadcast %cst_4 : f32 to vector<32x1xf32>
    %20 = arith.mulf %19, %18 : vector<32x1xf32>
    %21 = arith.subf %15, %17 : vector<32x1xf32>
    %cst_5 = arith.constant 5.000000e-01 : f32
    %22 = vector.broadcast %cst_5 : f32 to vector<32x1xf32>
    %23 = arith.mulf %22, %21 : vector<32x1xf32>
    %24 = arith.divf %23, %14 : vector<32x1xf32>
    %25 = vector.broadcast %24 : vector<32x1xf32> to vector<32x128xf32>
    %26 = arith.mulf %8, %25 : vector<32x128xf32>
    %27 = vector.shape_cast %20 : vector<32x1xf32> to vector<32x1xf32>
    %28 = vector.broadcast %27 : vector<32x1xf32> to vector<32x128xf32>
    %29 = arith.select %4, %28, %26 : vector<32x128xi1>, vector<32x128xf32>
    %c0_6 = arith.constant 0 : index
    %c0_7 = arith.constant 0 : index
    %30 = vector.load %arg1[%c0_6, %c0_7] : memref<32x32xf32, #tpu.memory_space<vmem>>, vector<32x32xf32>
    %c0_8 = arith.constant 0 : index
    %31 = memref.load %arg6[%c0_8] : memref<1xf32, #tpu.memory_space<smem>>
    %c0_9 = arith.constant 0 : index
    %c0_10 = arith.constant 0 : index
    %32 = vector.load %arg2[%c0_9, %c0_10] : memref<128x128xf32, #tpu.memory_space<vmem>>, vector<128x128xf32>
    %c0_11 = arith.constant 0 : index
    %c0_12 = arith.constant 0 : index
    %33 = vector.load %arg3[%c0_11, %c0_12] : memref<1x128xf32, #tpu.memory_space<vmem>>, vector<1x128xf32>
    %cst_13 = arith.constant dense<0.000000e+00> : vector<32x128xf32>
    %34 = tpu.matmul %29, %32, %cst_13 {dimension_numbers = #tpu.dot_dimension_numbers<[1], [0], [0], [1], [0, 0, 1, 1], [], []>} : vector<32x128xf32>, vector<128x128xf32>, vector<32x128xf32> -> vector<32x128xf32>
    %35 = vector.broadcast %33 : vector<1x128xf32> to vector<32x128xf32>
    %36 = arith.addf %34, %35 : vector<32x128xf32>
    %37 = vector.extract_strided_slice %36 {offsets = [0, 0], sizes = [32, 1], strides = [1, 1]} : vector<32x128xf32> to vector<32x1xf32>
    %38 = arith.negf %37 : vector<32x1xf32>
    %39 = math.exp %38 : vector<32x1xf32>
    %cst_14 = arith.constant 1.000000e+00 : f32
    %40 = vector.broadcast %cst_14 : f32 to vector<32x1xf32>
    %41 = arith.addf %40, %39 : vector<32x1xf32>
    %42 = arith.divf %40, %41 : vector<32x1xf32>
    %cst_15 = arith.constant 1.000000e+01 : f32
    %43 = vector.broadcast %cst_15 : f32 to vector<32x1xf32>
    %44 = arith.mulf %42, %43 : vector<32x1xf32>
    %cst_16 = arith.constant 1.100000e+00 : f32
    %45 = vector.broadcast %cst_16 : f32 to vector<32x1xf32>
    %46 = arith.addf %44, %45 : vector<32x1xf32>
    %47 = arith.mulf %36, %36 : vector<32x128xf32>
    %cst_17 = arith.constant dense<0.000000e+00> : vector<32xf32>
    %48 = vector.multi_reduction <add>, %47, %cst_17 [1] : vector<32x128xf32> to vector<32xf32>
    %49 = vector.shape_cast %48 : vector<32xf32> to vector<32x1xf32>
    %50 = arith.mulf %37, %37 : vector<32x1xf32>
    %51 = arith.subf %49, %50 : vector<32x1xf32>
    %cst_18 = arith.constant 9.99999993E-9 : f32
    %52 = vector.broadcast %cst_18 : f32 to vector<32x1xf32>
    %53 = arith.maximumf %51, %52 : vector<32x1xf32>
    %54 = arith.mulf %46, %46 : vector<32x1xf32>
    %cst_19 = arith.constant 1.000000e+00 : f32
    %55 = vector.broadcast %cst_19 : f32 to vector<32x1xf32>
    %56 = arith.subf %54, %55 : vector<32x1xf32>
    %57 = math.sqrt %56 : vector<32x1xf32>
    %58 = math.rsqrt %53 : vector<32x1xf32>
    %59 = arith.mulf %57, %58 : vector<32x1xf32>
    %60 = vector.broadcast %59 : vector<32x1xf32> to vector<32x128xf32>
    %61 = arith.mulf %36, %60 : vector<32x128xf32>
    %62 = vector.shape_cast %46 : vector<32x1xf32> to vector<32x1xf32>
    %63 = vector.broadcast %62 : vector<32x1xf32> to vector<32x128xf32>
    %64 = arith.select %4, %63, %61 : vector<32x128xi1>, vector<32x128xf32>
    %cst_20 = arith.constant dense<0.000000e+00> : vector<32x128xf32>
    %65 = tpu.matmul %30, %64, %cst_20 {dimension_numbers = #tpu.dot_dimension_numbers<[1], [0], [0], [1], [0, 0, 1, 1], [], []>} : vector<32x32xf32>, vector<32x128xf32>, vector<32x128xf32> -> vector<32x128xf32>
    %66 = vector.extract_strided_slice %65 {offsets = [0, 0], sizes = [32, 1], strides = [1, 1]} : vector<32x128xf32> to vector<32x1xf32>
    %67 = arith.mulf %65, %65 : vector<32x128xf32>
    %cst_21 = arith.constant dense<0.000000e+00> : vector<32xf32>
    %68 = vector.multi_reduction <add>, %67, %cst_21 [1] : vector<32x128xf32> to vector<32xf32>
    %69 = vector.shape_cast %68 : vector<32xf32> to vector<32x1xf32>
    %cst_22 = arith.constant 2.000000e+00 : f32
    %70 = vector.broadcast %cst_22 : f32 to vector<32x1xf32>
    %71 = arith.mulf %70, %66 : vector<32x1xf32>
    %72 = arith.mulf %71, %66 : vector<32x1xf32>
    %73 = arith.subf %69, %72 : vector<32x1xf32>
    %74 = math.absf %73 : vector<32x1xf32>
    %cst_23 = arith.constant 9.99999993E-9 : f32
    %75 = vector.broadcast %cst_23 : f32 to vector<32x1xf32>
    %76 = arith.maximumf %74, %75 : vector<32x1xf32>
    %77 = math.rsqrt %76 : vector<32x1xf32>
    %78 = vector.broadcast %77 : vector<32x1xf32> to vector<32x128xf32>
    %79 = arith.mulf %65, %78 : vector<32x128xf32>
    %c0_24 = arith.constant 0 : index
    %c0_25 = arith.constant 0 : index
    %80 = vector.load %arg4[%c0_24, %c0_25] : memref<128x128xf32, #tpu.memory_space<vmem>>, vector<128x128xf32>
    %c0_26 = arith.constant 0 : index
    %c0_27 = arith.constant 0 : index
    %81 = vector.load %arg5[%c0_26, %c0_27] : memref<1x128xf32, #tpu.memory_space<vmem>>, vector<1x128xf32>
    %cst_28 = arith.constant 0.000000e+00 : f32
    %82 = vector.broadcast %cst_28 : f32 to vector<32x128xf32>
    %83 = arith.maximumf %79, %82 : vector<32x128xf32>
    %cst_29 = arith.constant dense<0.000000e+00> : vector<32x128xf32>
    %84 = tpu.matmul %83, %80, %cst_29 {dimension_numbers = #tpu.dot_dimension_numbers<[1], [0], [0], [1], [0, 0, 1, 1], [], []>} : vector<32x128xf32>, vector<128x128xf32>, vector<32x128xf32> -> vector<32x128xf32>
    %85 = vector.broadcast %81 : vector<1x128xf32> to vector<32x128xf32>
    %86 = arith.addf %84, %85 : vector<32x128xf32>
    %87 = vector.extract_strided_slice %86 {offsets = [0, 0], sizes = [32, 1], strides = [1, 1]} : vector<32x128xf32> to vector<32x1xf32>
    %88 = arith.negf %87 : vector<32x1xf32>
    %89 = math.exp %88 : vector<32x1xf32>
    %cst_30 = arith.constant 1.000000e+00 : f32
    %90 = vector.broadcast %cst_30 : f32 to vector<32x1xf32>
    %91 = arith.addf %90, %89 : vector<32x1xf32>
    %92 = arith.divf %90, %91 : vector<32x1xf32>
    %cst_31 = arith.constant 1.000000e+01 : f32
    %93 = vector.broadcast %cst_31 : f32 to vector<32x1xf32>
    %94 = arith.mulf %92, %93 : vector<32x1xf32>
    %cst_32 = arith.constant 1.100000e+00 : f32
    %95 = vector.broadcast %cst_32 : f32 to vector<32x1xf32>
    %96 = arith.addf %94, %95 : vector<32x1xf32>
    %97 = arith.mulf %86, %86 : vector<32x128xf32>
    %cst_33 = arith.constant dense<0.000000e+00> : vector<32xf32>
    %98 = vector.multi_reduction <add>, %97, %cst_33 [1] : vector<32x128xf32> to vector<32xf32>
    %99 = vector.shape_cast %98 : vector<32xf32> to vector<32x1xf32>
    %100 = arith.mulf %87, %87 : vector<32x1xf32>
    %101 = arith.subf %99, %100 : vector<32x1xf32>
    %cst_34 = arith.constant 9.99999993E-9 : f32
    %102 = vector.broadcast %cst_34 : f32 to vector<32x1xf32>
    %103 = arith.maximumf %101, %102 : vector<32x1xf32>
    %104 = arith.mulf %96, %96 : vector<32x1xf32>
    %cst_35 = arith.constant 1.000000e+00 : f32
    %105 = vector.broadcast %cst_35 : f32 to vector<32x1xf32>
    %106 = arith.subf %104, %105 : vector<32x1xf32>
    %107 = math.sqrt %106 : vector<32x1xf32>
    %108 = math.rsqrt %103 : vector<32x1xf32>
    %109 = arith.mulf %107, %108 : vector<32x1xf32>
    %110 = vector.broadcast %109 : vector<32x1xf32> to vector<32x128xf32>
    %111 = arith.mulf %86, %110 : vector<32x128xf32>
    %112 = vector.shape_cast %96 : vector<32x1xf32> to vector<32x1xf32>
    %113 = vector.broadcast %112 : vector<32x1xf32> to vector<32x128xf32>
    %114 = arith.select %4, %113, %111 : vector<32x128xi1>, vector<32x128xf32>
    %cst_36 = arith.constant dense<0.000000e+00> : vector<32x128xf32>
    %115 = tpu.matmul %30, %114, %cst_36 {dimension_numbers = #tpu.dot_dimension_numbers<[1], [0], [0], [1], [0, 0, 1, 1], [], []>} : vector<32x32xf32>, vector<32x128xf32>, vector<32x128xf32> -> vector<32x128xf32>
    %116 = vector.extract_strided_slice %115 {offsets = [0, 0], sizes = [32, 1], strides = [1, 1]} : vector<32x128xf32> to vector<32x1xf32>
    %117 = arith.mulf %115, %115 : vector<32x128xf32>
    %cst_37 = arith.constant dense<0.000000e+00> : vector<32xf32>
    %118 = vector.multi_reduction <add>, %117, %cst_37 [1] : vector<32x128xf32> to vector<32xf32>
    %119 = vector.shape_cast %118 : vector<32xf32> to vector<32x1xf32>
    %cst_38 = arith.constant 2.000000e+00 : f32
    %120 = vector.broadcast %cst_38 : f32 to vector<32x1xf32>
    %121 = arith.mulf %120, %116 : vector<32x1xf32>
    %122 = arith.mulf %121, %116 : vector<32x1xf32>
    %123 = arith.subf %119, %122 : vector<32x1xf32>
    %124 = math.absf %123 : vector<32x1xf32>
    %cst_39 = arith.constant 9.99999993E-9 : f32
    %125 = vector.broadcast %cst_39 : f32 to vector<32x1xf32>
    %126 = arith.maximumf %124, %125 : vector<32x1xf32>
    %127 = math.rsqrt %126 : vector<32x1xf32>
    %128 = vector.broadcast %127 : vector<32x1xf32> to vector<32x128xf32>
    %129 = arith.mulf %115, %128 : vector<32x128xf32>
    %130 = vector.extract_strided_slice %129 {offsets = [0, 0], sizes = [32, 1], strides = [1, 1]} : vector<32x128xf32> to vector<32x1xf32>
    %131 = arith.mulf %129, %129 : vector<32x128xf32>
    %cst_40 = arith.constant dense<0.000000e+00> : vector<32xf32>
    %132 = vector.multi_reduction <add>, %131, %cst_40 [1] : vector<32x128xf32> to vector<32xf32>
    %133 = vector.shape_cast %132 : vector<32xf32> to vector<32x1xf32>
    %134 = arith.mulf %130, %130 : vector<32x1xf32>
    %135 = arith.subf %133, %134 : vector<32x1xf32>
    %cst_41 = arith.constant 0.000000e+00 : f32
    %136 = vector.broadcast %cst_41 : f32 to vector<32x1xf32>
    %137 = arith.maximumf %135, %136 : vector<32x1xf32>
    %cst_42 = arith.constant 1.000000e-24 : f32
    %138 = vector.broadcast %cst_42 : f32 to vector<32x1xf32>
    %139 = arith.maximumf %137, %138 : vector<32x1xf32>
    %140 = math.rsqrt %139 : vector<32x1xf32>
    %cst_43 = arith.constant 0.00999999977 : f32
    %cst_44 = arith.constant 9.990000e-01 : f32
    %141 = arith.maximumf %cst_43, %31 : f32
    %142 = arith.minimumf %cst_44, %141 : f32
    %143 = arith.mulf %142, %142 : f32
    %cst_45 = arith.constant 1.000000e+00 : f32
    %144 = arith.subf %cst_45, %143 : f32
    %cst_46 = arith.constant 9.99999997E-7 : f32
    %145 = arith.addf %144, %cst_46 : f32
    %cst_47 = arith.constant 1.000000e+00 : f32
    %146 = arith.addf %cst_47, %143 : f32
    %147 = arith.divf %146, %145 : f32
    %cst_48 = arith.constant 2.000000e+00 : f32
    %148 = arith.mulf %cst_48, %142 : f32
    %149 = arith.divf %148, %145 : f32
    %150 = vector.broadcast %149 : f32 to vector<32x1xf32>
    %151 = arith.mulf %150, %140 : vector<32x1xf32>
    %152 = vector.broadcast %151 : vector<32x1xf32> to vector<32x128xf32>
    %153 = arith.mulf %129, %152 : vector<32x128xf32>
    %154 = vector.broadcast %147 : f32 to vector<32x128xf32>
    %155 = arith.select %4, %154, %153 : vector<32x128xi1>, vector<32x128xf32>
    %c0_49 = arith.constant 0 : index
    %c0_50 = arith.constant 0 : index
    %156 = vector.load %arg15[%c0_49, %c0_50] : memref<32x128xf32, #tpu.memory_space<vmem>>, vector<32x128xf32>
    tpu.vector_store %arg15[%c0_49, %c0_50], %155 {strides = array<i32>} : memref<32x128xf32, #tpu.memory_space<vmem>>, vector<32x128xf32>,
    %c0_51 = arith.constant 0 : index
    %c0_52 = arith.constant 0 : index
    %157 = vector.load %arg7[%c0_51, %c0_52] : memref<128x128xf32, #tpu.memory_space<vmem>>, vector<128x128xf32>
    %c0_53 = arith.constant 0 : index
    %c0_54 = arith.constant 0 : index
    %158 = vector.load %arg8[%c0_53, %c0_54] : memref<1x128xf32, #tpu.memory_space<vmem>>, vector<1x128xf32>
    %cst_55 = arith.constant dense<0.000000e+00> : vector<32x128xf32>
    %159 = tpu.matmul %155, %157, %cst_55 {dimension_numbers = #tpu.dot_dimension_numbers<[1], [0], [0], [1], [0, 0, 1, 1], [], []>} : vector<32x128xf32>, vector<128x128xf32>, vector<32x128xf32> -> vector<32x128xf32>
    %160 = vector.broadcast %158 : vector<1x128xf32> to vector<32x128xf32>
    %161 = arith.addf %159, %160 : vector<32x128xf32>
    %162 = vector.extract_strided_slice %161 {offsets = [0, 0], sizes = [32, 1], strides = [1, 1]} : vector<32x128xf32> to vector<32x1xf32>
    %163 = arith.negf %162 : vector<32x1xf32>
    %164 = math.exp %163 : vector<32x1xf32>
    %cst_56 = arith.constant 1.000000e+00 : f32
    %165 = vector.broadcast %cst_56 : f32 to vector<32x1xf32>
    %166 = arith.addf %165, %164 : vector<32x1xf32>
    %167 = arith.divf %165, %166 : vector<32x1xf32>
    %cst_57 = arith.constant 1.000000e+01 : f32
    %168 = vector.broadcast %cst_57 : f32 to vector<32x1xf32>
    %169 = arith.mulf %167, %168 : vector<32x1xf32>
    %cst_58 = arith.constant 1.100000e+00 : f32
    %170 = vector.broadcast %cst_58 : f32 to vector<32x1xf32>
    %171 = arith.addf %169, %170 : vector<32x1xf32>
    %172 = arith.mulf %161, %161 : vector<32x128xf32>
    %cst_59 = arith.constant dense<0.000000e+00> : vector<32xf32>
    %173 = vector.multi_reduction <add>, %172, %cst_59 [1] : vector<32x128xf32> to vector<32xf32>
    %174 = vector.shape_cast %173 : vector<32xf32> to vector<32x1xf32>
    %175 = arith.mulf %162, %162 : vector<32x1xf32>
    %176 = arith.subf %174, %175 : vector<32x1xf32>
    %cst_60 = arith.constant 9.99999993E-9 : f32
    %177 = vector.broadcast %cst_60 : f32 to vector<32x1xf32>
    %178 = arith.maximumf %176, %177 : vector<32x1xf32>
    %179 = arith.mulf %171, %171 : vector<32x1xf32>
    %cst_61 = arith.constant 1.000000e+00 : f32
    %180 = vector.broadcast %cst_61 : f32 to vector<32x1xf32>
    %181 = arith.subf %179, %180 : vector<32x1xf32>
    %182 = math.sqrt %181 : vector<32x1xf32>
    %183 = math.rsqrt %178 : vector<32x1xf32>
    %184 = arith.mulf %182, %183 : vector<32x1xf32>
    %185 = vector.broadcast %184 : vector<32x1xf32> to vector<32x128xf32>
    %186 = arith.mulf %161, %185 : vector<32x128xf32>
    %187 = vector.shape_cast %171 : vector<32x1xf32> to vector<32x1xf32>
    %188 = vector.broadcast %187 : vector<32x1xf32> to vector<32x128xf32>
    %189 = arith.select %4, %188, %186 : vector<32x128xi1>, vector<32x128xf32>
    %c0_62 = arith.constant 0 : index
    %c0_63 = arith.constant 0 : index
    %190 = vector.load %arg9[%c0_62, %c0_63] : memref<128x128xf32, #tpu.memory_space<vmem>>, vector<128x128xf32>
    %c0_64 = arith.constant 0 : index
    %c0_65 = arith.constant 0 : index
    %191 = vector.load %arg10[%c0_64, %c0_65] : memref<1x128xf32, #tpu.memory_space<vmem>>, vector<1x128xf32>
    %cst_66 = arith.constant 0.000000e+00 : f32
    %192 = vector.broadcast %cst_66 : f32 to vector<32x128xf32>
    %193 = arith.maximumf %189, %192 : vector<32x128xf32>
    %cst_67 = arith.constant dense<0.000000e+00> : vector<32x128xf32>
    %194 = tpu.matmul %193, %190, %cst_67 {dimension_numbers = #tpu.dot_dimension_numbers<[1], [0], [0], [1], [0, 0, 1, 1], [], []>} : vector<32x128xf32>, vector<128x128xf32>, vector<32x128xf32> -> vector<32x128xf32>
    %195 = vector.broadcast %191 : vector<1x128xf32> to vector<32x128xf32>
    %196 = arith.addf %194, %195 : vector<32x128xf32>
    %197 = vector.extract_strided_slice %196 {offsets = [0, 0], sizes = [32, 1], strides = [1, 1]} : vector<32x128xf32> to vector<32x1xf32>
    %198 = arith.negf %197 : vector<32x1xf32>
    %199 = math.exp %198 : vector<32x1xf32>
    %cst_68 = arith.constant 1.000000e+00 : f32
    %200 = vector.broadcast %cst_68 : f32 to vector<32x1xf32>
    %201 = arith.addf %200, %199 : vector<32x1xf32>
    %202 = arith.divf %200, %201 : vector<32x1xf32>
    %cst_69 = arith.constant 1.000000e+01 : f32
    %203 = vector.broadcast %cst_69 : f32 to vector<32x1xf32>
    %204 = arith.mulf %202, %203 : vector<32x1xf32>
    %cst_70 = arith.constant 1.100000e+00 : f32
    %205 = vector.broadcast %cst_70 : f32 to vector<32x1xf32>
    %206 = arith.addf %204, %205 : vector<32x1xf32>
    %207 = arith.mulf %196, %196 : vector<32x128xf32>
    %cst_71 = arith.constant dense<0.000000e+00> : vector<32xf32>
    %208 = vector.multi_reduction <add>, %207, %cst_71 [1] : vector<32x128xf32> to vector<32xf32>
    %209 = vector.shape_cast %208 : vector<32xf32> to vector<32x1xf32>
    %210 = arith.mulf %197, %197 : vector<32x1xf32>
    %211 = arith.subf %209, %210 : vector<32x1xf32>
    %cst_72 = arith.constant 9.99999993E-9 : f32
    %212 = vector.broadcast %cst_72 : f32 to vector<32x1xf32>
    %213 = arith.maximumf %211, %212 : vector<32x1xf32>
    %214 = arith.mulf %206, %206 : vector<32x1xf32>
    %cst_73 = arith.constant 1.000000e+00 : f32
    %215 = vector.broadcast %cst_73 : f32 to vector<32x1xf32>
    %216 = arith.subf %214, %215 : vector<32x1xf32>
    %217 = math.sqrt %216 : vector<32x1xf32>
    %218 = math.rsqrt %213 : vector<32x1xf32>
    %219 = arith.mulf %217, %218 : vector<32x1xf32>
    %220 = vector.broadcast %219 : vector<32x1xf32> to vector<32x128xf32>
    %221 = arith.mulf %196, %220 : vector<32x128xf32>
    %222 = vector.shape_cast %206 : vector<32x1xf32> to vector<32x1xf32>
    %223 = vector.broadcast %222 : vector<32x1xf32> to vector<32x128xf32>
    %224 = arith.select %4, %223, %221 : vector<32x128xi1>, vector<32x128xf32>
    %cst_74 = arith.constant dense<0.000000e+00> : vector<32x128xf32>
    %225 = tpu.matmul %30, %224, %cst_74 {dimension_numbers = #tpu.dot_dimension_numbers<[1], [0], [0], [1], [0, 0, 1, 1], [], []>} : vector<32x32xf32>, vector<32x128xf32>, vector<32x128xf32> -> vector<32x128xf32>
    %226 = vector.extract_strided_slice %225 {offsets = [0, 0], sizes = [32, 1], strides = [1, 1]} : vector<32x128xf32> to vector<32x1xf32>
    %227 = arith.mulf %225, %225 : vector<32x128xf32>
    %cst_75 = arith.constant dense<0.000000e+00> : vector<32xf32>
    %228 = vector.multi_reduction <add>, %227, %cst_75 [1] : vector<32x128xf32> to vector<32xf32>
    %229 = vector.shape_cast %228 : vector<32xf32> to vector<32x1xf32>
    %cst_76 = arith.constant 2.000000e+00 : f32
    %230 = vector.broadcast %cst_76 : f32 to vector<32x1xf32>
    %231 = arith.mulf %230, %226 : vector<32x1xf32>
    %232 = arith.mulf %231, %226 : vector<32x1xf32>
    %233 = arith.subf %229, %232 : vector<32x1xf32>
    %234 = math.absf %233 : vector<32x1xf32>
    %cst_77 = arith.constant 9.99999993E-9 : f32
    %235 = vector.broadcast %cst_77 : f32 to vector<32x1xf32>
    %236 = arith.maximumf %234, %235 : vector<32x1xf32>
    %237 = math.rsqrt %236 : vector<32x1xf32>
    %238 = vector.broadcast %237 : vector<32x1xf32> to vector<32x128xf32>
    %239 = arith.mulf %225, %238 : vector<32x128xf32>
    %c1_i32 = arith.constant 1 : i32
    %240 = vector.broadcast %c1_i32 : i32 to vector<32x128xi32>
    %241 = arith.cmpi sge, %0, %240 : vector<32x128xi32>
    %c10_i32 = arith.constant 10 : i32
    %242 = vector.broadcast %c10_i32 : i32 to vector<32x128xi32>
    %243 = arith.cmpi sle, %0, %242 : vector<32x128xi32>
    %244 = arith.andi %241, %243 : vector<32x128xi1>
    %cst_78 = arith.constant 5.000000e+00 : f32
    %245 = vector.broadcast %cst_78 : f32 to vector<32x128xf32>
    %246 = arith.mulf %239, %245 : vector<32x128xf32>
    %cst_79 = arith.constant -1.000000e+30 : f32
    %247 = vector.broadcast %cst_79 : f32 to vector<32x128xf32>
    %248 = arith.select %244, %246, %247 : vector<32x128xi1>, vector<32x128xf32>
    %cst_80 = arith.constant dense<0xFF800000> : vector<32xf32>
    %249 = vector.multi_reduction <maximumf>, %248, %cst_80 [1] : vector<32x128xf32> to vector<32xf32>
    %250 = vector.shape_cast %249 : vector<32xf32> to vector<32x1xf32>
    %251 = vector.broadcast %250 : vector<32x1xf32> to vector<32x128xf32>
    %252 = arith.subf %248, %251 : vector<32x128xf32>
    %253 = math.exp %252 : vector<32x128xf32>
    %cst_81 = arith.constant 0.000000e+00 : f32
    %254 = vector.broadcast %cst_81 : f32 to vector<32x128xf32>
    %255 = arith.select %244, %253, %254 : vector<32x128xi1>, vector<32x128xf32>
    %cst_82 = arith.constant dense<0.000000e+00> : vector<32xf32>
    %256 = vector.multi_reduction <add>, %255, %cst_82 [1] : vector<32x128xf32> to vector<32xf32>
    %257 = vector.shape_cast %256 : vector<32xf32> to vector<32x1xf32>
    %258 = tpu.reciprocal %257 {approx = true} : vector<32x1xf32> -> vector<32x1xf32>
    %259 = vector.broadcast %258 : vector<32x1xf32> to vector<32x128xf32>
    %260 = arith.mulf %255, %259 : vector<32x128xf32>
    %cst_83 = arith.constant dense<0.000000e+00> : vector<32x128xf32>
    %261 = tpu.matmul %30, %260, %cst_83 {dimension_numbers = #tpu.dot_dimension_numbers<[1], [0], [0], [1], [0, 0, 1, 1], [], []>} : vector<32x32xf32>, vector<32x128xf32>, vector<32x128xf32> -> vector<32x128xf32>
    %262 = tpu.concatenate %155, %261 in 1 : vector<32x128xf32>, vector<32x128xf32> -> vector<32x256xf32>
    %cst_84 = arith.constant dense<0.000000e+00> : vector<128x256xf32>
    %263 = tpu.matmul %260, %262, %cst_84 {dimension_numbers = #tpu.dot_dimension_numbers<[0], [0], [1], [1], [0, 1, 1, 1], [], []>} : vector<32x128xf32>, vector<32x256xf32>, vector<128x256xf32> -> vector<128x256xf32>
    %264 = vector.extract_strided_slice %263 {offsets = [0, 0], sizes = [128, 128], strides = [1, 1]} : vector<128x256xf32> to vector<128x128xf32>
    %265 = vector.extract_strided_slice %264 {offsets = [0, 0], sizes = [128, 1], strides = [1, 1]} : vector<128x128xf32> to vector<128x1xf32>
    %266 = arith.mulf %264, %264 : vector<128x128xf32>
    %cst_85 = arith.constant dense<0.000000e+00> : vector<128xf32>
    %267 = vector.multi_reduction <add>, %266, %cst_85 [1] : vector<128x128xf32> to vector<128xf32>
    %268 = vector.shape_cast %267 : vector<128xf32> to vector<128x1xf32>
    %cst_86 = arith.constant 2.000000e+00 : f32
    %269 = vector.broadcast %cst_86 : f32 to vector<128x1xf32>
    %270 = arith.mulf %269, %265 : vector<128x1xf32>
    %271 = arith.mulf %270, %265 : vector<128x1xf32>
    %272 = arith.subf %268, %271 : vector<128x1xf32>
    %273 = math.absf %272 : vector<128x1xf32>
    %cst_87 = arith.constant 9.99999993E-9 : f32
    %274 = vector.broadcast %cst_87 : f32 to vector<128x1xf32>
    %275 = arith.maximumf %273, %274 : vector<128x1xf32>
    %276 = math.rsqrt %275 : vector<128x1xf32>
    %277 = vector.broadcast %276 : vector<128x1xf32> to vector<128x128xf32>
    %278 = arith.mulf %264, %277 : vector<128x128xf32>
    %c0_88 = arith.constant 0 : index
    %c0_89 = arith.constant 0 : index
    %279 = vector.load %arg16[%c0_88, %c0_89] : memref<128x128xf32, #tpu.memory_space<vmem>>, vector<128x128xf32>
    tpu.vector_store %arg16[%c0_88, %c0_89], %278 {strides = array<i32>} : memref<128x128xf32, #tpu.memory_space<vmem>>, vector<128x128xf32>,
    %280 = vector.extract_strided_slice %263 {offsets = [0, 128], sizes = [128, 128], strides = [1, 1]} : vector<128x256xf32> to vector<128x128xf32>
    %cst_90 = arith.constant 0.000000e+00 : f32
    %281 = vector.broadcast %cst_90 : f32 to vector<128x128xf32>
    %282 = arith.select %7, %281, %280 : vector<128x128xi1>, vector<128x128xf32>
    %cst_91 = arith.constant 5.000000e+00 : f32
    %283 = vector.broadcast %cst_91 : f32 to vector<128x128xf32>
    %284 = arith.mulf %282, %283 : vector<128x128xf32>
    %285 = arith.negf %284 : vector<128x128xf32>
    %286 = math.exp %285 : vector<128x128xf32>
    %cst_92 = arith.constant 1.000000e+00 : f32
    %287 = vector.broadcast %cst_92 : f32 to vector<128x128xf32>
    %288 = arith.addf %287, %286 : vector<128x128xf32>
    %289 = arith.divf %287, %288 : vector<128x128xf32>
    %c1_i32_93 = arith.constant 1 : i32
    %290 = vector.broadcast %c1_i32_93 : i32 to vector<128x128xi32>
    %291 = arith.cmpi sge, %2, %290 : vector<128x128xi32>
    %c10_i32_94 = arith.constant 10 : i32
    %292 = vector.broadcast %c10_i32_94 : i32 to vector<128x128xi32>
    %293 = arith.cmpi sle, %2, %292 : vector<128x128xi32>
    %294 = arith.andi %291, %293 : vector<128x128xi1>
    %c1_i32_95 = arith.constant 1 : i32
    %295 = vector.broadcast %c1_i32_95 : i32 to vector<128x128xi32>
    %296 = arith.cmpi sge, %1, %295 : vector<128x128xi32>
    %297 = arith.andi %294, %296 : vector<128x128xi1>
    %c10_i32_96 = arith.constant 10 : i32
    %298 = vector.broadcast %c10_i32_96 : i32 to vector<128x128xi32>
    %299 = arith.cmpi sle, %1, %298 : vector<128x128xi32>
    %300 = arith.andi %297, %299 : vector<128x128xi1>
    %cst_97 = arith.constant 0.000000e+00 : f32
    %301 = vector.broadcast %cst_97 : f32 to vector<128x128xf32>
    %302 = arith.select %300, %289, %301 : vector<128x128xi1>, vector<128x128xf32>
    %cst_98 = arith.constant dense<0xFF800000> : vector<32xf32>
    %303 = vector.multi_reduction <maximumf>, %260, %cst_98 [1] : vector<32x128xf32> to vector<32xf32>
    %304 = vector.shape_cast %303 : vector<32xf32> to vector<32x1xf32>
    %305 = vector.broadcast %304 : vector<32x1xf32> to vector<32x128xf32>
    %306 = arith.cmpf oge, %260, %305 : vector<32x128xf32>
    %c128_i32 = arith.constant 128 : i32
    %307 = vector.broadcast %c128_i32 : i32 to vector<32x128xi32>
    %308 = arith.select %306, %0, %307 : vector<32x128xi1>, vector<32x128xi32>
    %cst_99 = arith.constant dense<2147483647> : vector<32xi32>
    %309 = vector.multi_reduction <minsi>, %308, %cst_99 [1] : vector<32x128xi32> to vector<32xi32>
    %310 = vector.shape_cast %309 : vector<32xi32> to vector<32x1xi32>
    %311 = vector.broadcast %310 : vector<32x1xi32> to vector<32x128xi32>
    %312 = arith.cmpi eq, %0, %311 : vector<32x128xi32>
    %cst_100 = arith.constant 1.000000e+00 : f32
    %cst_101 = arith.constant 0.000000e+00 : f32
    %313 = vector.broadcast %cst_100 : f32 to vector<32x128xf32>
    %314 = vector.broadcast %cst_101 : f32 to vector<32x128xf32>
    %315 = arith.select %312, %313, %314 : vector<32x128xi1>, vector<32x128xf32>
    %c0_102 = arith.constant 0 : index
    %c0_103 = arith.constant 0 : index
    %316 = vector.load %arg19[%c0_102, %c0_103] : memref<32x128xf32, #tpu.memory_space<vmem>>, vector<32x128xf32>
    tpu.vector_store %arg19[%c0_102, %c0_103], %315 {strides = array<i32>} : memref<32x128xf32, #tpu.memory_space<vmem>>, vector<32x128xf32>,
    %c0_104 = arith.constant 0 : index
    %c0_105 = arith.constant 0 : index
    %317 = vector.load %arg11[%c0_104, %c0_105] : memref<128x128xf32, #tpu.memory_space<vmem>>, vector<128x128xf32>
    %c0_106 = arith.constant 0 : index
    %c0_107 = arith.constant 0 : index
    %318 = vector.load %arg12[%c0_106, %c0_107] : memref<1x128xf32, #tpu.memory_space<vmem>>, vector<1x128xf32>
    %cst_108 = arith.constant dense<0.000000e+00> : vector<128x128xf32>
    %319 = tpu.matmul %278, %317, %cst_108 {dimension_numbers = #tpu.dot_dimension_numbers<[1], [0], [0], [1], [0, 0, 1, 1], [], []>} : vector<128x128xf32>, vector<128x128xf32>, vector<128x128xf32> -> vector<128x128xf32>
    %320 = vector.broadcast %318 : vector<1x128xf32> to vector<128x128xf32>
    %321 = arith.addf %319, %320 : vector<128x128xf32>
    %322 = vector.extract_strided_slice %321 {offsets = [0, 0], sizes = [128, 1], strides = [1, 1]} : vector<128x128xf32> to vector<128x1xf32>
    %323 = arith.negf %322 : vector<128x1xf32>
    %324 = math.exp %323 : vector<128x1xf32>
    %cst_109 = arith.constant 1.000000e+00 : f32
    %325 = vector.broadcast %cst_109 : f32 to vector<128x1xf32>
    %326 = arith.addf %325, %324 : vector<128x1xf32>
    %327 = arith.divf %325, %326 : vector<128x1xf32>
    %cst_110 = arith.constant 1.000000e+01 : f32
    %328 = vector.broadcast %cst_110 : f32 to vector<128x1xf32>
    %329 = arith.mulf %327, %328 : vector<128x1xf32>
    %cst_111 = arith.constant 1.100000e+00 : f32
    %330 = vector.broadcast %cst_111 : f32 to vector<128x1xf32>
    %331 = arith.addf %329, %330 : vector<128x1xf32>
    %332 = arith.mulf %321, %321 : vector<128x128xf32>
    %cst_112 = arith.constant dense<0.000000e+00> : vector<128xf32>
    %333 = vector.multi_reduction <add>, %332, %cst_112 [1] : vector<128x128xf32> to vector<128xf32>
    %334 = vector.shape_cast %333 : vector<128xf32> to vector<128x1xf32>
    %335 = arith.mulf %322, %322 : vector<128x1xf32>
    %336 = arith.subf %334, %335 : vector<128x1xf32>
    %cst_113 = arith.constant 9.99999993E-9 : f32
    %337 = vector.broadcast %cst_113 : f32 to vector<128x1xf32>
    %338 = arith.maximumf %336, %337 : vector<128x1xf32>
    %339 = arith.mulf %331, %331 : vector<128x1xf32>
    %cst_114 = arith.constant 1.000000e+00 : f32
    %340 = vector.broadcast %cst_114 : f32 to vector<128x1xf32>
    %341 = arith.subf %339, %340 : vector<128x1xf32>
    %342 = math.sqrt %341 : vector<128x1xf32>
    %343 = math.rsqrt %338 : vector<128x1xf32>
    %344 = arith.mulf %342, %343 : vector<128x1xf32>
    %345 = vector.broadcast %344 : vector<128x1xf32> to vector<128x128xf32>
    %346 = arith.mulf %321, %345 : vector<128x128xf32>
    %347 = vector.shape_cast %331 : vector<128x1xf32> to vector<128x1xf32>
    %348 = vector.broadcast %347 : vector<128x1xf32> to vector<128x128xf32>
    %349 = arith.select %6, %348, %346 : vector<128x128xi1>, vector<128x128xf32>
    %c0_115 = arith.constant 0 : index
    %c0_116 = arith.constant 0 : index
    %350 = vector.load %arg13[%c0_115, %c0_116] : memref<128x128xf32, #tpu.memory_space<vmem>>, vector<128x128xf32>
    %c0_117 = arith.constant 0 : index
    %c0_118 = arith.constant 0 : index
    %351 = vector.load %arg14[%c0_117, %c0_118] : memref<1x128xf32, #tpu.memory_space<vmem>>, vector<1x128xf32>
    %cst_119 = arith.constant 0.000000e+00 : f32
    %352 = vector.broadcast %cst_119 : f32 to vector<128x128xf32>
    %353 = arith.maximumf %349, %352 : vector<128x128xf32>
    %cst_120 = arith.constant dense<0.000000e+00> : vector<128x128xf32>
    %354 = tpu.matmul %353, %350, %cst_120 {dimension_numbers = #tpu.dot_dimension_numbers<[1], [0], [0], [1], [0, 0, 1, 1], [], []>} : vector<128x128xf32>, vector<128x128xf32>, vector<128x128xf32> -> vector<128x128xf32>
    %355 = vector.broadcast %351 : vector<1x128xf32> to vector<128x128xf32>
    %356 = arith.addf %354, %355 : vector<128x128xf32>
    %357 = vector.extract_strided_slice %356 {offsets = [0, 0], sizes = [128, 1], strides = [1, 1]} : vector<128x128xf32> to vector<128x1xf32>
    %358 = arith.negf %357 : vector<128x1xf32>
    %359 = math.exp %358 : vector<128x1xf32>
    %cst_121 = arith.constant 1.000000e+00 : f32
    %360 = vector.broadcast %cst_121 : f32 to vector<128x1xf32>
    %361 = arith.addf %360, %359 : vector<128x1xf32>
    %362 = arith.divf %360, %361 : vector<128x1xf32>
    %cst_122 = arith.constant 1.000000e+01 : f32
    %363 = vector.broadcast %cst_122 : f32 to vector<128x1xf32>
    %364 = arith.mulf %362, %363 : vector<128x1xf32>
    %cst_123 = arith.constant 1.100000e+00 : f32
    %365 = vector.broadcast %cst_123 : f32 to vector<128x1xf32>
    %366 = arith.addf %364, %365 : vector<128x1xf32>
    %367 = arith.mulf %356, %356 : vector<128x128xf32>
    %cst_124 = arith.constant dense<0.000000e+00> : vector<128xf32>
    %368 = vector.multi_reduction <add>, %367, %cst_124 [1] : vector<128x128xf32> to vector<128xf32>
    %369 = vector.shape_cast %368 : vector<128xf32> to vector<128x1xf32>
    %370 = arith.mulf %357, %357 : vector<128x1xf32>
    %371 = arith.subf %369, %370 : vector<128x1xf32>
    %cst_125 = arith.constant 9.99999993E-9 : f32
    %372 = vector.broadcast %cst_125 : f32 to vector<128x1xf32>
    %373 = arith.maximumf %371, %372 : vector<128x1xf32>
    %374 = arith.mulf %366, %366 : vector<128x1xf32>
    %cst_126 = arith.constant 1.000000e+00 : f32
    %375 = vector.broadcast %cst_126 : f32 to vector<128x1xf32>
    %376 = arith.subf %374, %375 : vector<128x1xf32>
    %377 = math.sqrt %376 : vector<128x1xf32>
    %378 = math.rsqrt %373 : vector<128x1xf32>
    %379 = arith.mulf %377, %378 : vector<128x1xf32>
    %380 = vector.broadcast %379 : vector<128x1xf32> to vector<128x128xf32>
    %381 = arith.mulf %356, %380 : vector<128x128xf32>
    %382 = vector.shape_cast %366 : vector<128x1xf32> to vector<128x1xf32>
    %383 = vector.broadcast %382 : vector<128x1xf32> to vector<128x128xf32>
    %384 = arith.select %6, %383, %381 : vector<128x128xi1>, vector<128x128xf32>
    %cst_127 = arith.constant dense<0.000000e+00> : vector<128x128xf32>
    %385 = tpu.matmul %302, %384, %cst_127 {dimension_numbers = #tpu.dot_dimension_numbers<[1], [0], [0], [1], [0, 0, 1, 1], [], []>} : vector<128x128xf32>, vector<128x128xf32>, vector<128x128xf32> -> vector<128x128xf32>
    %386 = vector.extract_strided_slice %385 {offsets = [0, 0], sizes = [128, 1], strides = [1, 1]} : vector<128x128xf32> to vector<128x1xf32>
    %387 = arith.mulf %385, %385 : vector<128x128xf32>
    %cst_128 = arith.constant dense<0.000000e+00> : vector<128xf32>
    %388 = vector.multi_reduction <add>, %387, %cst_128 [1] : vector<128x128xf32> to vector<128xf32>
    %389 = vector.shape_cast %388 : vector<128xf32> to vector<128x1xf32>
    %cst_129 = arith.constant 2.000000e+00 : f32
    %390 = vector.broadcast %cst_129 : f32 to vector<128x1xf32>
    %391 = arith.mulf %390, %386 : vector<128x1xf32>
    %392 = arith.mulf %391, %386 : vector<128x1xf32>
    %393 = arith.subf %389, %392 : vector<128x1xf32>
    %394 = math.absf %393 : vector<128x1xf32>
    %cst_130 = arith.constant 9.99999993E-9 : f32
    %395 = vector.broadcast %cst_130 : f32 to vector<128x1xf32>
    %396 = arith.maximumf %394, %395 : vector<128x1xf32>
    %397 = math.rsqrt %396 : vector<128x1xf32>
    %398 = vector.broadcast %397 : vector<128x1xf32> to vector<128x128xf32>
    %399 = arith.mulf %385, %398 : vector<128x128xf32>
    %c1_i32_131 = arith.constant 1 : i32
    %400 = vector.broadcast %c1_i32_131 : i32 to vector<128x128xi32>
    %401 = arith.cmpi sge, %1, %400 : vector<128x128xi32>
    %c3_i32 = arith.constant 3 : i32
    %402 = vector.broadcast %c3_i32 : i32 to vector<128x128xi32>
    %403 = arith.cmpi sle, %1, %402 : vector<128x128xi32>
    %404 = arith.andi %401, %403 : vector<128x128xi1>
    %cst_132 = arith.constant 5.000000e+00 : f32
    %405 = vector.broadcast %cst_132 : f32 to vector<128x128xf32>
    %406 = arith.mulf %399, %405 : vector<128x128xf32>
    %cst_133 = arith.constant -1.000000e+30 : f32
    %407 = vector.broadcast %cst_133 : f32 to vector<128x128xf32>
    %408 = arith.select %404, %406, %407 : vector<128x128xi1>, vector<128x128xf32>
    %cst_134 = arith.constant dense<0xFF800000> : vector<128xf32>
    %409 = vector.multi_reduction <maximumf>, %408, %cst_134 [1] : vector<128x128xf32> to vector<128xf32>
    %410 = vector.shape_cast %409 : vector<128xf32> to vector<128x1xf32>
    %411 = vector.broadcast %410 : vector<128x1xf32> to vector<128x128xf32>
    %412 = arith.subf %408, %411 : vector<128x128xf32>
    %413 = math.exp %412 : vector<128x128xf32>
    %cst_135 = arith.constant 0.000000e+00 : f32
    %414 = vector.broadcast %cst_135 : f32 to vector<128x128xf32>
    %415 = arith.select %404, %413, %414 : vector<128x128xi1>, vector<128x128xf32>
    %cst_136 = arith.constant dense<0.000000e+00> : vector<128xf32>
    %416 = vector.multi_reduction <add>, %415, %cst_136 [1] : vector<128x128xf32> to vector<128xf32>
    %417 = vector.shape_cast %416 : vector<128xf32> to vector<128x1xf32>
    %418 = tpu.reciprocal %417 {approx = true} : vector<128x1xf32> -> vector<128x1xf32>
    %419 = vector.broadcast %418 : vector<128x1xf32> to vector<128x128xf32>
    %420 = arith.mulf %415, %419 : vector<128x128xf32>
    %cst_137 = arith.constant dense<0.000000e+00> : vector<128x128xf32>
    %421 = tpu.matmul %302, %420, %cst_137 {dimension_numbers = #tpu.dot_dimension_numbers<[1], [0], [0], [1], [0, 0, 1, 1], [], []>} : vector<128x128xf32>, vector<128x128xf32>, vector<128x128xf32> -> vector<128x128xf32>
    %422 = tpu.concatenate %278, %421 in 1 : vector<128x128xf32>, vector<128x128xf32> -> vector<128x256xf32>
    %cst_138 = arith.constant dense<0.000000e+00> : vector<128x256xf32>
    %423 = tpu.matmul %420, %422, %cst_138 {dimension_numbers = #tpu.dot_dimension_numbers<[0], [0], [1], [1], [0, 1, 1, 1], [], []>} : vector<128x128xf32>, vector<128x256xf32>, vector<128x256xf32> -> vector<128x256xf32>
    %424 = vector.extract_strided_slice %423 {offsets = [0, 0], sizes = [128, 128], strides = [1, 1]} : vector<128x256xf32> to vector<128x128xf32>
    %425 = vector.extract_strided_slice %424 {offsets = [0, 0], sizes = [128, 1], strides = [1, 1]} : vector<128x128xf32> to vector<128x1xf32>
    %426 = arith.mulf %424, %424 : vector<128x128xf32>
    %cst_139 = arith.constant dense<0.000000e+00> : vector<128xf32>
    %427 = vector.multi_reduction <add>, %426, %cst_139 [1] : vector<128x128xf32> to vector<128xf32>
    %428 = vector.shape_cast %427 : vector<128xf32> to vector<128x1xf32>
    %cst_140 = arith.constant 2.000000e+00 : f32
    %429 = vector.broadcast %cst_140 : f32 to vector<128x1xf32>
    %430 = arith.mulf %429, %425 : vector<128x1xf32>
    %431 = arith.mulf %430, %425 : vector<128x1xf32>
    %432 = arith.subf %428, %431 : vector<128x1xf32>
    %433 = math.absf %432 : vector<128x1xf32>
    %cst_141 = arith.constant 9.99999993E-9 : f32
    %434 = vector.broadcast %cst_141 : f32 to vector<128x1xf32>
    %435 = arith.maximumf %433, %434 : vector<128x1xf32>
    %436 = math.rsqrt %435 : vector<128x1xf32>
    %437 = vector.broadcast %436 : vector<128x1xf32> to vector<128x128xf32>
    %438 = arith.mulf %424, %437 : vector<128x128xf32>
    %c0_142 = arith.constant 0 : index
    %c0_143 = arith.constant 0 : index
    %439 = vector.load %arg17[%c0_142, %c0_143] : memref<128x128xf32, #tpu.memory_space<vmem>>, vector<128x128xf32>
    tpu.vector_store %arg17[%c0_142, %c0_143], %438 {strides = array<i32>} : memref<128x128xf32, #tpu.memory_space<vmem>>, vector<128x128xf32>,
    %cst_144 = arith.constant dense<0.000000e+00> : vector<32x128xf32>
    %440 = tpu.matmul %260, %420, %cst_144 {dimension_numbers = #tpu.dot_dimension_numbers<[1], [0], [0], [1], [0, 0, 1, 1], [], []>} : vector<32x128xf32>, vector<128x128xf32>, vector<32x128xf32> -> vector<32x128xf32>
    %cst_145 = arith.constant dense<0xFF800000> : vector<32xf32>
    %441 = vector.multi_reduction <maximumf>, %440, %cst_145 [1] : vector<32x128xf32> to vector<32xf32>
    %442 = vector.shape_cast %441 : vector<32xf32> to vector<32x1xf32>
    %443 = vector.broadcast %442 : vector<32x1xf32> to vector<32x128xf32>
    %444 = arith.cmpf oge, %440, %443 : vector<32x128xf32>
    %c128_i32_146 = arith.constant 128 : i32
    %445 = vector.broadcast %c128_i32_146 : i32 to vector<32x128xi32>
    %446 = arith.select %444, %0, %445 : vector<32x128xi1>, vector<32x128xi32>
    %cst_147 = arith.constant dense<2147483647> : vector<32xi32>
    %447 = vector.multi_reduction <minsi>, %446, %cst_147 [1] : vector<32x128xi32> to vector<32xi32>
    %448 = vector.shape_cast %447 : vector<32xi32> to vector<32x1xi32>
    %449 = vector.broadcast %448 : vector<32x1xi32> to vector<32x128xi32>
    %450 = arith.cmpi eq, %0, %449 : vector<32x128xi32>
    %cst_148 = arith.constant 1.000000e+00 : f32
    %cst_149 = arith.constant 0.000000e+00 : f32
    %451 = vector.broadcast %cst_148 : f32 to vector<32x128xf32>
    %452 = vector.broadcast %cst_149 : f32 to vector<32x128xf32>
    %453 = arith.select %450, %451, %452 : vector<32x128xi1>, vector<32x128xf32>
    %c0_150 = arith.constant 0 : index
    %c0_151 = arith.constant 0 : index
    %454 = vector.load %arg20[%c0_150, %c0_151] : memref<32x128xf32, #tpu.memory_space<vmem>>, vector<32x128xf32>
    tpu.vector_store %arg20[%c0_150, %c0_151], %453 {strides = array<i32>} : memref<32x128xf32, #tpu.memory_space<vmem>>, vector<32x128xf32>,
    %cst_152 = arith.constant dense<0.000000e+00> : vector<128xf32>
    %455 = vector.multi_reduction <add>, %438, %cst_152 [0] : vector<128x128xf32> to vector<128xf32>
    %456 = vector.shape_cast %455 : vector<128xf32> to vector<1x128xf32>
    %457 = vector.extract_strided_slice %456 {offsets = [0, 0], sizes = [1, 1], strides = [1, 1]} : vector<1x128xf32> to vector<1x1xf32>
    %458 = arith.mulf %456, %456 : vector<1x128xf32>
    %cst_153 = arith.constant dense<0.000000e+00> : vector<1xf32>
    %459 = vector.multi_reduction <add>, %458, %cst_153 [1] : vector<1x128xf32> to vector<1xf32>
    %460 = vector.shape_cast %459 : vector<1xf32> to vector<1x1xf32>
    %cst_154 = arith.constant 2.000000e+00 : f32
    %461 = vector.broadcast %cst_154 : f32 to vector<1x1xf32>
    %462 = arith.mulf %461, %457 : vector<1x1xf32>
    %463 = arith.mulf %462, %457 : vector<1x1xf32>
    %464 = arith.subf %460, %463 : vector<1x1xf32>
    %465 = math.absf %464 : vector<1x1xf32>
    %cst_155 = arith.constant 9.99999993E-9 : f32
    %466 = vector.broadcast %cst_155 : f32 to vector<1x1xf32>
    %467 = arith.maximumf %465, %466 : vector<1x1xf32>
    %468 = math.rsqrt %467 : vector<1x1xf32>
    %469 = vector.broadcast %468 : vector<1x1xf32> to vector<1x128xf32>
    %470 = arith.mulf %456, %469 : vector<1x128xf32>
    %c0_156 = arith.constant 0 : index
    %c0_157 = arith.constant 0 : index
    %471 = vector.load %arg18[%c0_156, %c0_157] : memref<1x128xf32, #tpu.memory_space<vmem>>, vector<1x128xf32>
    tpu.vector_store %arg18[%c0_156, %c0_157], %470 {strides = array<i32>} : memref<1x128xf32, #tpu.memory_space<vmem>>, vector<1x128xf32>,
    return
  }
}

</mosaic_0001>

<llo_original>
// kernel: forward.1
$region0: #{forward.1}
  #allocation0 [shape = 'u32[]', space=smem, size = 0x4, offset = 0x4, fixed_abs, tag = 'smem constant byte address 0x4 - core index']
  #allocation1 [shape = 'u32[144,128]{1,0:T(1,128)}', space=vmem, size = 0x12000, scoped, tag = 'internal scratch']
  #allocation2 [shape = 'f32[1]{0:T(128)S(6)}', space=smem, size = 0x200, scoped, tag = 'scoped memory for forward.1']
  %s0 = inlined_call_operand.vmem [shape: f32[32,128], index: 0, kind: input, shape index: {}]
  %s1 = inlined_call_operand.vmem [shape: f32[32,32], index: 1, kind: input, shape index: {}]
  %s2 = inlined_call_operand.vmem [shape: f32[128,128], index: 2, kind: input, shape index: {}]
  %s3 = inlined_call_operand.vmem [shape: f32[1,128], index: 3, kind: input, shape index: {}]
  %s4 = inlined_call_operand.hbm [shape: f32[128,128], index: 4, kind: input, shape index: {}]
  %s5 = inlined_call_operand.vmem [shape: f32[1,128], index: 5, kind: input, shape index: {}]
  %s6 = inlined_call_operand.<no memory space> [shape: f32[1], index: 6, kind: input, shape index: {}]
  %s7 = inlined_call_operand.hbm [shape: f32[128,128], index: 7, kind: input, shape index: {}]
  %s8 = inlined_call_operand.hbm [shape: f32[1,128], index: 8, kind: input, shape index: {}]
  %s9 = inlined_call_operand.hbm [shape: f32[128,128], index: 9, kind: input, shape index: {}]
  %s10 = inlined_call_operand.hbm [shape: f32[1,128], index: 10, kind: input, shape index: {}]
  %s11 = inlined_call_operand.hbm [shape: f32[128,128], index: 11, kind: input, shape index: {}]
  %s12 = inlined_call_operand.hbm [shape: f32[1,128], index: 12, kind: input, shape index: {}]
  %s13 = inlined_call_operand.hbm [shape: f32[128,128], index: 13, kind: input, shape index: {}]
  %s14 = inlined_call_operand.hbm [shape: f32[1,128], index: 14, kind: input, shape index: {}]
  %s15 = inlined_call_operand.vmem [shape: f32[32,128], index: 15, kind: output, shape index: {0}]
  %s16 = inlined_call_operand.vmem [shape: f32[128,128], index: 16, kind: output, shape index: {1}]
  %s17 = inlined_call_operand.vmem [shape: f32[128,128], index: 17, kind: output, shape index: {2}]
  %s18 = inlined_call_operand.hbm [shape: f32[1,128], index: 18, kind: output, shape index: {3}]
  %s19 = inlined_call_operand.vmem [shape: f32[32,128], index: 19, kind: output, shape index: {4}]
  %s20 = inlined_call_operand.vmem [shape: f32[32,128], index: 20, kind: output, shape index: {5}]
  %21 = xla_tuple %s15, %s16, %s17, %s18, %s19, %s20
  %s22 = sld [smem:[#allocation0]]
  $region146: #{forward.1} parent=0
    _
  %s24 = ssub.s32 1, %s22
  %s25 = scalar_select 0, %s24, %s22
  %26 = sst [smem:[#allocation2]] %s6
  $region1: #{forward.1} parent=0
    #allocation3 [shape = 'u8[65536]{0}', space=vmem, size = 0x10000, scoped, tag = 'input window, operand 4, single buffered']
    #allocation4 [shape = 's32[1]{0}', space=sflag, size = 0x4, scoped, tag = 'scoped memory for forward.1']
    #allocation5 [shape = 's32[1]{0}', space=sflag, size = 0x4, scoped, tag = 'scoped memory for forward.1']
    #allocation6 [shape = 'u8[65536]{0}', space=vmem, size = 0x10000, scoped, tag = 'input window, operand 7, single buffered']
    #allocation7 [shape = 's32[1]{0}', space=sflag, size = 0x4, scoped, tag = 'scoped memory for forward.1']
    #allocation8 [shape = 'u8[512]{0}', space=vmem, size = 0x400, scoped, tag = 'input window, operand 8, single buffered']
    #allocation9 [shape = 'u8[65536]{0}', space=vmem, size = 0x10000, scoped, tag = 'input window, operand 9, single buffered']
    #allocation10 [shape = 's32[1]{0}', space=sflag, size = 0x4, scoped, tag = 'scoped memory for forward.1']
    #allocation11 [shape = 'u8[512]{0}', space=vmem, size = 0x400, scoped, tag = 'input window, operand 10, single buffered']
    #allocation12 [shape = 'u8[65536]{0}', space=vmem, size = 0x10000, scoped, tag = 'input window, operand 11, single buffered']
    #allocation13 [shape = 's32[1]{0}', space=sflag, size = 0x4, scoped, tag = 'scoped memory for forward.1']
    #allocation14 [shape = 'u8[512]{0}', space=vmem, size = 0x400, scoped, tag = 'input window, operand 12, single buffered']
    #allocation15 [shape = 'u8[65536]{0}', space=vmem, size = 0x10000, scoped, tag = 'input window, operand 13, single buffered']
    #allocation16 [shape = 's32[1]{0}', space=sflag, size = 0x4, scoped, tag = 'scoped memory for forward.1']
    #allocation17 [shape = 'u8[512]{0}', space=vmem, size = 0x400, scoped, tag = 'input window, operand 14, single buffered']
    #allocation18 [shape = 'u8[512]{0}', space=vmem, size = 0x400, scoped, tag = 'output window, operand 3, single buffered']
    %27 = vsyncpa [#allocation4], 0
    %28 = vsyncpa [#allocation7], 0
    %29 = vsyncpa [#allocation10], 0
    %30 = vsyncpa [#allocation13], 0
    %31 = vsyncpa [#allocation16], 0
    %32 = vsyncpa [#allocation5], 0
    // Predicated region
    $region2: #{forward.1} parent=1 // pred_check
      _
    $region3: #{forward.1} parent=1 // pred_check_branch
      %34 = sbr.rel (0) target = $region5
    $region4: #{forward.1} parent=1 // pred_region
      _
    $region5: #{forward.1} parent=1 // pred_fallthru
      _
    // Predicated region
    $region6: #{forward.1} parent=1 // pred_check
      _
    $region7: #{forward.1} parent=1 // pred_check_branch
      %36 = sbr.rel (0) target = $region9
    $region8: #{forward.1} parent=1 // pred_region
      _
    $region9: #{forward.1} parent=1 // pred_fallthru
      _
    // Predicated region
    $region10: #{forward.1} parent=1 // pred_check
      _
    $region11: #{forward.1} parent=1 // pred_check_branch
      %38 = sbr.rel (0) target = $region13
    $region12: #{forward.1} parent=1 // pred_region
      _
    $region13: #{forward.1} parent=1 // pred_fallthru
      _
    // Predicated region
    $region14: #{forward.1} parent=1 // pred_check
      _
    $region15: #{forward.1} parent=1 // pred_check_branch
      %40 = sbr.rel (0) target = $region17
    $region16: #{forward.1} parent=1 // pred_region
      _
    $region17: #{forward.1} parent=1 // pred_fallthru
      _
    // Predicated region
    $region18: #{forward.1} parent=1 // pred_check
      _
    $region19: #{forward.1} parent=1 // pred_check_branch
      %42 = sbr.rel (0) target = $region21
    $region20: #{forward.1} parent=1 // pred_region
      %s44 = ssub.s32 2048, 2048
      %45 = vsyncadd [#allocation4], %s44
      %s46 = sshll.u32 [#allocation3], 4
      %s47 = int_to_ptr.vmem [resolvable:$true] %s46
      %52 = dma.hbm_to_vmem [thread:$0]  %s4, 2048, %s47, [#allocation4], 128, 128, 8
    $region21: #{forward.1} parent=1 // pred_fallthru
      _
    // Predicated region
    $region22: #{forward.1} parent=1 // pred_check
      _
    $region23: #{forward.1} parent=1 // pred_check_branch
      %54 = sbr.rel (0) target = $region25
    $region24: #{forward.1} parent=1 // pred_region
      _
    $region25: #{forward.1} parent=1 // pred_fallthru
      _
    // Predicated region
    $region26: #{forward.1} parent=1 // pred_check
      _
    $region27: #{forward.1} parent=1 // pred_check_branch
      %56 = sbr.rel (0) target = $region29
    $region28: #{forward.1} parent=1 // pred_region
      _
    $region29: #{forward.1} parent=1 // pred_fallthru
      _
    // Predicated region
    $region30: #{forward.1} parent=1 // pred_check
      _
    $region31: #{forward.1} parent=1 // pred_check_branch
      %58 = sbr.rel (0) target = $region33
    $region32: #{forward.1} parent=1 // pred_region
      %s60 = ssub.s32 2048, 2048
      %61 = vsyncadd [#allocation7], %s60
      %s62 = sshll.u32 [#allocation6], 4
      %s63 = int_to_ptr.vmem [resolvable:$true] %s62
      %68 = dma.hbm_to_vmem [thread:$0]  %s7, 2048, %s63, [#allocation7], 128, 128, 8
    $region33: #{forward.1} parent=1 // pred_fallthru
      _
    // Predicated region
    $region34: #{forward.1} parent=1 // pred_check
      _
    $region35: #{forward.1} parent=1 // pred_check_branch
      %70 = sbr.rel (0) target = $region37
    $region36: #{forward.1} parent=1 // pred_region
      %s72 = ssub.s32 16, 16
      %73 = vsyncadd [#allocation7], %s72
      %s75 = sshll.u32 [#allocation8], 4
      %s76 = int_to_ptr.vmem [resolvable:$true] %s75
      %78 = dma.hbm_to_vmem [thread:$0]  %s8, 16, %s76, [#allocation7]
    $region37: #{forward.1} parent=1 // pred_fallthru
      _
    // Predicated region
    $region38: #{forward.1} parent=1 // pred_check
      _
    $region39: #{forward.1} parent=1 // pred_check_branch
      %80 = sbr.rel (0) target = $region41
    $region40: #{forward.1} parent=1 // pred_region
      %s82 = ssub.s32 2048, 2048
      %83 = vsyncadd [#allocation10], %s82
      %s84 = sshll.u32 [#allocation9], 4
      %s85 = int_to_ptr.vmem [resolvable:$true] %s84
      %90 = dma.hbm_to_vmem [thread:$0]  %s9, 2048, %s85, [#allocation10], 128, 128, 8
    $region41: #{forward.1} parent=1 // pred_fallthru
      _
    // Predicated region
    $region42: #{forward.1} parent=1 // pred_check
      _
    $region43: #{forward.1} parent=1 // pred_check_branch
      %92 = sbr.rel (0) target = $region45
    $region44: #{forward.1} parent=1 // pred_region
      %s94 = ssub.s32 16, 16
      %95 = vsyncadd [#allocation10], %s94
      %s97 = sshll.u32 [#allocation11], 4
      %s98 = int_to_ptr.vmem [resolvable:$true] %s97
      %100 = dma.hbm_to_vmem [thread:$0]  %s10, 16, %s98, [#allocation10]
    $region45: #{forward.1} parent=1 // pred_fallthru
      _
    // Predicated region
    $region46: #{forward.1} parent=1 // pred_check
      _
    $region47: #{forward.1} parent=1 // pred_check_branch
      %102 = sbr.rel (0) target = $region49
    $region48: #{forward.1} parent=1 // pred_region
      %s104 = ssub.s32 2048, 2048
      %105 = vsyncadd [#allocation13], %s104
      %s106 = sshll.u32 [#allocation12], 4
      %s107 = int_to_ptr.vmem [resolvable:$true] %s106
      %112 = dma.hbm_to_vmem [thread:$0]  %s11, 2048, %s107, [#allocation13], 128, 128, 8
    $region49: #{forward.1} parent=1 // pred_fallthru
      _
    // Predicated region
    $region50: #{forward.1} parent=1 // pred_check
      _
    $region51: #{forward.1} parent=1 // pred_check_branch
      %114 = sbr.rel (0) target = $region53
    $region52: #{forward.1} parent=1 // pred_region
      %s116 = ssub.s32 16, 16
      %117 = vsyncadd [#allocation13], %s116
      %s119 = sshll.u32 [#allocation14], 4
      %s120 = int_to_ptr.vmem [resolvable:$true] %s119
      %122 = dma.hbm_to_vmem [thread:$0]  %s12, 16, %s120, [#allocation13]
    $region53: #{forward.1} parent=1 // pred_fallthru
      _
    // Predicated region
    $region54: #{forward.1} parent=1 // pred_check
      _
    $region55: #{forward.1} parent=1 // pred_check_branch
      %124 = sbr.rel (0) target = $region57
    $region56: #{forward.1} parent=1 // pred_region
      %s126 = ssub.s32 2048, 2048
      %127 = vsyncadd [#allocation16], %s126
      %s128 = sshll.u32 [#allocation15], 4
      %s129 = int_to_ptr.vmem [resolvable:$true] %s128
      %134 = dma.hbm_to_vmem [thread:$0]  %s13, 2048, %s129, [#allocation16], 128, 128, 8
    $region57: #{forward.1} parent=1 // pred_fallthru
      _
    // Predicated region
    $region58: #{forward.1} parent=1 // pred_check
      _
    $region59: #{forward.1} parent=1 // pred_check_branch
      %136 = sbr.rel (0) target = $region61
    $region60: #{forward.1} parent=1 // pred_region
      %s138 = ssub.s32 16, 16
      %139 = vsyncadd [#allocation16], %s138
      %s141 = sshll.u32 [#allocation17], 4
      %s142 = int_to_ptr.vmem [resolvable:$true] %s141
      %144 = dma.hbm_to_vmem [thread:$0]  %s14, 16, %s142, [#allocation16]
    $region61: #{forward.1} parent=1 // pred_fallthru
      _
    // Predicated region
    $region62: #{forward.1} parent=1 // pred_check
      _
    $region63: #{forward.1} parent=1 // pred_check_branch
      %146 = sbr.rel (0) target = $region65
    $region64: #{forward.1} parent=1 // pred_region
      %147 = dma.done [#allocation4], 2048
    $region65: #{forward.1} parent=1 // pred_fallthru
      _
    // Predicated region
    $region66: #{forward.1} parent=1 // pred_check
      _
    $region67: #{forward.1} parent=1 // pred_check_branch
      %149 = sbr.rel (0) target = $region69
    $region68: #{forward.1} parent=1 // pred_region
      %150 = dma.done [#allocation7], 2048
    $region69: #{forward.1} parent=1 // pred_fallthru
      _
    // Predicated region
    $region70: #{forward.1} parent=1 // pred_check
      _
    $region71: #{forward.1} parent=1 // pred_check_branch
      %152 = sbr.rel (0) target = $region73
    $region72: #{forward.1} parent=1 // pred_region
      %153 = dma.done [#allocation7], 16
    $region73: #{forward.1} parent=1 // pred_fallthru
      _
    // Predicated region
    $region74: #{forward.1} parent=1 // pred_check
      _
    $region75: #{forward.1} parent=1 // pred_check_branch
      %155 = sbr.rel (0) target = $region77
    $region76: #{forward.1} parent=1 // pred_region
      %156 = dma.done [#allocation10], 2048
    $region77: #{forward.1} parent=1 // pred_fallthru
      _
    // Predicated region
    $region78: #{forward.1} parent=1 // pred_check
      _
    $region79: #{forward.1} parent=1 // pred_check_branch
      %158 = sbr.rel (0) target = $region81
    $region80: #{forward.1} parent=1 // pred_region
      %159 = dma.done [#allocation10], 16
    $region81: #{forward.1} parent=1 // pred_fallthru
      _
    // Predicated region
    $region82: #{forward.1} parent=1 // pred_check
      _
    $region83: #{forward.1} parent=1 // pred_check_branch
      %161 = sbr.rel (0) target = $region85
    $region84: #{forward.1} parent=1 // pred_region
      %162 = dma.done [#allocation13], 2048
    $region85: #{forward.1} parent=1 // pred_fallthru
      _
    // Predicated region
    $region86: #{forward.1} parent=1 // pred_check
      _
    $region87: #{forward.1} parent=1 // pred_check_branch
      %164 = sbr.rel (0) target = $region89
    $region88: #{forward.1} parent=1 // pred_region
      %165 = dma.done [#allocation13], 16
    $region89: #{forward.1} parent=1 // pred_fallthru
      _
    // Predicated region
    $region90: #{forward.1} parent=1 // pred_check
      _
    $region91: #{forward.1} parent=1 // pred_check_branch
      %167 = sbr.rel (0) target = $region93
    $region92: #{forward.1} parent=1 // pred_region
      %168 = dma.done [#allocation16], 2048
    $region93: #{forward.1} parent=1 // pred_fallthru
      _
    // Predicated region
    $region94: #{forward.1} parent=1 // pred_check
      _
    $region95: #{forward.1} parent=1 // pred_check_branch
      %170 = sbr.rel (0) target = $region97
    $region96: #{forward.1} parent=1 // pred_region
      %171 = dma.done [#allocation16], 16
    $region97: #{forward.1} parent=1 // pred_fallthru
      _
    %v172 = vlaneseq
    %v173 = vand.u32 %v172, 127
    %v174 = vlaneseq
    %v175 = vshrl.u32 %v174, 7
    %v176 = vadd.s32 %v175, 8
    %v177 = vadd.s32 %v175, 16
    %v178 = vadd.s32 %v175, 24
    %v179 = vadd.s32 %v175, 32
    %v180 = vadd.s32 %v175, 40
    %v181 = vadd.s32 %v175, 48
    %v182 = vadd.s32 %v175, 56
    %v183 = vadd.s32 %v175, 64
    %v184 = vadd.s32 %v175, 72
    %v185 = vadd.s32 %v175, 80
    %v186 = vadd.s32 %v175, 88
    %v187 = vadd.s32 %v175, 96
    %v188 = vadd.s32 %v175, 104
    %v189 = vadd.s32 %v175, 112
    %v190 = vadd.s32 %v175, 120
    %vm191 = vcmp.eq.s32.totalorder %v173, 0
    %vm192 = vcmp.eq.s32.totalorder %v175, %v173
    %vm193 = vcmp.eq.s32.totalorder %v176, %v173
    %vm194 = vcmp.eq.s32.totalorder %v177, %v173
    %vm195 = vcmp.eq.s32.totalorder %v178, %v173
    %vm196 = vcmp.eq.s32.totalorder %v179, %v173
    %vm197 = vcmp.eq.s32.totalorder %v180, %v173
    %vm198 = vcmp.eq.s32.totalorder %v181, %v173
    %vm199 = vcmp.eq.s32.totalorder %v182, %v173
    %vm200 = vcmp.eq.s32.totalorder %v183, %v173
    %vm201 = vcmp.eq.s32.totalorder %v184, %v173
    %vm202 = vcmp.eq.s32.totalorder %v185, %v173
    %vm203 = vcmp.eq.s32.totalorder %v186, %v173
    %vm204 = vcmp.eq.s32.totalorder %v187, %v173
    %vm205 = vcmp.eq.s32.totalorder %v188, %v173
    %vm206 = vcmp.eq.s32.totalorder %v189, %v173
    %vm207 = vcmp.eq.s32.totalorder %v190, %v173
    %v208 = vld [vmem:[%s0] sm:$0xff]
    %v209 = vld [vmem:[%s0 + $0x8] sm:$0xff]
    %v210 = vld [vmem:[%s0 + $0x10] sm:$0xff]
    %v211 = vld [vmem:[%s0 + $0x18] sm:$0xff]
    %v212 = vmul.f32 %v208, %v208
    %v213 = vmul.f32 %v209, %v209
    %v214 = vmul.f32 %v210, %v210
    %v215 = vmul.f32 %v211, %v211
    %216 = vadd.xlane.f32.xlu0 %v212
    %v217 = vpop.xlane.xlu0 %216
    %218 = vadd.xlane.f32.xlu0 %v213
    %v219 = vpop.xlane.xlu0 %218
    %220 = vadd.xlane.f32.xlu0 %v214
    %v221 = vpop.xlane.xlu0 %220
    %222 = vadd.xlane.f32.xlu0 %v215
    %v223 = vpop.xlane.xlu0 %222
    %v224 = vmax.f32 %v217, 1e-08
    %v225 = vmax.f32 %v219, 1e-08
    %v226 = vmax.f32 %v221, 1e-08
    %v227 = vmax.f32 %v223, 1e-08
    %v228 = vrsqrt.pop %v224
    %v229 = vmul.f32 %v224, %v228
    %vm230 = vcmp.eq.f32.partialorder %v224, inf
    %v231 = vsel %vm230, %v224, %v229
    %vm232 = vcmp.eq.f32.partialorder %v224, 0.0
    %v233 = vand.u32 %v224, 2147483648
    %v234 = vsel %vm232, %v233, %v231
    %v235 = vrsqrt.pop %v225
    %v236 = vmul.f32 %v225, %v235
    %vm237 = vcmp.eq.f32.partialorder %v225, inf
    %v238 = vsel %vm237, %v225, %v236
    %vm239 = vcmp.eq.f32.partialorder %v225, 0.0
    %v240 = vand.u32 %v225, 2147483648
    %v241 = vsel %vm239, %v240, %v238
    %v242 = vrsqrt.pop %v226
    %v243 = vmul.f32 %v226, %v242
    %vm244 = vcmp.eq.f32.partialorder %v226, inf
    %v245 = vsel %vm244, %v226, %v243
    %vm246 = vcmp.eq.f32.partialorder %v226, 0.0
    %v247 = vand.u32 %v226, 2147483648
    %v248 = vsel %vm246, %v247, %v245
    %v249 = vrsqrt.pop %v227
    %v250 = vmul.f32 %v227, %v249
    %vm251 = vcmp.eq.f32.partialorder %v227, inf
    %v252 = vsel %vm251, %v227, %v250
    %vm253 = vcmp.eq.f32.partialorder %v227, 0.0
    %v254 = vand.u32 %v227, 2147483648
    %v255 = vsel %vm253, %v254, %v252
    %v256 = vmul.f32 %v234, 1.442695
    %v257 = vpow.pop %v256
    %v258 = vmul.f32 %v241, 1.442695
    %v259 = vpow.pop %v258
    %v260 = vmul.f32 %v248, 1.442695
    %v261 = vpow.pop %v260
    %v262 = vmul.f32 %v255, 1.442695
    %v263 = vpow.pop %v262
    %v264 = vrcp.pop %v257
    %v265 = vmul.f32 1.0, %v264
    %v266 = vrcp.pop %v259
    %v267 = vmul.f32 1.0, %v266
    %v268 = vrcp.pop %v261
    %v269 = vmul.f32 1.0, %v268
    %v270 = vrcp.pop %v263
    %v271 = vmul.f32 1.0, %v270
    %v272 = vadd.f32 %v257, %v265
    %v273 = vadd.f32 %v259, %v267
    %v274 = vadd.f32 %v261, %v269
    %v275 = vadd.f32 %v263, %v271
    %v276 = vmul.f32 %v272, 0.5
    %v277 = vmul.f32 %v273, 0.5
    %v278 = vmul.f32 %v274, 0.5
    %v279 = vmul.f32 %v275, 0.5
    %v280 = vsub.f32 %v257, %v265
    %v281 = vsub.f32 %v259, %v267
    %v282 = vsub.f32 %v261, %v269
    %v283 = vsub.f32 %v263, %v271
    %v284 = vmul.f32 %v280, 0.5
    %v285 = vmul.f32 %v281, 0.5
    %v286 = vmul.f32 %v282, 0.5
    %v287 = vmul.f32 %v283, 0.5
    %v288 = vrcp.pop %v234
    %v289 = vmul.f32 %v284, %v288
    %v290 = vrcp.pop %v241
    %v291 = vmul.f32 %v285, %v290
    %v292 = vrcp.pop %v248
    %v293 = vmul.f32 %v286, %v292
    %v294 = vrcp.pop %v255
    %v295 = vmul.f32 %v287, %v294
    %v296 = vmul.f32 %v208, %v289
    %v297 = vmul.f32 %v209, %v291
    %v298 = vmul.f32 %v210, %v293
    %v299 = vmul.f32 %v211, %v295
    %v300 = vsel %vm191, %v276, %v296
    %v301 = vsel %vm191, %v277, %v297
    %v302 = vsel %vm191, %v278, %v298
    %v303 = vsel %vm191, %v279, %v299
    %v304 = vld [vmem:[%s1] sm:$0xff]
    %v305 = vld [vmem:[%s1 + $0x8] sm:$0xff]
    %v306 = vld [vmem:[%s1 + $0x10] sm:$0xff]
    %v307 = vld [vmem:[%s1 + $0x18] sm:$0xff]
    %s308 = sld [smem:[#allocation2]]
    %v309 = vld [vmem:[%s2] sm:$0xff]
    %v310 = vld [vmem:[%s2 + $0x8] sm:$0xff]
    %v311 = vld [vmem:[%s2 + $0x10] sm:$0xff]
    %v312 = vld [vmem:[%s2 + $0x18] sm:$0xff]
    %v313 = vld [vmem:[%s2 + $0x20] sm:$0xff]
    %v314 = vld [vmem:[%s2 + $0x28] sm:$0xff]
    %v315 = vld [vmem:[%s2 + $0x30] sm:$0xff]
    %v316 = vld [vmem:[%s2 + $0x38] sm:$0xff]
    %v317 = vld [vmem:[%s2 + $0x40] sm:$0xff]
    %v318 = vld [vmem:[%s2 + $0x48] sm:$0xff]
    %v319 = vld [vmem:[%s2 + $0x50] sm:$0xff]
    %v320 = vld [vmem:[%s2 + $0x58] sm:$0xff]
    %v321 = vld [vmem:[%s2 + $0x60] sm:$0xff]
    %v322 = vld [vmem:[%s2 + $0x68] sm:$0xff]
    %v323 = vld [vmem:[%s2 + $0x70] sm:$0xff]
    %v324 = vld [vmem:[%s2 + $0x78] sm:$0xff]
    %v325 = vld [vmem:[%s3] sm:$0x1]
    %v327 = vlaneseq
    %v328 = vshrl.u32 %v327, 7
    %v329 = vsub.s32 0, %v328
    %v330 = vrot.slane %v325, %v329
    %332 = vmatprep.subr.mxu0 0.0
    %333 = vmatpush1.msra.mxu0 %v309
    %334 = vmatprep.subr.mxu0 0.0
    %335 = vmatpush1.msra.mxu0 %v310
    %336 = vmatprep.subr.mxu0 0.0
    %337 = vmatpush1.msra.mxu0 %v311
    %338 = vmatprep.subr.mxu0 0.0
    %339 = vmatpush1.msra.mxu0 %v312
    %340 = vmatprep.subr.mxu0 0.0
    %341 = vmatpush1.msra.mxu0 %v313
    %342 = vmatprep.subr.mxu0 0.0
    %343 = vmatpush1.msra.mxu0 %v314
    %344 = vmatprep.subr.mxu0 0.0
    %345 = vmatpush1.msra.mxu0 %v315
    %346 = vmatprep.subr.mxu0 0.0
    %347 = vmatpush1.msra.mxu0 %v316
    %348 = vmatprep.subr.mxu0 0.0
    %349 = vmatpush1.msra.mxu0 %v317
    %350 = vmatprep.subr.mxu0 0.0
    %351 = vmatpush1.msra.mxu0 %v318
    %352 = vmatprep.subr.mxu0 0.0
    %353 = vmatpush1.msra.mxu0 %v319
    %354 = vmatprep.subr.mxu0 0.0
    %355 = vmatpush1.msra.mxu0 %v320
    %356 = vmatprep.subr.mxu0 0.0
    %357 = vmatpush1.msra.mxu0 %v321
    %358 = vmatprep.subr.mxu0 0.0
    %359 = vmatpush1.msra.mxu0 %v322
    %360 = vmatprep.subr.mxu0 0.0
    %361 = vmatpush1.msra.mxu0 %v323
    %362 = vmatprep.subr.mxu0 0.0
    %363 = vmatpush1.msra.mxu0 %v324
    %364 = vmatprep.subr.mxu0 0.0
    %365 = vmatpush1.msra.mxu0 0.0
    %366 = vmatprep.subr.mxu0 0.0
    %367 = vmatpush1.msra.mxu0 0.0
    %368 = vmatprep.subr.mxu0 0.0
    %369 = vmatpush1.msra.mxu0 0.0
    %370 = vmatprep.subr.mxu0 0.0
    %371 = vmatpush1.msra.mxu0 0.0
    %372 = vmatprep.subr.mxu0 0.0
    %373 = vmatpush1.msra.mxu0 0.0
    %374 = vmatprep.subr.mxu0 0.0
    %375 = vmatpush1.msra.mxu0 0.0
    %376 = vmatprep.subr.mxu0 0.0
    %377 = vmatpush1.msra.mxu0 0.0
    %378 = vmatprep.subr.mxu0 0.0
    %379 = vmatpush1.msra.mxu0 0.0
    %380 = vmatprep.subr.mxu0 0.0
    %381 = vmatpush1.msra.mxu0 0.0
    %382 = vmatprep.subr.mxu0 0.0
    %383 = vmatpush1.msra.mxu0 0.0
    %384 = vmatprep.subr.mxu0 0.0
    %385 = vmatpush1.msra.mxu0 0.0
    %386 = vmatprep.subr.mxu0 0.0
    %387 = vmatpush1.msra.mxu0 0.0
    %388 = vmatprep.subr.mxu0 0.0
    %389 = vmatpush1.msra.mxu0 0.0
    %390 = vmatprep.subr.mxu0 0.0
    %391 = vmatpush1.msra.mxu0 0.0
    %392 = vmatprep.subr.mxu0 0.0
    %393 = vmatpush1.msra.mxu0 0.0
    %394 = vmatprep.subr.mxu0 0.0
    %395 = vmatpush1.msra.mxu0 0.0
    %396 = vmatprep.mubr.f32.mxu0 0.0
    %397 = vmatmul.mubr.f32.gmra.mrb[0].mxu0 %v300
    %v398 = vpop.f32.mrb[0].mxu0
    %v399 = vadd.f32 %v330, %v398
    %v400 = vpop.f32.mrb[0].mxu0
    %401 = vmatprep.mubr.f32.mxu0 0.0
    %402 = vmatmul.mubr.f32.gmra.mrb[0].mxu0 %v301
    %v403 = vpop.f32.mrb[0].mxu0
    %v404 = vadd.f32 %v330, %v403
    %v405 = vpop.f32.mrb[0].mxu0
    %406 = vmatprep.mubr.f32.mxu0 0.0
    %407 = vmatmul.mubr.f32.gmra.mrb[0].mxu0 %v302
    %v408 = vpop.f32.mrb[0].mxu0
    %v409 = vadd.f32 %v330, %v408
    %v410 = vpop.f32.mrb[0].mxu0
    %411 = vmatprep.mubr.f32.mxu0 0.0
    %412 = vmatmul.mubr.f32.gmra.mrb[0].mxu0 %v303
    %v413 = vpop.f32.mrb[0].mxu0
    %v414 = vadd.f32 %v330, %v413
    %v415 = vpop.f32.mrb[0].mxu0
    %416 = vdwg.mxu0
    %v417 = vxor.u32 %v399, 2147483648
    %v418 = vxor.u32 %v404, 2147483648
    %v419 = vxor.u32 %v409, 2147483648
    %v420 = vxor.u32 %v414, 2147483648
    %v421 = vmul.f32 %v417, 1.442695
    %v422 = vpow.pop %v421
    %v423 = vmul.f32 %v418, 1.442695
    %v424 = vpow.pop %v423
    %v425 = vmul.f32 %v419, 1.442695
    %v426 = vpow.pop %v425
    %v427 = vmul.f32 %v420, 1.442695
    %v428 = vpow.pop %v427
    %v429 = vadd.f32 %v422, 1.0
    %v430 = vadd.f32 %v424, 1.0
    %v431 = vadd.f32 %v426, 1.0
    %v432 = vadd.f32 %v428, 1.0
    %v433 = vrcp.pop %v429
    %v434 = vmul.f32 1.0, %v433
    %v435 = vrcp.pop %v430
    %v436 = vmul.f32 1.0, %v435
    %v437 = vrcp.pop %v431
    %v438 = vmul.f32 1.0, %v437
    %v439 = vrcp.pop %v432
    %v440 = vmul.f32 1.0, %v439
    %v441 = vmul.f32 %v434, 10.0
    %v442 = vmul.f32 %v436, 10.0
    %v443 = vmul.f32 %v438, 10.0
    %v444 = vmul.f32 %v440, 10.0
    %v445 = vadd.f32 %v441, 1.1
    %v446 = vadd.f32 %v442, 1.1
    %v447 = vadd.f32 %v443, 1.1
    %v448 = vadd.f32 %v444, 1.1
    %v449 = vmul.f32 %v399, %v399
    %v450 = vmul.f32 %v404, %v404
    %v451 = vmul.f32 %v409, %v409
    %v452 = vmul.f32 %v414, %v414
    %453 = vadd.xlane.f32.xlu0 %v449
    %v454 = vpop.xlane.xlu0 %453
    %455 = vadd.xlane.f32.xlu0 %v450
    %v456 = vpop.xlane.xlu0 %455
    %457 = vadd.xlane.f32.xlu0 %v451
    %v458 = vpop.xlane.xlu0 %457
    %459 = vadd.xlane.f32.xlu0 %v452
    %v460 = vpop.xlane.xlu0 %459
    %v461 = vsub.f32 %v454, %v449
    %v462 = vsub.f32 %v456, %v450
    %v463 = vsub.f32 %v458, %v451
    %v464 = vsub.f32 %v460, %v452
    %v465 = vmax.f32 %v461, 1e-08
    %v466 = vmax.f32 %v462, 1e-08
    %v467 = vmax.f32 %v463, 1e-08
    %v468 = vmax.f32 %v464, 1e-08
    %v469 = vmul.f32 %v445, %v445
    %v470 = vmul.f32 %v446, %v446
    %v471 = vmul.f32 %v447, %v447
    %v472 = vmul.f32 %v448, %v448
    %v473 = vsub.f32 %v469, 1.0
    %v474 = vsub.f32 %v470, 1.0
    %v475 = vsub.f32 %v471, 1.0
    %v476 = vsub.f32 %v472, 1.0
    %v477 = vrsqrt.pop %v473
    %v478 = vmul.f32 %v473, %v477
    %vm479 = vcmp.eq.f32.partialorder %v473, inf
    %v480 = vsel %vm479, %v473, %v478
    %vm481 = vcmp.eq.f32.partialorder %v473, 0.0
    %v482 = vand.u32 %v473, 2147483648
    %v483 = vsel %vm481, %v482, %v480
    %v484 = vrsqrt.pop %v474
    %v485 = vmul.f32 %v474, %v484
    %vm486 = vcmp.eq.f32.partialorder %v474, inf
    %v487 = vsel %vm486, %v474, %v485
    %vm488 = vcmp.eq.f32.partialorder %v474, 0.0
    %v489 = vand.u32 %v474, 2147483648
    %v490 = vsel %vm488, %v489, %v487
    %v491 = vrsqrt.pop %v475
    %v492 = vmul.f32 %v475, %v491
    %vm493 = vcmp.eq.f32.partialorder %v475, inf
    %v494 = vsel %vm493, %v475, %v492
    %vm495 = vcmp.eq.f32.partialorder %v475, 0.0
    %v496 = vand.u32 %v475, 2147483648
    %v497 = vsel %vm495, %v496, %v494
    %v498 = vrsqrt.pop %v476
    %v499 = vmul.f32 %v476, %v498
    %vm500 = vcmp.eq.f32.partialorder %v476, inf
    %v501 = vsel %vm500, %v476, %v499
    %vm502 = vcmp.eq.f32.partialorder %v476, 0.0
    %v503 = vand.u32 %v476, 2147483648
    %v504 = vsel %vm502, %v503, %v501
    %v505 = vrsqrt.pop %v465
    %v506 = vrsqrt.pop %v466
    %v507 = vrsqrt.pop %v467
    %v508 = vrsqrt.pop %v468
    %v509 = vmul.f32 %v483, %v505
    %v510 = vmul.f32 %v490, %v506
    %v511 = vmul.f32 %v497, %v507
    %v512 = vmul.f32 %v504, %v508
    %514 = vset.pattern.permute.xlu0 0
    %515 = vperm.xlu0 %514, %v509
    %v516 = vpop.permute.xlu0 %515
    %519 = vset.pattern.permute.xlu0 0
    %520 = vperm.xlu0 %519, %v510
    %v521 = vpop.permute.xlu0 %520
    %524 = vset.pattern.permute.xlu0 0
    %525 = vperm.xlu0 %524, %v511
    %v526 = vpop.permute.xlu0 %525
    %529 = vset.pattern.permute.xlu0 0
    %530 = vperm.xlu0 %529, %v512
    %v531 = vpop.permute.xlu0 %530
    %v533 = vmul.f32 %v399, %v516
    %v534 = vmul.f32 %v404, %v521
    %v535 = vmul.f32 %v409, %v526
    %v536 = vmul.f32 %v414, %v531
    %538 = vset.pattern.permute.xlu0 0
    %539 = vperm.xlu0 %538, %v445
    %v540 = vpop.permute.xlu0 %539
    %543 = vset.pattern.permute.xlu0 0
    %544 = vperm.xlu0 %543, %v446
    %v545 = vpop.permute.xlu0 %544
    %548 = vset.pattern.permute.xlu0 0
    %549 = vperm.xlu0 %548, %v447
    %v550 = vpop.permute.xlu0 %549
    %553 = vset.pattern.permute.xlu0 0
    %554 = vperm.xlu0 %553, %v448
    %v555 = vpop.permute.xlu0 %554
    %v557 = vsel %vm191, %v540, %v533
    %v558 = vsel %vm191, %v545, %v534
    %v559 = vsel %vm191, %v550, %v535
    %v560 = vsel %vm191, %v555, %v536
    %vm561 = vcmask 261120
    %v563 = vsel %vm561, %v304, 0
    %v566 = vsel %vm561, %v305, 0
    %v569 = vsel %vm561, %v306, 0
    %v572 = vsel %vm561, %v307, 0
    %574 = vmatprep.subr.mxu0 0.0
    %575 = vmatpush1.msra.mxu0 %v557
    %576 = vmatprep.subr.mxu0 0.0
    %577 = vmatpush1.msra.mxu0 %v558
    %578 = vmatprep.subr.mxu0 0.0
    %579 = vmatpush1.msra.mxu0 %v559
    %580 = vmatprep.subr.mxu0 0.0
    %581 = vmatpush1.msra.mxu0 %v560
    %582 = vmatprep.subr.mxu0 0.0
    %583 = vmatpush1.msra.mxu0 0.0
    %584 = vmatprep.subr.mxu0 0.0
    %585 = vmatpush1.msra.mxu0 0.0
    %586 = vmatprep.subr.mxu0 0.0
    %587 = vmatpush1.msra.mxu0 0.0
    %588 = vmatprep.subr.mxu0 0.0
    %589 = vmatpush1.msra.mxu0 0.0
    %590 = vmatprep.subr.mxu0 0.0
    %591 = vmatpush1.msra.mxu0 0.0
    %592 = vmatprep.subr.mxu0 0.0
    %593 = vmatpush1.msra.mxu0 0.0
    %594 = vmatprep.subr.mxu0 0.0
    %595 = vmatpush1.msra.mxu0 0.0
    %596 = vmatprep.subr.mxu0 0.0
    %597 = vmatpush1.msra.mxu0 0.0
    %598 = vmatprep.subr.mxu0 0.0
    %599 = vmatpush1.msra.mxu0 0.0
    %600 = vmatprep.subr.mxu0 0.0
    %601 = vmatpush1.msra.mxu0 0.0
    %602 = vmatprep.subr.mxu0 0.0
    %603 = vmatpush1.msra.mxu0 0.0
    %604 = vmatprep.subr.mxu0 0.0
    %605 = vmatpush1.msra.mxu0 0.0
    %606 = vmatprep.subr.mxu0 0.0
    %607 = vmatpush1.msra.mxu0 0.0
    %608 = vmatprep.subr.mxu0 0.0
    %609 = vmatpush1.msra.mxu0 0.0
    %610 = vmatprep.subr.mxu0 0.0
    %611 = vmatpush1.msra.mxu0 0.0
    %612 = vmatprep.subr.mxu0 0.0
    %613 = vmatpush1.msra.mxu0 0.0
    %614 = vmatprep.subr.mxu0 0.0
    %615 = vmatpush1.msra.mxu0 0.0
    %616 = vmatprep.subr.mxu0 0.0
    %617 = vmatpush1.msra.mxu0 0.0
    %618 = vmatprep.subr.mxu0 0.0
    %619 = vmatpush1.msra.mxu0 0.0
    %620 = vmatprep.subr.mxu0 0.0
    %621 = vmatpush1.msra.mxu0 0.0
    %622 = vmatprep.subr.mxu0 0.0
    %623 = vmatpush1.msra.mxu0 0.0
    %624 = vmatprep.subr.mxu0 0.0
    %625 = vmatpush1.msra.mxu0 0.0
    %626 = vmatprep.subr.mxu0 0.0
    %627 = vmatpush1.msra.mxu0 0.0
    %628 = vmatprep.subr.mxu0 0.0
    %629 = vmatpush1.msra.mxu0 0.0
    %630 = vmatprep.subr.mxu0 0.0
    %631 = vmatpush1.msra.mxu0 0.0
    %632 = vmatprep.subr.mxu0 0.0
    %633 = vmatpush1.msra.mxu0 0.0
    %634 = vmatprep.subr.mxu0 0.0
    %635 = vmatpush1.msra.mxu0 0.0
    %636 = vmatprep.subr.mxu0 0.0
    %637 = vmatpush1.msra.mxu0 0.0
    %638 = vmatprep.mubr.f32.mxu0 0.0
    %639 = vmatmul.mubr.f32.gmra.mrb[0].mxu0 %v563
    %v640 = vpop.f32.mrb[0].mxu0
    %v641 = vadd.f32 0.0, %v640
    %v642 = vpop.f32.mrb[0].mxu0
    %643 = vmatprep.mubr.f32.mxu0 0.0
    %644 = vmatmul.mubr.f32.gmra.mrb[0].mxu0 %v566
    %v645 = vpop.f32.mrb[0].mxu0
    %v646 = vadd.f32 0.0, %v645
    %v647 = vpop.f32.mrb[0].mxu0
    %648 = vmatprep.mubr.f32.mxu0 0.0
    %649 = vmatmul.mubr.f32.gmra.mrb[0].mxu0 %v569
    %v650 = vpop.f32.mrb[0].mxu0
    %v651 = vadd.f32 0.0, %v650
    %v652 = vpop.f32.mrb[0].mxu0
    %653 = vmatprep.mubr.f32.mxu0 0.0
    %654 = vmatmul.mubr.f32.gmra.mrb[0].mxu0 %v572
    %v655 = vpop.f32.mrb[0].mxu0
    %v656 = vadd.f32 0.0, %v655
    %v657 = vpop.f32.mrb[0].mxu0
    %658 = vdwg.mxu0
    %v659 = vmul.f32 %v641, %v641
    %v660 = vmul.f32 %v646, %v646
    %v661 = vmul.f32 %v651, %v651
    %v662 = vmul.f32 %v656, %v656
    %663 = vadd.xlane.f32.xlu0 %v659
    %v664 = vpop.xlane.xlu0 %663
    %665 = vadd.xlane.f32.xlu0 %v660
    %v666 = vpop.xlane.xlu0 %665
    %667 = vadd.xlane.f32.xlu0 %v661
    %v668 = vpop.xlane.xlu0 %667
    %669 = vadd.xlane.f32.xlu0 %v662
    %v670 = vpop.xlane.xlu0 %669
    %v671 = vmul.f32 %v641, 2.0
    %v672 = vmul.f32 %v646, 2.0
    %v673 = vmul.f32 %v651, 2.0
    %v674 = vmul.f32 %v656, 2.0
    %v675 = vmul.f32 %v671, %v641
    %v676 = vmul.f32 %v672, %v646
    %v677 = vmul.f32 %v673, %v651
    %v678 = vmul.f32 %v674, %v656
    %v679 = vsub.f32 %v664, %v675
    %v680 = vsub.f32 %v666, %v676
    %v681 = vsub.f32 %v668, %v677
    %v682 = vsub.f32 %v670, %v678
    %v683 = vand.u32 2147483647, %v679
    %v684 = vand.u32 2147483647, %v680
    %v685 = vand.u32 2147483647, %v681
    %v686 = vand.u32 2147483647, %v682
    %v687 = vmax.f32 %v683, 1e-08
    %v688 = vmax.f32 %v684, 1e-08
    %v689 = vmax.f32 %v685, 1e-08
    %v690 = vmax.f32 %v686, 1e-08
    %v691 = vrsqrt.pop %v687
    %v692 = vrsqrt.pop %v688
    %v693 = vrsqrt.pop %v689
    %v694 = vrsqrt.pop %v690
    %696 = vset.pattern.permute.xlu0 0
    %697 = vperm.xlu0 %696, %v691
    %v698 = vpop.permute.xlu0 %697
    %701 = vset.pattern.permute.xlu0 0
    %702 = vperm.xlu0 %701, %v692
    %v703 = vpop.permute.xlu0 %702
    %706 = vset.pattern.permute.xlu0 0
    %707 = vperm.xlu0 %706, %v693
    %v708 = vpop.permute.xlu0 %707
    %711 = vset.pattern.permute.xlu0 0
    %712 = vperm.xlu0 %711, %v694
    %v713 = vpop.permute.xlu0 %712
    %v715 = vmul.f32 %v641, %v698
    %v716 = vmul.f32 %v646, %v703
    %v717 = vmul.f32 %v651, %v708
    %v718 = vmul.f32 %v656, %v713
    %v719 = vld [vmem:[#allocation3] sm:$0xff]
    %v720 = vld [vmem:[#allocation3 + $0x8] sm:$0xff]
    %v721 = vld [vmem:[#allocation3 + $0x10] sm:$0xff]
    %v722 = vld [vmem:[#allocation3 + $0x18] sm:$0xff]
    %v723 = vld [vmem:[#allocation3 + $0x20] sm:$0xff]
    %v724 = vld [vmem:[#allocation3 + $0x28] sm:$0xff]
    %v725 = vld [vmem:[#allocation3 + $0x30] sm:$0xff]
    %v726 = vld [vmem:[#allocation3 + $0x38] sm:$0xff]
    %v727 = vld [vmem:[#allocation3 + $0x40] sm:$0xff]
    %v728 = vld [vmem:[#allocation3 + $0x48] sm:$0xff]
    %v729 = vld [vmem:[#allocation3 + $0x50] sm:$0xff]
    %v730 = vld [vmem:[#allocation3 + $0x58] sm:$0xff]
    %v731 = vld [vmem:[#allocation3 + $0x60] sm:$0xff]
    %v732 = vld [vmem:[#allocation3 + $0x68] sm:$0xff]
    %v733 = vld [vmem:[#allocation3 + $0x70] sm:$0xff]
    %v734 = vld [vmem:[#allocation3 + $0x78] sm:$0xff]
    %v735 = vld [vmem:[%s5] sm:$0x1]
    %v736 = vmax.f32 %v715, 0.0
    %v737 = vmax.f32 %v716, 0.0
    %v738 = vmax.f32 %v717, 0.0
    %v739 = vmax.f32 %v718, 0.0
    %v741 = vlaneseq
    %v742 = vshrl.u32 %v741, 7
    %v743 = vsub.s32 0, %v742
    %v744 = vrot.slane %v735, %v743
    %746 = vmatprep.subr.mxu0 0.0
    %747 = vmatpush1.msra.mxu0 %v719
    %748 = vmatprep.subr.mxu0 0.0
    %749 = vmatpush1.msra.mxu0 %v720
    %750 = vmatprep.subr.mxu0 0.0
    %751 = vmatpush1.msra.mxu0 %v721
    %752 = vmatprep.subr.mxu0 0.0
    %753 = vmatpush1.msra.mxu0 %v722
    %754 = vmatprep.subr.mxu0 0.0
    %755 = vmatpush1.msra.mxu0 %v723
    %756 = vmatprep.subr.mxu0 0.0
    %757 = vmatpush1.msra.mxu0 %v724
    %758 = vmatprep.subr.mxu0 0.0
    %759 = vmatpush1.msra.mxu0 %v725
    %760 = vmatprep.subr.mxu0 0.0
    %761 = vmatpush1.msra.mxu0 %v726
    %762 = vmatprep.subr.mxu0 0.0
    %763 = vmatpush1.msra.mxu0 %v727
    %764 = vmatprep.subr.mxu0 0.0
    %765 = vmatpush1.msra.mxu0 %v728
    %766 = vmatprep.subr.mxu0 0.0
    %767 = vmatpush1.msra.mxu0 %v729
    %768 = vmatprep.subr.mxu0 0.0
    %769 = vmatpush1.msra.mxu0 %v730
    %770 = vmatprep.subr.mxu0 0.0
    %771 = vmatpush1.msra.mxu0 %v731
    %772 = vmatprep.subr.mxu0 0.0
    %773 = vmatpush1.msra.mxu0 %v732
    %774 = vmatprep.subr.mxu0 0.0
    %775 = vmatpush1.msra.mxu0 %v733
    %776 = vmatprep.subr.mxu0 0.0
    %777 = vmatpush1.msra.mxu0 %v734
    %778 = vmatprep.subr.mxu0 0.0
    %779 = vmatpush1.msra.mxu0 0.0
    %780 = vmatprep.subr.mxu0 0.0
    %781 = vmatpush1.msra.mxu0 0.0
    %782 = vmatprep.subr.mxu0 0.0
    %783 = vmatpush1.msra.mxu0 0.0
    %784 = vmatprep.subr.mxu0 0.0
    %785 = vmatpush1.msra.mxu0 0.0
    %786 = vmatprep.subr.mxu0 0.0
    %787 = vmatpush1.msra.mxu0 0.0
    %788 = vmatprep.subr.mxu0 0.0
    %789 = vmatpush1.msra.mxu0 0.0
    %790 = vmatprep.subr.mxu0 0.0
    %791 = vmatpush1.msra.mxu0 0.0
    %792 = vmatprep.subr.mxu0 0.0
    %793 = vmatpush1.msra.mxu0 0.0
    %794 = vmatprep.subr.mxu0 0.0
    %795 = vmatpush1.msra.mxu0 0.0
    %796 = vmatprep.subr.mxu0 0.0
    %797 = vmatpush1.msra.mxu0 0.0
    %798 = vmatprep.subr.mxu0 0.0
    %799 = vmatpush1.msra.mxu0 0.0
    %800 = vmatprep.subr.mxu0 0.0
    %801 = vmatpush1.msra.mxu0 0.0
    %802 = vmatprep.subr.mxu0 0.0
    %803 = vmatpush1.msra.mxu0 0.0
    %804 = vmatprep.subr.mxu0 0.0
    %805 = vmatpush1.msra.mxu0 0.0
    %806 = vmatprep.subr.mxu0 0.0
    %807 = vmatpush1.msra.mxu0 0.0
    %808 = vmatprep.subr.mxu0 0.0
    %809 = vmatpush1.msra.mxu0 0.0
    %810 = vmatprep.mubr.f32.mxu0 0.0
    %811 = vmatmul.mubr.f32.gmra.mrb[0].mxu0 %v736
    %v812 = vpop.f32.mrb[0].mxu0
    %v813 = vadd.f32 %v744, %v812
    %v814 = vpop.f32.mrb[0].mxu0
    %815 = vmatprep.mubr.f32.mxu0 0.0
    %816 = vmatmul.mubr.f32.gmra.mrb[0].mxu0 %v737
    %v817 = vpop.f32.mrb[0].mxu0
    %v818 = vadd.f32 %v744, %v817
    %v819 = vpop.f32.mrb[0].mxu0
    %820 = vmatprep.mubr.f32.mxu0 0.0
    %821 = vmatmul.mubr.f32.gmra.mrb[0].mxu0 %v738
    %v822 = vpop.f32.mrb[0].mxu0
    %v823 = vadd.f32 %v744, %v822
    %v824 = vpop.f32.mrb[0].mxu0
    %825 = vmatprep.mubr.f32.mxu0 0.0
    %826 = vmatmul.mubr.f32.gmra.mrb[0].mxu0 %v739
    %v827 = vpop.f32.mrb[0].mxu0
    %v828 = vadd.f32 %v744, %v827
    %v829 = vpop.f32.mrb[0].mxu0
    %830 = vdwg.mxu0
    %v831 = vxor.u32 %v813, 2147483648
    %v832 = vxor.u32 %v818, 2147483648
    %v833 = vxor.u32 %v823, 2147483648
    %v834 = vxor.u32 %v828, 2147483648
    %v835 = vmul.f32 %v831, 1.442695
    %v836 = vpow.pop %v835
    %v837 = vmul.f32 %v832, 1.442695
    %v838 = vpow.pop %v837
    %v839 = vmul.f32 %v833, 1.442695
    %v840 = vpow.pop %v839
    %v841 = vmul.f32 %v834, 1.442695
    %v842 = vpow.pop %v841
    %v843 = vadd.f32 %v836, 1.0
    %v844 = vadd.f32 %v838, 1.0
    %v845 = vadd.f32 %v840, 1.0
    %v846 = vadd.f32 %v842, 1.0
    %v847 = vrcp.pop %v843
    %v848 = vmul.f32 1.0, %v847
    %v849 = vrcp.pop %v844
    %v850 = vmul.f32 1.0, %v849
    %v851 = vrcp.pop %v845
    %v852 = vmul.f32 1.0, %v851
    %v853 = vrcp.pop %v846
    %v854 = vmul.f32 1.0, %v853
    %v855 = vmul.f32 %v848, 10.0
    %v856 = vmul.f32 %v850, 10.0
    %v857 = vmul.f32 %v852, 10.0
    %v858 = vmul.f32 %v854, 10.0
    %v859 = vadd.f32 %v855, 1.1
    %v860 = vadd.f32 %v856, 1.1
    %v861 = vadd.f32 %v857, 1.1
    %v862 = vadd.f32 %v858, 1.1
    %v863 = vmul.f32 %v813, %v813
    %v864 = vmul.f32 %v818, %v818
    %v865 = vmul.f32 %v823, %v823
    %v866 = vmul.f32 %v828, %v828
    %867 = vadd.xlane.f32.xlu0 %v863
    %v868 = vpop.xlane.xlu0 %867
    %869 = vadd.xlane.f32.xlu0 %v864
    %v870 = vpop.xlane.xlu0 %869
    %871 = vadd.xlane.f32.xlu0 %v865
    %v872 = vpop.xlane.xlu0 %871
    %873 = vadd.xlane.f32.xlu0 %v866
    %v874 = vpop.xlane.xlu0 %873
    %v875 = vsub.f32 %v868, %v863
    %v876 = vsub.f32 %v870, %v864
    %v877 = vsub.f32 %v872, %v865
    %v878 = vsub.f32 %v874, %v866
    %v879 = vmax.f32 %v875, 1e-08
    %v880 = vmax.f32 %v876, 1e-08
    %v881 = vmax.f32 %v877, 1e-08
    %v882 = vmax.f32 %v878, 1e-08
    %v883 = vmul.f32 %v859, %v859
    %v884 = vmul.f32 %v860, %v860
    %v885 = vmul.f32 %v861, %v861
    %v886 = vmul.f32 %v862, %v862
    %v887 = vsub.f32 %v883, 1.0
    %v888 = vsub.f32 %v884, 1.0
    %v889 = vsub.f32 %v885, 1.0
    %v890 = vsub.f32 %v886, 1.0
    %v891 = vrsqrt.pop %v887
    %v892 = vmul.f32 %v887, %v891
    %vm893 = vcmp.eq.f32.partialorder %v887, inf
    %v894 = vsel %vm893, %v887, %v892
    %vm895 = vcmp.eq.f32.partialorder %v887, 0.0
    %v896 = vand.u32 %v887, 2147483648
    %v897 = vsel %vm895, %v896, %v894
    %v898 = vrsqrt.pop %v888
    %v899 = vmul.f32 %v888, %v898
    %vm900 = vcmp.eq.f32.partialorder %v888, inf
    %v901 = vsel %vm900, %v888, %v899
    %vm902 = vcmp.eq.f32.partialorder %v888, 0.0
    %v903 = vand.u32 %v888, 2147483648
    %v904 = vsel %vm902, %v903, %v901
    %v905 = vrsqrt.pop %v889
    %v906 = vmul.f32 %v889, %v905
    %vm907 = vcmp.eq.f32.partialorder %v889, inf
    %v908 = vsel %vm907, %v889, %v906
    %vm909 = vcmp.eq.f32.partialorder %v889, 0.0
    %v910 = vand.u32 %v889, 2147483648
    %v911 = vsel %vm909, %v910, %v908
    %v912 = vrsqrt.pop %v890
    %v913 = vmul.f32 %v890, %v912
    %vm914 = vcmp.eq.f32.partialorder %v890, inf
    %v915 = vsel %vm914, %v890, %v913
    %vm916 = vcmp.eq.f32.partialorder %v890, 0.0
    %v917 = vand.u32 %v890, 2147483648
    %v918 = vsel %vm916, %v917, %v915
    %v919 = vrsqrt.pop %v879
    %v920 = vrsqrt.pop %v880
    %v921 = vrsqrt.pop %v881
    %v922 = vrsqrt.pop %v882
    %v923 = vmul.f32 %v897, %v919
    %v924 = vmul.f32 %v904, %v920
    %v925 = vmul.f32 %v911, %v921
    %v926 = vmul.f32 %v918, %v922
    %928 = vset.pattern.permute.xlu0 0
    %929 = vperm.xlu0 %928, %v923
    %v930 = vpop.permute.xlu0 %929
    %933 = vset.pattern.permute.xlu0 0
    %934 = vperm.xlu0 %933, %v924
    %v935 = vpop.permute.xlu0 %934
    %938 = vset.pattern.permute.xlu0 0
    %939 = vperm.xlu0 %938, %v925
    %v940 = vpop.permute.xlu0 %939
    %943 = vset.pattern.permute.xlu0 0
    %944 = vperm.xlu0 %943, %v926
    %v945 = vpop.permute.xlu0 %944
    %v947 = vmul.f32 %v813, %v930
    %v948 = vmul.f32 %v818, %v935
    %v949 = vmul.f32 %v823, %v940
    %v950 = vmul.f32 %v828, %v945
    %952 = vset.pattern.permute.xlu0 0
    %953 = vperm.xlu0 %952, %v859
    %v954 = vpop.permute.xlu0 %953
    %957 = vset.pattern.permute.xlu0 0
    %958 = vperm.xlu0 %957, %v860
    %v959 = vpop.permute.xlu0 %958
    %962 = vset.pattern.permute.xlu0 0
    %963 = vperm.xlu0 %962, %v861
    %v964 = vpop.permute.xlu0 %963
    %967 = vset.pattern.permute.xlu0 0
    %968 = vperm.xlu0 %967, %v862
    %v969 = vpop.permute.xlu0 %968
    %v971 = vsel %vm191, %v954, %v947
    %v972 = vsel %vm191, %v959, %v948
    %v973 = vsel %vm191, %v964, %v949
    %v974 = vsel %vm191, %v969, %v950
    %975 = vmatprep.subr.mxu0 0.0
    %976 = vmatpush1.msra.mxu0 %v971
    %977 = vmatprep.subr.mxu0 0.0
    %978 = vmatpush1.msra.mxu0 %v972
    %979 = vmatprep.subr.mxu0 0.0
    %980 = vmatpush1.msra.mxu0 %v973
    %981 = vmatprep.subr.mxu0 0.0
    %982 = vmatpush1.msra.mxu0 %v974
    %983 = vmatprep.subr.mxu0 0.0
    %984 = vmatpush1.msra.mxu0 0.0
    %985 = vmatprep.subr.mxu0 0.0
    %986 = vmatpush1.msra.mxu0 0.0
    %987 = vmatprep.subr.mxu0 0.0
    %988 = vmatpush1.msra.mxu0 0.0
    %989 = vmatprep.subr.mxu0 0.0
    %990 = vmatpush1.msra.mxu0 0.0
    %991 = vmatprep.subr.mxu0 0.0
    %992 = vmatpush1.msra.mxu0 0.0
    %993 = vmatprep.subr.mxu0 0.0
    %994 = vmatpush1.msra.mxu0 0.0
    %995 = vmatprep.subr.mxu0 0.0
    %996 = vmatpush1.msra.mxu0 0.0
    %997 = vmatprep.subr.mxu0 0.0
    %998 = vmatpush1.msra.mxu0 0.0
    %999 = vmatprep.subr.mxu0 0.0
    %1000 = vmatpush1.msra.mxu0 0.0
    %1001 = vmatprep.subr.mxu0 0.0
    %1002 = vmatpush1.msra.mxu0 0.0
    %1003 = vmatprep.subr.mxu0 0.0
    %1004 = vmatpush1.msra.mxu0 0.0
    %1005 = vmatprep.subr.mxu0 0.0
    %1006 = vmatpush1.msra.mxu0 0.0
    %1007 = vmatprep.subr.mxu0 0.0
    %1008 = vmatpush1.msra.mxu0 0.0
    %1009 = vmatprep.subr.mxu0 0.0
    %1010 = vmatpush1.msra.mxu0 0.0
    %1011 = vmatprep.subr.mxu0 0.0
    %1012 = vmatpush1.msra.mxu0 0.0
    %1013 = vmatprep.subr.mxu0 0.0
    %1014 = vmatpush1.msra.mxu0 0.0
    %1015 = vmatprep.subr.mxu0 0.0
    %1016 = vmatpush1.msra.mxu0 0.0
    %1017 = vmatprep.subr.mxu0 0.0
    %1018 = vmatpush1.msra.mxu0 0.0
    %1019 = vmatprep.subr.mxu0 0.0
    %1020 = vmatpush1.msra.mxu0 0.0
    %1021 = vmatprep.subr.mxu0 0.0
    %1022 = vmatpush1.msra.mxu0 0.0
    %1023 = vmatprep.subr.mxu0 0.0
    %1024 = vmatpush1.msra.mxu0 0.0
    %1025 = vmatprep.subr.mxu0 0.0
    %1026 = vmatpush1.msra.mxu0 0.0
    %1027 = vmatprep.subr.mxu0 0.0
    %1028 = vmatpush1.msra.mxu0 0.0
    %1029 = vmatprep.subr.mxu0 0.0
    %1030 = vmatpush1.msra.mxu0 0.0
    %1031 = vmatprep.subr.mxu0 0.0
    %1032 = vmatpush1.msra.mxu0 0.0
    %1033 = vmatprep.subr.mxu0 0.0
    %1034 = vmatpush1.msra.mxu0 0.0
    %1035 = vmatprep.subr.mxu0 0.0
    %1036 = vmatpush1.msra.mxu0 0.0
    %1037 = vmatprep.subr.mxu0 0.0
    %1038 = vmatpush1.msra.mxu0 0.0
    %1039 = vmatprep.mubr.f32.mxu0 0.0
    %1040 = vmatmul.mubr.f32.gmra.mrb[0].mxu0 %v563
    %v1041 = vpop.f32.mrb[0].mxu0
    %v1042 = vadd.f32 0.0, %v1041
    %v1043 = vpop.f32.mrb[0].mxu0
    %1044 = vmatprep.mubr.f32.mxu0 0.0
    %1045 = vmatmul.mubr.f32.gmra.mrb[0].mxu0 %v566
    %v1046 = vpop.f32.mrb[0].mxu0
    %v1047 = vadd.f32 0.0, %v1046
    %v1048 = vpop.f32.mrb[0].mxu0
    %1049 = vmatprep.mubr.f32.mxu0 0.0
    %1050 = vmatmul.mubr.f32.gmra.mrb[0].mxu0 %v569
    %v1051 = vpop.f32.mrb[0].mxu0
    %v1052 = vadd.f32 0.0, %v1051
    %v1053 = vpop.f32.mrb[0].mxu0
    %1054 = vmatprep.mubr.f32.mxu0 0.0
    %1055 = vmatmul.mubr.f32.gmra.mrb[0].mxu0 %v572
    %v1056 = vpop.f32.mrb[0].mxu0
    %v1057 = vadd.f32 0.0, %v1056
    %v1058 = vpop.f32.mrb[0].mxu0
    %1059 = vdwg.mxu0
    %v1060 = vmul.f32 %v1042, %v1042
    %v1061 = vmul.f32 %v1047, %v1047
    %v1062 = vmul.f32 %v1052, %v1052
    %v1063 = vmul.f32 %v1057, %v1057
    %1064 = vadd.xlane.f32.xlu0 %v1060
    %v1065 = vpop.xlane.xlu0 %1064
    %1066 = vadd.xlane.f32.xlu0 %v1061
    %v1067 = vpop.xlane.xlu0 %1066
    %1068 = vadd.xlane.f32.xlu0 %v1062
    %v1069 = vpop.xlane.xlu0 %1068
    %1070 = vadd.xlane.f32.xlu0 %v1063
    %v1071 = vpop.xlane.xlu0 %1070
    %v1072 = vmul.f32 %v1042, 2.0
    %v1073 = vmul.f32 %v1047, 2.0
    %v1074 = vmul.f32 %v1052, 2.0
    %v1075 = vmul.f32 %v1057, 2.0
    %v1076 = vmul.f32 %v1072, %v1042
    %v1077 = vmul.f32 %v1073, %v1047
    %v1078 = vmul.f32 %v1074, %v1052
    %v1079 = vmul.f32 %v1075, %v1057
    %v1080 = vsub.f32 %v1065, %v1076
    %v1081 = vsub.f32 %v1067, %v1077
    %v1082 = vsub.f32 %v1069, %v1078
    %v1083 = vsub.f32 %v1071, %v1079
    %v1084 = vand.u32 2147483647, %v1080
    %v1085 = vand.u32 2147483647, %v1081
    %v1086 = vand.u32 2147483647, %v1082
    %v1087 = vand.u32 2147483647, %v1083
    %v1088 = vmax.f32 %v1084, 1e-08
    %v1089 = vmax.f32 %v1085, 1e-08
    %v1090 = vmax.f32 %v1086, 1e-08
    %v1091 = vmax.f32 %v1087, 1e-08
    %v1092 = vrsqrt.pop %v1088
    %v1093 = vrsqrt.pop %v1089
    %v1094 = vrsqrt.pop %v1090
    %v1095 = vrsqrt.pop %v1091
    %1097 = vset.pattern.permute.xlu0 0
    %1098 = vperm.xlu0 %1097, %v1092
    %v1099 = vpop.permute.xlu0 %1098
    %1102 = vset.pattern.permute.xlu0 0
    %1103 = vperm.xlu0 %1102, %v1093
    %v1104 = vpop.permute.xlu0 %1103
    %1107 = vset.pattern.permute.xlu0 0
    %1108 = vperm.xlu0 %1107, %v1094
    %v1109 = vpop.permute.xlu0 %1108
    %1112 = vset.pattern.permute.xlu0 0
    %1113 = vperm.xlu0 %1112, %v1095
    %v1114 = vpop.permute.xlu0 %1113
    %v1116 = vmul.f32 %v1042, %v1099
    %v1117 = vmul.f32 %v1047, %v1104
    %v1118 = vmul.f32 %v1052, %v1109
    %v1119 = vmul.f32 %v1057, %v1114
    %v1120 = vmul.f32 %v1116, %v1116
    %v1121 = vmul.f32 %v1117, %v1117
    %v1122 = vmul.f32 %v1118, %v1118
    %v1123 = vmul.f32 %v1119, %v1119
    %1124 = vadd.xlane.f32.xlu0 %v1120
    %v1125 = vpop.xlane.xlu0 %1124
    %1126 = vadd.xlane.f32.xlu0 %v1121
    %v1127 = vpop.xlane.xlu0 %1126
    %1128 = vadd.xlane.f32.xlu0 %v1122
    %v1129 = vpop.xlane.xlu0 %1128
    %1130 = vadd.xlane.f32.xlu0 %v1123
    %v1131 = vpop.xlane.xlu0 %1130
    %v1132 = vsub.f32 %v1125, %v1120
    %v1133 = vsub.f32 %v1127, %v1121
    %v1134 = vsub.f32 %v1129, %v1122
    %v1135 = vsub.f32 %v1131, %v1123
    %v1136 = vmax.f32 %v1132, 0.0
    %v1137 = vmax.f32 %v1133, 0.0
    %v1138 = vmax.f32 %v1134, 0.0
    %v1139 = vmax.f32 %v1135, 0.0
    %v1140 = vmax.f32 %v1136, 1e-24
    %v1141 = vmax.f32 %v1137, 1e-24
    %v1142 = vmax.f32 %v1138, 1e-24
    %v1143 = vmax.f32 %v1139, 1e-24
    %v1144 = vrsqrt.pop %v1140
    %v1145 = vrsqrt.pop %v1141
    %v1146 = vrsqrt.pop %v1142
    %v1147 = vrsqrt.pop %v1143
    %s1148 = smax.f32 %s308, 0.01
    %s1149 = smin.f32 %s1148, 0.999
    %s1150 = smul.f32 %s1149, %s1149
    %s1151 = ssub.f32 1.0, %s1150
    %s1152 = sadd.f32 %s1151, 1e-06
    %s1153 = sadd.f32 %s1150, 1.0
    %v1154 = vstv %s1152
    %v1155 = vrcp.pop %v1154
    %s1156 = vtos %v1155
    %s1157 = smul.f32 %s1153, %s1156
    %s1158 = smul.f32 %s1149, 2.0
    %v1159 = vstv %s1152
    %v1160 = vrcp.pop %v1159
    %s1161 = vtos %v1160
    %s1162 = smul.f32 %s1158, %s1161
    %v1163 = vstv %s1162
    %v1164 = vmul.f32 %v1163, %v1144
    %v1165 = vmul.f32 %v1163, %v1145
    %v1166 = vmul.f32 %v1163, %v1146
    %v1167 = vmul.f32 %v1163, %v1147
    %1169 = vset.pattern.permute.xlu0 0
    %1170 = vperm.xlu0 %1169, %v1164
    %v1171 = vpop.permute.xlu0 %1170
    %1174 = vset.pattern.permute.xlu0 0
    %1175 = vperm.xlu0 %1174, %v1165
    %v1176 = vpop.permute.xlu0 %1175
    %1179 = vset.pattern.permute.xlu0 0
    %1180 = vperm.xlu0 %1179, %v1166
    %v1181 = vpop.permute.xlu0 %1180
    %1184 = vset.pattern.permute.xlu0 0
    %1185 = vperm.xlu0 %1184, %v1167
    %v1186 = vpop.permute.xlu0 %1185
    %v1188 = vmul.f32 %v1116, %v1171
    %v1189 = vmul.f32 %v1117, %v1176
    %v1190 = vmul.f32 %v1118, %v1181
    %v1191 = vmul.f32 %v1119, %v1186
    %v1192 = vstv %s1157
    %v1193 = vsel %vm191, %v1192, %v1188
    %v1194 = vsel %vm191, %v1192, %v1189
    %v1195 = vsel %vm191, %v1192, %v1190
    %v1196 = vsel %vm191, %v1192, %v1191
    %1197 = vst [vmem:[%s15] sm:$0xff] %v1193
    %1198 = vst [vmem:[%s15 + $0x8] sm:$0xff] %v1194
    %1199 = vst [vmem:[%s15 + $0x10] sm:$0xff] %v1195
    %1200 = vst [vmem:[%s15 + $0x18] sm:$0xff] %v1196
    %v1201 = vld [vmem:[#allocation6] sm:$0xff]
    %v1202 = vld [vmem:[#allocation6 + $0x8] sm:$0xff]
    %v1203 = vld [vmem:[#allocation6 + $0x10] sm:$0xff]
    %v1204 = vld [vmem:[#allocation6 + $0x18] sm:$0xff]
    %v1205 = vld [vmem:[#allocation6 + $0x20] sm:$0xff]
    %v1206 = vld [vmem:[#allocation6 + $0x28] sm:$0xff]
    %v1207 = vld [vmem:[#allocation6 + $0x30] sm:$0xff]
    %v1208 = vld [vmem:[#allocation6 + $0x38] sm:$0xff]
    %v1209 = vld [vmem:[#allocation6 + $0x40] sm:$0xff]
    %v1210 = vld [vmem:[#allocation6 + $0x48] sm:$0xff]
    %v1211 = vld [vmem:[#allocation6 + $0x50] sm:$0xff]
    %v1212 = vld [vmem:[#allocation6 + $0x58] sm:$0xff]
    %v1213 = vld [vmem:[#allocation6 + $0x60] sm:$0xff]
    %v1214 = vld [vmem:[#allocation6 + $0x68] sm:$0xff]
    %v1215 = vld [vmem:[#allocation6 + $0x70] sm:$0xff]
    %v1216 = vld [vmem:[#allocation6 + $0x78] sm:$0xff]
    %v1217 = vld [vmem:[#allocation8] sm:$0x1]
    %v1219 = vlaneseq
    %v1220 = vshrl.u32 %v1219, 7
    %v1221 = vsub.s32 0, %v1220
    %v1222 = vrot.slane %v1217, %v1221
    %1224 = vmatprep.subr.mxu0 0.0
    %1225 = vmatpush1.msra.mxu0 %v1201
    %1226 = vmatprep.subr.mxu0 0.0
    %1227 = vmatpush1.msra.mxu0 %v1202
    %1228 = vmatprep.subr.mxu0 0.0
    %1229 = vmatpush1.msra.mxu0 %v1203
    %1230 = vmatprep.subr.mxu0 0.0
    %1231 = vmatpush1.msra.mxu0 %v1204
    %1232 = vmatprep.subr.mxu0 0.0
    %1233 = vmatpush1.msra.mxu0 %v1205
    %1234 = vmatprep.subr.mxu0 0.0
    %1235 = vmatpush1.msra.mxu0 %v1206
    %1236 = vmatprep.subr.mxu0 0.0
    %1237 = vmatpush1.msra.mxu0 %v1207
    %1238 = vmatprep.subr.mxu0 0.0
    %1239 = vmatpush1.msra.mxu0 %v1208
    %1240 = vmatprep.subr.mxu0 0.0
    %1241 = vmatpush1.msra.mxu0 %v1209
    %1242 = vmatprep.subr.mxu0 0.0
    %1243 = vmatpush1.msra.mxu0 %v1210
    %1244 = vmatprep.subr.mxu0 0.0
    %1245 = vmatpush1.msra.mxu0 %v1211
    %1246 = vmatprep.subr.mxu0 0.0
    %1247 = vmatpush1.msra.mxu0 %v1212
    %1248 = vmatprep.subr.mxu0 0.0
    %1249 = vmatpush1.msra.mxu0 %v1213
    %1250 = vmatprep.subr.mxu0 0.0
    %1251 = vmatpush1.msra.mxu0 %v1214
    %1252 = vmatprep.subr.mxu0 0.0
    %1253 = vmatpush1.msra.mxu0 %v1215
    %1254 = vmatprep.subr.mxu0 0.0
    %1255 = vmatpush1.msra.mxu0 %v1216
    %1256 = vmatprep.subr.mxu0 0.0
    %1257 = vmatpush1.msra.mxu0 0.0
    %1258 = vmatprep.subr.mxu0 0.0
    %1259 = vmatpush1.msra.mxu0 0.0
    %1260 = vmatprep.subr.mxu0 0.0
    %1261 = vmatpush1.msra.mxu0 0.0
    %1262 = vmatprep.subr.mxu0 0.0
    %1263 = vmatpush1.msra.mxu0 0.0
    %1264 = vmatprep.subr.mxu0 0.0
    %1265 = vmatpush1.msra.mxu0 0.0
    %1266 = vmatprep.subr.mxu0 0.0
    %1267 = vmatpush1.msra.mxu0 0.0
    %1268 = vmatprep.subr.mxu0 0.0
    %1269 = vmatpush1.msra.mxu0 0.0
    %1270 = vmatprep.subr.mxu0 0.0
    %1271 = vmatpush1.msra.mxu0 0.0
    %1272 = vmatprep.subr.mxu0 0.0
    %1273 = vmatpush1.msra.mxu0 0.0
    %1274 = vmatprep.subr.mxu0 0.0
    %1275 = vmatpush1.msra.mxu0 0.0
    %1276 = vmatprep.subr.mxu0 0.0
    %1277 = vmatpush1.msra.mxu0 0.0
    %1278 = vmatprep.subr.mxu0 0.0
    %1279 = vmatpush1.msra.mxu0 0.0
    %1280 = vmatprep.subr.mxu0 0.0
    %1281 = vmatpush1.msra.mxu0 0.0
    %1282 = vmatprep.subr.mxu0 0.0
    %1283 = vmatpush1.msra.mxu0 0.0
    %1284 = vmatprep.subr.mxu0 0.0
    %1285 = vmatpush1.msra.mxu0 0.0
    %1286 = vmatprep.subr.mxu0 0.0
    %1287 = vmatpush1.msra.mxu0 0.0
    %1288 = vmatprep.mubr.f32.mxu0 0.0
    %1289 = vmatmul.mubr.f32.gmra.mrb[0].mxu0 %v1193
    %v1290 = vpop.f32.mrb[0].mxu0
    %v1291 = vadd.f32 %v1222, %v1290
    %v1292 = vpop.f32.mrb[0].mxu0
    %1293 = vmatprep.mubr.f32.mxu0 0.0
    %1294 = vmatmul.mubr.f32.gmra.mrb[0].mxu0 %v1194
    %v1295 = vpop.f32.mrb[0].mxu0
    %v1296 = vadd.f32 %v1222, %v1295
    %v1297 = vpop.f32.mrb[0].mxu0
    %1298 = vmatprep.mubr.f32.mxu0 0.0
    %1299 = vmatmul.mubr.f32.gmra.mrb[0].mxu0 %v1195
    %v1300 = vpop.f32.mrb[0].mxu0
    %v1301 = vadd.f32 %v1222, %v1300
    %v1302 = vpop.f32.mrb[0].mxu0
    %1303 = vmatprep.mubr.f32.mxu0 0.0
    %1304 = vmatmul.mubr.f32.gmra.mrb[0].mxu0 %v1196
    %v1305 = vpop.f32.mrb[0].mxu0
    %v1306 = vadd.f32 %v1222, %v1305
    %v1307 = vpop.f32.mrb[0].mxu0
    %1308 = vdwg.mxu0
    %v1309 = vxor.u32 %v1291, 2147483648
    %v1310 = vxor.u32 %v1296, 2147483648
    %v1311 = vxor.u32 %v1301, 2147483648
    %v1312 = vxor.u32 %v1306, 2147483648
    %v1313 = vmul.f32 %v1309, 1.442695
    %v1314 = vpow.pop %v1313
    %v1315 = vmul.f32 %v1310, 1.442695
    %v1316 = vpow.pop %v1315
    %v1317 = vmul.f32 %v1311, 1.442695
    %v1318 = vpow.pop %v1317
    %v1319 = vmul.f32 %v1312, 1.442695
    %v1320 = vpow.pop %v1319
    %v1321 = vadd.f32 %v1314, 1.0
    %v1322 = vadd.f32 %v1316, 1.0
    %v1323 = vadd.f32 %v1318, 1.0
    %v1324 = vadd.f32 %v1320, 1.0
    %v1325 = vrcp.pop %v1321
    %v1326 = vmul.f32 1.0, %v1325
    %v1327 = vrcp.pop %v1322
    %v1328 = vmul.f32 1.0, %v1327
    %v1329 = vrcp.pop %v1323
    %v1330 = vmul.f32 1.0, %v1329
    %v1331 = vrcp.pop %v1324
    %v1332 = vmul.f32 1.0, %v1331
    %v1333 = vmul.f32 %v1326, 10.0
    %v1334 = vmul.f32 %v1328, 10.0
    %v1335 = vmul.f32 %v1330, 10.0
    %v1336 = vmul.f32 %v1332, 10.0
    %v1337 = vadd.f32 %v1333, 1.1
    %v1338 = vadd.f32 %v1334, 1.1
    %v1339 = vadd.f32 %v1335, 1.1
    %v1340 = vadd.f32 %v1336, 1.1
    %v1341 = vmul.f32 %v1291, %v1291
    %v1342 = vmul.f32 %v1296, %v1296
    %v1343 = vmul.f32 %v1301, %v1301
    %v1344 = vmul.f32 %v1306, %v1306
    %1345 = vadd.xlane.f32.xlu0 %v1341
    %v1346 = vpop.xlane.xlu0 %1345
    %1347 = vadd.xlane.f32.xlu0 %v1342
    %v1348 = vpop.xlane.xlu0 %1347
    %1349 = vadd.xlane.f32.xlu0 %v1343
    %v1350 = vpop.xlane.xlu0 %1349
    %1351 = vadd.xlane.f32.xlu0 %v1344
    %v1352 = vpop.xlane.xlu0 %1351
    %v1353 = vsub.f32 %v1346, %v1341
    %v1354 = vsub.f32 %v1348, %v1342
    %v1355 = vsub.f32 %v1350, %v1343
    %v1356 = vsub.f32 %v1352, %v1344
    %v1357 = vmax.f32 %v1353, 1e-08
    %v1358 = vmax.f32 %v1354, 1e-08
    %v1359 = vmax.f32 %v1355, 1e-08
    %v1360 = vmax.f32 %v1356, 1e-08
    %v1361 = vmul.f32 %v1337, %v1337
    %v1362 = vmul.f32 %v1338, %v1338
    %v1363 = vmul.f32 %v1339, %v1339
    %v1364 = vmul.f32 %v1340, %v1340
    %v1365 = vsub.f32 %v1361, 1.0
    %v1366 = vsub.f32 %v1362, 1.0
    %v1367 = vsub.f32 %v1363, 1.0
    %v1368 = vsub.f32 %v1364, 1.0
    %v1369 = vrsqrt.pop %v1365
    %v1370 = vmul.f32 %v1365, %v1369
    %vm1371 = vcmp.eq.f32.partialorder %v1365, inf
    %v1372 = vsel %vm1371, %v1365, %v1370
    %vm1373 = vcmp.eq.f32.partialorder %v1365, 0.0
    %v1374 = vand.u32 %v1365, 2147483648
    %v1375 = vsel %vm1373, %v1374, %v1372
    %v1376 = vrsqrt.pop %v1366
    %v1377 = vmul.f32 %v1366, %v1376
    %vm1378 = vcmp.eq.f32.partialorder %v1366, inf
    %v1379 = vsel %vm1378, %v1366, %v1377
    %vm1380 = vcmp.eq.f32.partialorder %v1366, 0.0
    %v1381 = vand.u32 %v1366, 2147483648
    %v1382 = vsel %vm1380, %v1381, %v1379
    %v1383 = vrsqrt.pop %v1367
    %v1384 = vmul.f32 %v1367, %v1383
    %vm1385 = vcmp.eq.f32.partialorder %v1367, inf
    %v1386 = vsel %vm1385, %v1367, %v1384
    %vm1387 = vcmp.eq.f32.partialorder %v1367, 0.0
    %v1388 = vand.u32 %v1367, 2147483648
    %v1389 = vsel %vm1387, %v1388, %v1386
    %v1390 = vrsqrt.pop %v1368
    %v1391 = vmul.f32 %v1368, %v1390
    %vm1392 = vcmp.eq.f32.partialorder %v1368, inf
    %v1393 = vsel %vm1392, %v1368, %v1391
    %vm1394 = vcmp.eq.f32.partialorder %v1368, 0.0
    %v1395 = vand.u32 %v1368, 2147483648
    %v1396 = vsel %vm1394, %v1395, %v1393
    %v1397 = vrsqrt.pop %v1357
    %v1398 = vrsqrt.pop %v1358
    %v1399 = vrsqrt.pop %v1359
    %v1400 = vrsqrt.pop %v1360
    %v1401 = vmul.f32 %v1375, %v1397
    %v1402 = vmul.f32 %v1382, %v1398
    %v1403 = vmul.f32 %v1389, %v1399
    %v1404 = vmul.f32 %v1396, %v1400
    %1406 = vset.pattern.permute.xlu0 0
    %1407 = vperm.xlu0 %1406, %v1401
    %v1408 = vpop.permute.xlu0 %1407
    %1411 = vset.pattern.permute.xlu0 0
    %1412 = vperm.xlu0 %1411, %v1402
    %v1413 = vpop.permute.xlu0 %1412
    %1416 = vset.pattern.permute.xlu0 0
    %1417 = vperm.xlu0 %1416, %v1403
    %v1418 = vpop.permute.xlu0 %1417
    %1421 = vset.pattern.permute.xlu0 0
    %1422 = vperm.xlu0 %1421, %v1404
    %v1423 = vpop.permute.xlu0 %1422
    %v1425 = vmul.f32 %v1291, %v1408
    %v1426 = vmul.f32 %v1296, %v1413
    %v1427 = vmul.f32 %v1301, %v1418
    %v1428 = vmul.f32 %v1306, %v1423
    %1430 = vset.pattern.permute.xlu0 0
    %1431 = vperm.xlu0 %1430, %v1337
    %v1432 = vpop.permute.xlu0 %1431
    %1435 = vset.pattern.permute.xlu0 0
    %1436 = vperm.xlu0 %1435, %v1338
    %v1437 = vpop.permute.xlu0 %1436
    %1440 = vset.pattern.permute.xlu0 0
    %1441 = vperm.xlu0 %1440, %v1339
    %v1442 = vpop.permute.xlu0 %1441
    %1445 = vset.pattern.permute.xlu0 0
    %1446 = vperm.xlu0 %1445, %v1340
    %v1447 = vpop.permute.xlu0 %1446
    %v1449 = vsel %vm191, %v1432, %v1425
    %v1450 = vsel %vm191, %v1437, %v1426
    %v1451 = vsel %vm191, %v1442, %v1427
    %v1452 = vsel %vm191, %v1447, %v1428
    %v1453 = vld [vmem:[#allocation9] sm:$0xff]
    %v1454 = vld [vmem:[#allocation9 + $0x8] sm:$0xff]
    %v1455 = vld [vmem:[#allocation9 + $0x10] sm:$0xff]
    %v1456 = vld [vmem:[#allocation9 + $0x18] sm:$0xff]
    %v1457 = vld [vmem:[#allocation9 + $0x20] sm:$0xff]
    %v1458 = vld [vmem:[#allocation9 + $0x28] sm:$0xff]
    %v1459 = vld [vmem:[#allocation9 + $0x30] sm:$0xff]
    %v1460 = vld [vmem:[#allocation9 + $0x38] sm:$0xff]
    %v1461 = vld [vmem:[#allocation9 + $0x40] sm:$0xff]
    %v1462 = vld [vmem:[#allocation9 + $0x48] sm:$0xff]
    %v1463 = vld [vmem:[#allocation9 + $0x50] sm:$0xff]
    %v1464 = vld [vmem:[#allocation9 + $0x58] sm:$0xff]
    %v1465 = vld [vmem:[#allocation9 + $0x60] sm:$0xff]
    %v1466 = vld [vmem:[#allocation9 + $0x68] sm:$0xff]
    %v1467 = vld [vmem:[#allocation9 + $0x70] sm:$0xff]
    %v1468 = vld [vmem:[#allocation9 + $0x78] sm:$0xff]
    %v1469 = vld [vmem:[#allocation11] sm:$0x1]
    %v1470 = vmax.f32 %v1449, 0.0
    %v1471 = vmax.f32 %v1450, 0.0
    %v1472 = vmax.f32 %v1451, 0.0
    %v1473 = vmax.f32 %v1452, 0.0
    %v1475 = vlaneseq
    %v1476 = vshrl.u32 %v1475, 7
    %v1477 = vsub.s32 0, %v1476
    %v1478 = vrot.slane %v1469, %v1477
    %1480 = vmatprep.subr.mxu0 0.0
    %1481 = vmatpush1.msra.mxu0 %v1453
    %1482 = vmatprep.subr.mxu0 0.0
    %1483 = vmatpush1.msra.mxu0 %v1454
    %1484 = vmatprep.subr.mxu0 0.0
    %1485 = vmatpush1.msra.mxu0 %v1455
    %1486 = vmatprep.subr.mxu0 0.0
    %1487 = vmatpush1.msra.mxu0 %v1456
    %1488 = vmatprep.subr.mxu0 0.0
    %1489 = vmatpush1.msra.mxu0 %v1457
    %1490 = vmatprep.subr.mxu0 0.0
    %1491 = vmatpush1.msra.mxu0 %v1458
    %1492 = vmatprep.subr.mxu0 0.0
    %1493 = vmatpush1.msra.mxu0 %v1459
    %1494 = vmatprep.subr.mxu0 0.0
    %1495 = vmatpush1.msra.mxu0 %v1460
    %1496 = vmatprep.subr.mxu0 0.0
    %1497 = vmatpush1.msra.mxu0 %v1461
    %1498 = vmatprep.subr.mxu0 0.0
    %1499 = vmatpush1.msra.mxu0 %v1462
    %1500 = vmatprep.subr.mxu0 0.0
    %1501 = vmatpush1.msra.mxu0 %v1463
    %1502 = vmatprep.subr.mxu0 0.0
    %1503 = vmatpush1.msra.mxu0 %v1464
    %1504 = vmatprep.subr.mxu0 0.0
    %1505 = vmatpush1.msra.mxu0 %v1465
    %1506 = vmatprep.subr.mxu0 0.0
    %1507 = vmatpush1.msra.mxu0 %v1466
    %1508 = vmatprep.subr.mxu0 0.0
    %1509 = vmatpush1.msra.mxu0 %v1467
    %1510 = vmatprep.subr.mxu0 0.0
    %1511 = vmatpush1.msra.mxu0 %v1468
    %1512 = vmatprep.subr.mxu0 0.0
    %1513 = vmatpush1.msra.mxu0 0.0
    %1514 = vmatprep.subr.mxu0 0.0
    %1515 = vmatpush1.msra.mxu0 0.0
    %1516 = vmatprep.subr.mxu0 0.0
    %1517 = vmatpush1.msra.mxu0 0.0
    %1518 = vmatprep.subr.mxu0 0.0
    %1519 = vmatpush1.msra.mxu0 0.0
    %1520 = vmatprep.subr.mxu0 0.0
    %1521 = vmatpush1.msra.mxu0 0.0
    %1522 = vmatprep.subr.mxu0 0.0
    %1523 = vmatpush1.msra.mxu0 0.0
    %1524 = vmatprep.subr.mxu0 0.0
    %1525 = vmatpush1.msra.mxu0 0.0
    %1526 = vmatprep.subr.mxu0 0.0
    %1527 = vmatpush1.msra.mxu0 0.0
    %1528 = vmatprep.subr.mxu0 0.0
    %1529 = vmatpush1.msra.mxu0 0.0
    %1530 = vmatprep.subr.mxu0 0.0
    %1531 = vmatpush1.msra.mxu0 0.0
    %1532 = vmatprep.subr.mxu0 0.0
    %1533 = vmatpush1.msra.mxu0 0.0
    %1534 = vmatprep.subr.mxu0 0.0
    %1535 = vmatpush1.msra.mxu0 0.0
    %1536 = vmatprep.subr.mxu0 0.0
    %1537 = vmatpush1.msra.mxu0 0.0
    %1538 = vmatprep.subr.mxu0 0.0
    %1539 = vmatpush1.msra.mxu0 0.0
    %1540 = vmatprep.subr.mxu0 0.0
    %1541 = vmatpush1.msra.mxu0 0.0
    %1542 = vmatprep.subr.mxu0 0.0
    %1543 = vmatpush1.msra.mxu0 0.0
    %1544 = vmatprep.mubr.f32.mxu0 0.0
    %1545 = vmatmul.mubr.f32.gmra.mrb[0].mxu0 %v1470
    %v1546 = vpop.f32.mrb[0].mxu0
    %v1547 = vadd.f32 %v1478, %v1546
    %v1548 = vpop.f32.mrb[0].mxu0
    %1549 = vmatprep.mubr.f32.mxu0 0.0
    %1550 = vmatmul.mubr.f32.gmra.mrb[0].mxu0 %v1471
    %v1551 = vpop.f32.mrb[0].mxu0
    %v1552 = vadd.f32 %v1478, %v1551
    %v1553 = vpop.f32.mrb[0].mxu0
    %1554 = vmatprep.mubr.f32.mxu0 0.0
    %1555 = vmatmul.mubr.f32.gmra.mrb[0].mxu0 %v1472
    %v1556 = vpop.f32.mrb[0].mxu0
    %v1557 = vadd.f32 %v1478, %v1556
    %v1558 = vpop.f32.mrb[0].mxu0
    %1559 = vmatprep.mubr.f32.mxu0 0.0
    %1560 = vmatmul.mubr.f32.gmra.mrb[0].mxu0 %v1473
    %v1561 = vpop.f32.mrb[0].mxu0
    %v1562 = vadd.f32 %v1478, %v1561
    %v1563 = vpop.f32.mrb[0].mxu0
    %1564 = vdwg.mxu0
    %v1565 = vxor.u32 %v1547, 2147483648
    %v1566 = vxor.u32 %v1552, 2147483648
    %v1567 = vxor.u32 %v1557, 2147483648
    %v1568 = vxor.u32 %v1562, 2147483648
    %v1569 = vmul.f32 %v1565, 1.442695
    %v1570 = vpow.pop %v1569
    %v1571 = vmul.f32 %v1566, 1.442695
    %v1572 = vpow.pop %v1571
    %v1573 = vmul.f32 %v1567, 1.442695
    %v1574 = vpow.pop %v1573
    %v1575 = vmul.f32 %v1568, 1.442695
    %v1576 = vpow.pop %v1575
    %v1577 = vadd.f32 %v1570, 1.0
    %v1578 = vadd.f32 %v1572, 1.0
    %v1579 = vadd.f32 %v1574, 1.0
    %v1580 = vadd.f32 %v1576, 1.0
    %v1581 = vrcp.pop %v1577
    %v1582 = vmul.f32 1.0, %v1581
    %v1583 = vrcp.pop %v1578
    %v1584 = vmul.f32 1.0, %v1583
    %v1585 = vrcp.pop %v1579
    %v1586 = vmul.f32 1.0, %v1585
    %v1587 = vrcp.pop %v1580
    %v1588 = vmul.f32 1.0, %v1587
    %v1589 = vmul.f32 %v1582, 10.0
    %v1590 = vmul.f32 %v1584, 10.0
    %v1591 = vmul.f32 %v1586, 10.0
    %v1592 = vmul.f32 %v1588, 10.0
    %v1593 = vadd.f32 %v1589, 1.1
    %v1594 = vadd.f32 %v1590, 1.1
    %v1595 = vadd.f32 %v1591, 1.1
    %v1596 = vadd.f32 %v1592, 1.1
    %v1597 = vmul.f32 %v1547, %v1547
    %v1598 = vmul.f32 %v1552, %v1552
    %v1599 = vmul.f32 %v1557, %v1557
    %v1600 = vmul.f32 %v1562, %v1562
    %1601 = vadd.xlane.f32.xlu0 %v1597
    %v1602 = vpop.xlane.xlu0 %1601
    %1603 = vadd.xlane.f32.xlu0 %v1598
    %v1604 = vpop.xlane.xlu0 %1603
    %1605 = vadd.xlane.f32.xlu0 %v1599
    %v1606 = vpop.xlane.xlu0 %1605
    %1607 = vadd.xlane.f32.xlu0 %v1600
    %v1608 = vpop.xlane.xlu0 %1607
    %v1609 = vsub.f32 %v1602, %v1597
    %v1610 = vsub.f32 %v1604, %v1598
    %v1611 = vsub.f32 %v1606, %v1599
    %v1612 = vsub.f32 %v1608, %v1600
    %v1613 = vmax.f32 %v1609, 1e-08
    %v1614 = vmax.f32 %v1610, 1e-08
    %v1615 = vmax.f32 %v1611, 1e-08
    %v1616 = vmax.f32 %v1612, 1e-08
    %v1617 = vmul.f32 %v1593, %v1593
    %v1618 = vmul.f32 %v1594, %v1594
    %v1619 = vmul.f32 %v1595, %v1595
    %v1620 = vmul.f32 %v1596, %v1596
    %v1621 = vsub.f32 %v1617, 1.0
    %v1622 = vsub.f32 %v1618, 1.0
    %v1623 = vsub.f32 %v1619, 1.0
    %v1624 = vsub.f32 %v1620, 1.0
    %v1625 = vrsqrt.pop %v1621
    %v1626 = vmul.f32 %v1621, %v1625
    %vm1627 = vcmp.eq.f32.partialorder %v1621, inf
    %v1628 = vsel %vm1627, %v1621, %v1626
    %vm1629 = vcmp.eq.f32.partialorder %v1621, 0.0
    %v1630 = vand.u32 %v1621, 2147483648
    %v1631 = vsel %vm1629, %v1630, %v1628
    %v1632 = vrsqrt.pop %v1622
    %v1633 = vmul.f32 %v1622, %v1632
    %vm1634 = vcmp.eq.f32.partialorder %v1622, inf
    %v1635 = vsel %vm1634, %v1622, %v1633
    %vm1636 = vcmp.eq.f32.partialorder %v1622, 0.0
    %v1637 = vand.u32 %v1622, 2147483648
    %v1638 = vsel %vm1636, %v1637, %v1635
    %v1639 = vrsqrt.pop %v1623
    %v1640 = vmul.f32 %v1623, %v1639
    %vm1641 = vcmp.eq.f32.partialorder %v1623, inf
    %v1642 = vsel %vm1641, %v1623, %v1640
    %vm1643 = vcmp.eq.f32.partialorder %v1623, 0.0
    %v1644 = vand.u32 %v1623, 2147483648
    %v1645 = vsel %vm1643, %v1644, %v1642
    %v1646 = vrsqrt.pop %v1624
    %v1647 = vmul.f32 %v1624, %v1646
    %vm1648 = vcmp.eq.f32.partialorder %v1624, inf
    %v1649 = vsel %vm1648, %v1624, %v1647
    %vm1650 = vcmp.eq.f32.partialorder %v1624, 0.0
    %v1651 = vand.u32 %v1624, 2147483648
    %v1652 = vsel %vm1650, %v1651, %v1649
    %v1653 = vrsqrt.pop %v1613
    %v1654 = vrsqrt.pop %v1614
    %v1655 = vrsqrt.pop %v1615
    %v1656 = vrsqrt.pop %v1616
    %v1657 = vmul.f32 %v1631, %v1653
    %v1658 = vmul.f32 %v1638, %v1654
    %v1659 = vmul.f32 %v1645, %v1655
    %v1660 = vmul.f32 %v1652, %v1656
    %1662 = vset.pattern.permute.xlu0 0
    %1663 = vperm.xlu0 %1662, %v1657
    %v1664 = vpop.permute.xlu0 %1663
    %1667 = vset.pattern.permute.xlu0 0
    %1668 = vperm.xlu0 %1667, %v1658
    %v1669 = vpop.permute.xlu0 %1668
    %1672 = vset.pattern.permute.xlu0 0
    %1673 = vperm.xlu0 %1672, %v1659
    %v1674 = vpop.permute.xlu0 %1673
    %1677 = vset.pattern.permute.xlu0 0
    %1678 = vperm.xlu0 %1677, %v1660
    %v1679 = vpop.permute.xlu0 %1678
    %v1681 = vmul.f32 %v1547, %v1664
    %v1682 = vmul.f32 %v1552, %v1669
    %v1683 = vmul.f32 %v1557, %v1674
    %v1684 = vmul.f32 %v1562, %v1679
    %1686 = vset.pattern.permute.xlu0 0
    %1687 = vperm.xlu0 %1686, %v1593
    %v1688 = vpop.permute.xlu0 %1687
    %1691 = vset.pattern.permute.xlu0 0
    %1692 = vperm.xlu0 %1691, %v1594
    %v1693 = vpop.permute.xlu0 %1692
    %1696 = vset.pattern.permute.xlu0 0
    %1697 = vperm.xlu0 %1696, %v1595
    %v1698 = vpop.permute.xlu0 %1697
    %1701 = vset.pattern.permute.xlu0 0
    %1702 = vperm.xlu0 %1701, %v1596
    %v1703 = vpop.permute.xlu0 %1702
    %v1705 = vsel %vm191, %v1688, %v1681
    %v1706 = vsel %vm191, %v1693, %v1682
    %v1707 = vsel %vm191, %v1698, %v1683
    %v1708 = vsel %vm191, %v1703, %v1684
    %1709 = vmatprep.subr.mxu0 0.0
    %1710 = vmatpush1.msra.mxu0 %v1705
    %1711 = vmatprep.subr.mxu0 0.0
    %1712 = vmatpush1.msra.mxu0 %v1706
    %1713 = vmatprep.subr.mxu0 0.0
    %1714 = vmatpush1.msra.mxu0 %v1707
    %1715 = vmatprep.subr.mxu0 0.0
    %1716 = vmatpush1.msra.mxu0 %v1708
    %1717 = vmatprep.subr.mxu0 0.0
    %1718 = vmatpush1.msra.mxu0 0.0
    %1719 = vmatprep.subr.mxu0 0.0
    %1720 = vmatpush1.msra.mxu0 0.0
    %1721 = vmatprep.subr.mxu0 0.0
    %1722 = vmatpush1.msra.mxu0 0.0
    %1723 = vmatprep.subr.mxu0 0.0
    %1724 = vmatpush1.msra.mxu0 0.0
    %1725 = vmatprep.subr.mxu0 0.0
    %1726 = vmatpush1.msra.mxu0 0.0
    %1727 = vmatprep.subr.mxu0 0.0
    %1728 = vmatpush1.msra.mxu0 0.0
    %1729 = vmatprep.subr.mxu0 0.0
    %1730 = vmatpush1.msra.mxu0 0.0
    %1731 = vmatprep.subr.mxu0 0.0
    %1732 = vmatpush1.msra.mxu0 0.0
    %1733 = vmatprep.subr.mxu0 0.0
    %1734 = vmatpush1.msra.mxu0 0.0
    %1735 = vmatprep.subr.mxu0 0.0
    %1736 = vmatpush1.msra.mxu0 0.0
    %1737 = vmatprep.subr.mxu0 0.0
    %1738 = vmatpush1.msra.mxu0 0.0
    %1739 = vmatprep.subr.mxu0 0.0
    %1740 = vmatpush1.msra.mxu0 0.0
    %1741 = vmatprep.subr.mxu0 0.0
    %1742 = vmatpush1.msra.mxu0 0.0
    %1743 = vmatprep.subr.mxu0 0.0
    %1744 = vmatpush1.msra.mxu0 0.0
    %1745 = vmatprep.subr.mxu0 0.0
    %1746 = vmatpush1.msra.mxu0 0.0
    %1747 = vmatprep.subr.mxu0 0.0
    %1748 = vmatpush1.msra.mxu0 0.0
    %1749 = vmatprep.subr.mxu0 0.0
    %1750 = vmatpush1.msra.mxu0 0.0
    %1751 = vmatprep.subr.mxu0 0.0
    %1752 = vmatpush1.msra.mxu0 0.0
    %1753 = vmatprep.subr.mxu0 0.0
    %1754 = vmatpush1.msra.mxu0 0.0
    %1755 = vmatprep.subr.mxu0 0.0
    %1756 = vmatpush1.msra.mxu0 0.0
    %1757 = vmatprep.subr.mxu0 0.0
    %1758 = vmatpush1.msra.mxu0 0.0
    %1759 = vmatprep.subr.mxu0 0.0
    %1760 = vmatpush1.msra.mxu0 0.0
    %1761 = vmatprep.subr.mxu0 0.0
    %1762 = vmatpush1.msra.mxu0 0.0
    %1763 = vmatprep.subr.mxu0 0.0
    %1764 = vmatpush1.msra.mxu0 0.0
    %1765 = vmatprep.subr.mxu0 0.0
    %1766 = vmatpush1.msra.mxu0 0.0
    %1767 = vmatprep.subr.mxu0 0.0
    %1768 = vmatpush1.msra.mxu0 0.0
    %1769 = vmatprep.subr.mxu0 0.0
    %1770 = vmatpush1.msra.mxu0 0.0
    %1771 = vmatprep.subr.mxu0 0.0
    %1772 = vmatpush1.msra.mxu0 0.0
    %1773 = vmatprep.mubr.f32.mxu0 0.0
    %1774 = vmatmul.mubr.f32.gmra.mrb[0].mxu0 %v563
    %v1775 = vpop.f32.mrb[0].mxu0
    %v1776 = vadd.f32 0.0, %v1775
    %v1777 = vpop.f32.mrb[0].mxu0
    %1778 = vmatprep.mubr.f32.mxu0 0.0
    %1779 = vmatmul.mubr.f32.gmra.mrb[0].mxu0 %v566
    %v1780 = vpop.f32.mrb[0].mxu0
    %v1781 = vadd.f32 0.0, %v1780
    %v1782 = vpop.f32.mrb[0].mxu0
    %1783 = vmatprep.mubr.f32.mxu0 0.0
    %1784 = vmatmul.mubr.f32.gmra.mrb[0].mxu0 %v569
    %v1785 = vpop.f32.mrb[0].mxu0
    %v1786 = vadd.f32 0.0, %v1785
    %v1787 = vpop.f32.mrb[0].mxu0
    %1788 = vmatprep.mubr.f32.mxu0 0.0
    %1789 = vmatmul.mubr.f32.gmra.mrb[0].mxu0 %v572
    %v1790 = vpop.f32.mrb[0].mxu0
    %v1791 = vadd.f32 0.0, %v1790
    %v1792 = vpop.f32.mrb[0].mxu0
    %1793 = vdwg.mxu0
    %v1794 = vmul.f32 %v1776, %v1776
    %v1795 = vmul.f32 %v1781, %v1781
    %v1796 = vmul.f32 %v1786, %v1786
    %v1797 = vmul.f32 %v1791, %v1791
    %1798 = vadd.xlane.f32.xlu0 %v1794
    %v1799 = vpop.xlane.xlu0 %1798
    %1800 = vadd.xlane.f32.xlu0 %v1795
    %v1801 = vpop.xlane.xlu0 %1800
    %1802 = vadd.xlane.f32.xlu0 %v1796
    %v1803 = vpop.xlane.xlu0 %1802
    %1804 = vadd.xlane.f32.xlu0 %v1797
    %v1805 = vpop.xlane.xlu0 %1804
    %v1806 = vmul.f32 %v1776, 2.0
    %v1807 = vmul.f32 %v1781, 2.0
    %v1808 = vmul.f32 %v1786, 2.0
    %v1809 = vmul.f32 %v1791, 2.0
    %v1810 = vmul.f32 %v1806, %v1776
    %v1811 = vmul.f32 %v1807, %v1781
    %v1812 = vmul.f32 %v1808, %v1786
    %v1813 = vmul.f32 %v1809, %v1791
    %v1814 = vsub.f32 %v1799, %v1810
    %v1815 = vsub.f32 %v1801, %v1811
    %v1816 = vsub.f32 %v1803, %v1812
    %v1817 = vsub.f32 %v1805, %v1813
    %v1818 = vand.u32 2147483647, %v1814
    %v1819 = vand.u32 2147483647, %v1815
    %v1820 = vand.u32 2147483647, %v1816
    %v1821 = vand.u32 2147483647, %v1817
    %v1822 = vmax.f32 %v1818, 1e-08
    %v1823 = vmax.f32 %v1819, 1e-08
    %v1824 = vmax.f32 %v1820, 1e-08
    %v1825 = vmax.f32 %v1821, 1e-08
    %v1826 = vrsqrt.pop %v1822
    %v1827 = vrsqrt.pop %v1823
    %v1828 = vrsqrt.pop %v1824
    %v1829 = vrsqrt.pop %v1825
    %1831 = vset.pattern.permute.xlu0 0
    %1832 = vperm.xlu0 %1831, %v1826
    %v1833 = vpop.permute.xlu0 %1832
    %1836 = vset.pattern.permute.xlu0 0
    %1837 = vperm.xlu0 %1836, %v1827
    %v1838 = vpop.permute.xlu0 %1837
    %1841 = vset.pattern.permute.xlu0 0
    %1842 = vperm.xlu0 %1841, %v1828
    %v1843 = vpop.permute.xlu0 %1842
    %1846 = vset.pattern.permute.xlu0 0
    %1847 = vperm.xlu0 %1846, %v1829
    %v1848 = vpop.permute.xlu0 %1847
    %v1850 = vmul.f32 %v1776, %v1833
    %v1851 = vmul.f32 %v1781, %v1838
    %v1852 = vmul.f32 %v1786, %v1843
    %v1853 = vmul.f32 %v1791, %v1848
    %vm1854 = vcmp.ge.s32.totalorder %v173, 1
    %vm1855 = vcmp.le.s32.totalorder %v173, 10
    %vm1856 = vmand %vm1854, %vm1855
    %v1857 = vmul.f32 %v1850, 5.0
    %v1858 = vmul.f32 %v1851, 5.0
    %v1859 = vmul.f32 %v1852, 5.0
    %v1860 = vmul.f32 %v1853, 5.0
    %v1861 = vsel %vm1856, %v1857, -1e+30
    %v1862 = vsel %vm1856, %v1858, -1e+30
    %v1863 = vsel %vm1856, %v1859, -1e+30
    %v1864 = vsel %vm1856, %v1860, -1e+30
    %1865 = vmax.xlane.f32.xlu0 %v1861
    %v1866 = vpop.xlane.xlu0 %1865
    %1867 = vmax.xlane.f32.xlu0 %v1862
    %v1868 = vpop.xlane.xlu0 %1867
    %1869 = vmax.xlane.f32.xlu0 %v1863
    %v1870 = vpop.xlane.xlu0 %1869
    %1871 = vmax.xlane.f32.xlu0 %v1864
    %v1872 = vpop.xlane.xlu0 %1871
    %v1873 = vsub.f32 %v1861, %v1866
    %v1874 = vsub.f32 %v1862, %v1868
    %v1875 = vsub.f32 %v1863, %v1870
    %v1876 = vsub.f32 %v1864, %v1872
    %v1877 = vmul.f32 %v1873, 1.442695
    %v1878 = vpow.pop %v1877
    %v1879 = vmul.f32 %v1874, 1.442695
    %v1880 = vpow.pop %v1879
    %v1881 = vmul.f32 %v1875, 1.442695
    %v1882 = vpow.pop %v1881
    %v1883 = vmul.f32 %v1876, 1.442695
    %v1884 = vpow.pop %v1883
    %v1885 = vsel %vm1856, %v1878, 0.0
    %v1886 = vsel %vm1856, %v1880, 0.0
    %v1887 = vsel %vm1856, %v1882, 0.0
    %v1888 = vsel %vm1856, %v1884, 0.0
    %1889 = vadd.xlane.f32.xlu0 %v1885
    %v1890 = vpop.xlane.xlu0 %1889
    %1891 = vadd.xlane.f32.xlu0 %v1886
    %v1892 = vpop.xlane.xlu0 %1891
    %1893 = vadd.xlane.f32.xlu0 %v1887
    %v1894 = vpop.xlane.xlu0 %1893
    %1895 = vadd.xlane.f32.xlu0 %v1888
    %v1896 = vpop.xlane.xlu0 %1895
    %v1897 = vrcp.pop %v1890
    %v1898 = vrcp.pop %v1892
    %v1899 = vrcp.pop %v1894
    %v1900 = vrcp.pop %v1896
    %v1901 = vmul.f32 %v1885, %v1897
    %v1902 = vmul.f32 %v1886, %v1898
    %v1903 = vmul.f32 %v1887, %v1899
    %v1904 = vmul.f32 %v1888, %v1900
    %1905 = vmatprep.subr.mxu0 0.0
    %1906 = vmatpush1.msra.mxu0 %v1901
    %1907 = vmatprep.subr.mxu0 0.0
    %1908 = vmatpush1.msra.mxu0 %v1902
    %1909 = vmatprep.subr.mxu0 0.0
    %1910 = vmatpush1.msra.mxu0 %v1903
    %1911 = vmatprep.subr.mxu0 0.0
    %1912 = vmatpush1.msra.mxu0 %v1904
    %1913 = vmatprep.subr.mxu0 0.0
    %1914 = vmatpush1.msra.mxu0 0.0
    %1915 = vmatprep.subr.mxu0 0.0
    %1916 = vmatpush1.msra.mxu0 0.0
    %1917 = vmatprep.subr.mxu0 0.0
    %1918 = vmatpush1.msra.mxu0 0.0
    %1919 = vmatprep.subr.mxu0 0.0
    %1920 = vmatpush1.msra.mxu0 0.0
    %1921 = vmatprep.subr.mxu0 0.0
    %1922 = vmatpush1.msra.mxu0 0.0
    %1923 = vmatprep.subr.mxu0 0.0
    %1924 = vmatpush1.msra.mxu0 0.0
    %1925 = vmatprep.subr.mxu0 0.0
    %1926 = vmatpush1.msra.mxu0 0.0
    %1927 = vmatprep.subr.mxu0 0.0
    %1928 = vmatpush1.msra.mxu0 0.0
    %1929 = vmatprep.subr.mxu0 0.0
    %1930 = vmatpush1.msra.mxu0 0.0
    %1931 = vmatprep.subr.mxu0 0.0
    %1932 = vmatpush1.msra.mxu0 0.0
    %1933 = vmatprep.subr.mxu0 0.0
    %1934 = vmatpush1.msra.mxu0 0.0
    %1935 = vmatprep.subr.mxu0 0.0
    %1936 = vmatpush1.msra.mxu0 0.0
    %1937 = vmatprep.subr.mxu0 0.0
    %1938 = vmatpush1.msra.mxu0 0.0
    %1939 = vmatprep.subr.mxu0 0.0
    %1940 = vmatpush1.msra.mxu0 0.0
    %1941 = vmatprep.subr.mxu0 0.0
    %1942 = vmatpush1.msra.mxu0 0.0
    %1943 = vmatprep.subr.mxu0 0.0
    %1944 = vmatpush1.msra.mxu0 0.0
    %1945 = vmatprep.subr.mxu0 0.0
    %1946 = vmatpush1.msra.mxu0 0.0
    %1947 = vmatprep.subr.mxu0 0.0
    %1948 = vmatpush1.msra.mxu0 0.0
    %1949 = vmatprep.subr.mxu0 0.0
    %1950 = vmatpush1.msra.mxu0 0.0
    %1951 = vmatprep.subr.mxu0 0.0
    %1952 = vmatpush1.msra.mxu0 0.0
    %1953 = vmatprep.subr.mxu0 0.0
    %1954 = vmatpush1.msra.mxu0 0.0
    %1955 = vmatprep.subr.mxu0 0.0
    %1956 = vmatpush1.msra.mxu0 0.0
    %1957 = vmatprep.subr.mxu0 0.0
    %1958 = vmatpush1.msra.mxu0 0.0
    %1959 = vmatprep.subr.mxu0 0.0
    %1960 = vmatpush1.msra.mxu0 0.0
    %1961 = vmatprep.subr.mxu0 0.0
    %1962 = vmatpush1.msra.mxu0 0.0
    %1963 = vmatprep.subr.mxu0 0.0
    %1964 = vmatpush1.msra.mxu0 0.0
    %1965 = vmatprep.subr.mxu0 0.0
    %1966 = vmatpush1.msra.mxu0 0.0
    %1967 = vmatprep.subr.mxu0 0.0
    %1968 = vmatpush1.msra.mxu0 0.0
    %1969 = vmatprep.mubr.f32.mxu0 0.0
    %1970 = vmatmul.mubr.f32.gmra.mrb[0].mxu0 %v563
    %v1971 = vpop.f32.mrb[0].mxu0
    %v1972 = vadd.f32 0.0, %v1971
    %v1973 = vpop.f32.mrb[0].mxu0
    %1974 = vmatprep.mubr.f32.mxu0 0.0
    %1975 = vmatmul.mubr.f32.gmra.mrb[0].mxu0 %v566
    %v1976 = vpop.f32.mrb[0].mxu0
    %v1977 = vadd.f32 0.0, %v1976
    %v1978 = vpop.f32.mrb[0].mxu0
    %1979 = vmatprep.mubr.f32.mxu0 0.0
    %1980 = vmatmul.mubr.f32.gmra.mrb[0].mxu0 %v569
    %v1981 = vpop.f32.mrb[0].mxu0
    %v1982 = vadd.f32 0.0, %v1981
    %v1983 = vpop.f32.mrb[0].mxu0
    %1984 = vmatprep.mubr.f32.mxu0 0.0
    %1985 = vmatmul.mubr.f32.gmra.mrb[0].mxu0 %v572
    %v1986 = vpop.f32.mrb[0].mxu0
    %v1987 = vadd.f32 0.0, %v1986
    %v1988 = vpop.f32.mrb[0].mxu0
    %1989 = vdwg.mxu0
    %1990 = vxpose.xlu0.b32.start [1/16] %v1901, 128
    %1991 = vxpose.xlu0.b32.cont [2/16] %v1902, 128
    %1992 = vxpose.xlu0.b32.cont [3/16] %v1903, 128
    %1993 = vxpose.xlu0.b32.cont [4/16] %v1904, 128
    %1994 = vxpose.xlu0.b32.cont [5/16] 0.0, 128
    %1995 = vxpose.xlu0.b32.cont [6/16] 0.0, 128
    %1996 = vxpose.xlu0.b32.cont [7/16] 0.0, 128
    %1997 = vxpose.xlu0.b32.cont [8/16] 0.0, 128
    %1998 = vxpose.xlu0.b32.cont [9/16] 0.0, 128
    %1999 = vxpose.xlu0.b32.cont [10/16] 0.0, 128
    %2000 = vxpose.xlu0.b32.cont [11/16] 0.0, 128
    %2001 = vxpose.xlu0.b32.cont [12/16] 0.0, 128
    %2002 = vxpose.xlu0.b32.cont [13/16] 0.0, 128
    %2003 = vxpose.xlu0.b32.cont [14/16] 0.0, 128
    %2004 = vxpose.xlu0.b32.cont [15/16] 0.0, 128
    %2005 = vxpose.xlu0.b32.end [16/16] 0.0, 128
    %v2006 = vpop.trf.xlu0
    %v2007 = vpop.trf.xlu0
    %v2008 = vpop.trf.xlu0
    %v2009 = vpop.trf.xlu0
    %v2010 = vpop.trf.xlu0
    %v2011 = vpop.trf.xlu0
    %v2012 = vpop.trf.xlu0
    %v2013 = vpop.trf.xlu0
    %v2014 = vpop.trf.xlu0
    %v2015 = vpop.trf.xlu0
    %v2016 = vpop.trf.xlu0
    %v2017 = vpop.trf.xlu0
    %v2018 = vpop.trf.xlu0
    %v2019 = vpop.trf.xlu0
    %v2020 = vpop.trf.xlu0
    %v2021 = vpop.trf.xlu0
    %v2023 = vsel %vm561, %v2006, 0
    %v2026 = vsel %vm561, %v2007, 0
    %v2029 = vsel %vm561, %v2008, 0
    %v2032 = vsel %vm561, %v2009, 0
    %v2035 = vsel %vm561, %v2010, 0
    %v2038 = vsel %vm561, %v2011, 0
    %v2041 = vsel %vm561, %v2012, 0
    %v2044 = vsel %vm561, %v2013, 0
    %v2047 = vsel %vm561, %v2014, 0
    %v2050 = vsel %vm561, %v2015, 0
    %v2053 = vsel %vm561, %v2016, 0
    %v2056 = vsel %vm561, %v2017, 0
    %v2059 = vsel %vm561, %v2018, 0
    %v2062 = vsel %vm561, %v2019, 0
    %v2065 = vsel %vm561, %v2020, 0
    %v2068 = vsel %vm561, %v2021, 0
    %2070 = vmatprep.subr.mxu0 %v1972
    %2071 = vmatpush1.msra.mxu0 %v1193
    %2072 = vmatprep.subr.mxu0 %v1977
    %2073 = vmatpush1.msra.mxu0 %v1194
    %2074 = vmatprep.subr.mxu0 %v1982
    %2075 = vmatpush1.msra.mxu0 %v1195
    %2076 = vmatprep.subr.mxu0 %v1987
    %2077 = vmatpush1.msra.mxu0 %v1196
    %2078 = vmatprep.subr.mxu0 0.0
    %2079 = vmatpush1.msra.mxu0 0.0
    %2080 = vmatprep.subr.mxu0 0.0
    %2081 = vmatpush1.msra.mxu0 0.0
    %2082 = vmatprep.subr.mxu0 0.0
    %2083 = vmatpush1.msra.mxu0 0.0
    %2084 = vmatprep.subr.mxu0 0.0
    %2085 = vmatpush1.msra.mxu0 0.0
    %2086 = vmatprep.subr.mxu0 0.0
    %2087 = vmatpush1.msra.mxu0 0.0
    %2088 = vmatprep.subr.mxu0 0.0
    %2089 = vmatpush1.msra.mxu0 0.0
    %2090 = vmatprep.subr.mxu0 0.0
    %2091 = vmatpush1.msra.mxu0 0.0
    %2092 = vmatprep.subr.mxu0 0.0
    %2093 = vmatpush1.msra.mxu0 0.0
    %2094 = vmatprep.subr.mxu0 0.0
    %2095 = vmatpush1.msra.mxu0 0.0
    %2096 = vmatprep.subr.mxu0 0.0
    %2097 = vmatpush1.msra.mxu0 0.0
    %2098 = vmatprep.subr.mxu0 0.0
    %2099 = vmatpush1.msra.mxu0 0.0
    %2100 = vmatprep.subr.mxu0 0.0
    %2101 = vmatpush1.msra.mxu0 0.0
    %2102 = vmatprep.subr.mxu0 0.0
    %2103 = vmatpush1.msra.mxu0 0.0
    %2104 = vmatprep.subr.mxu0 0.0
    %2105 = vmatpush1.msra.mxu0 0.0
    %2106 = vmatprep.subr.mxu0 0.0
    %2107 = vmatpush1.msra.mxu0 0.0
    %2108 = vmatprep.subr.mxu0 0.0
    %2109 = vmatpush1.msra.mxu0 0.0
    %2110 = vmatprep.subr.mxu0 0.0
    %2111 = vmatpush1.msra.mxu0 0.0
    %2112 = vmatprep.subr.mxu0 0.0
    %2113 = vmatpush1.msra.mxu0 0.0
    %2114 = vmatprep.subr.mxu0 0.0
    %2115 = vmatpush1.msra.mxu0 0.0
    %2116 = vmatprep.subr.mxu0 0.0
    %2117 = vmatpush1.msra.mxu0 0.0
    %2118 = vmatprep.subr.mxu0 0.0
    %2119 = vmatpush1.msra.mxu0 0.0
    %2120 = vmatprep.subr.mxu0 0.0
    %2121 = vmatpush1.msra.mxu0 0.0
    %2122 = vmatprep.subr.mxu0 0.0
    %2123 = vmatpush1.msra.mxu0 0.0
    %2124 = vmatprep.subr.mxu0 0.0
    %2125 = vmatpush1.msra.mxu0 0.0
    %2126 = vmatprep.subr.mxu0 0.0
    %2127 = vmatpush1.msra.mxu0 0.0
    %2128 = vmatprep.subr.mxu0 0.0
    %2129 = vmatpush1.msra.mxu0 0.0
    %2130 = vmatprep.subr.mxu0 0.0
    %2131 = vmatpush1.msra.mxu0 0.0
    %2132 = vmatprep.subr.mxu0 0.0
    %2133 = vmatpush1.msra.mxu0 0.0
    %2134 = vmatprep.mubr.f32.mxu0 0.0
    %2135 = vmatmul.mubr.f32.gmra.mrb[0].mxu0 %v2023
    %v2136 = vpop.f32.mrb[0].mxu0
    %v2137 = vadd.f32 0.0, %v2136
    %v2138 = vpop.f32.mrb[0].mxu0
    %v2139 = vadd.f32 0.0, %v2138
    %2140 = vmatprep.mubr.f32.mxu0 0.0
    %2141 = vmatmul.mubr.f32.gmra.mrb[0].mxu0 %v2026
    %v2142 = vpop.f32.mrb[0].mxu0
    %v2143 = vadd.f32 0.0, %v2142
    %v2144 = vpop.f32.mrb[0].mxu0
    %v2145 = vadd.f32 0.0, %v2144
    %2146 = vmatprep.mubr.f32.mxu0 0.0
    %2147 = vmatmul.mubr.f32.gmra.mrb[0].mxu0 %v2029
    %v2148 = vpop.f32.mrb[0].mxu0
    %v2149 = vadd.f32 0.0, %v2148
    %v2150 = vpop.f32.mrb[0].mxu0
    %v2151 = vadd.f32 0.0, %v2150
    %2152 = vmatprep.mubr.f32.mxu0 0.0
    %2153 = vmatmul.mubr.f32.gmra.mrb[0].mxu0 %v2032
    %v2154 = vpop.f32.mrb[0].mxu0
    %v2155 = vadd.f32 0.0, %v2154
    %v2156 = vpop.f32.mrb[0].mxu0
    %v2157 = vadd.f32 0.0, %v2156
    %2158 = vmatprep.mubr.f32.mxu0 0.0
    %2159 = vmatmul.mubr.f32.gmra.mrb[0].mxu0 %v2035
    %v2160 = vpop.f32.mrb[0].mxu0
    %v2161 = vadd.f32 0.0, %v2160
    %v2162 = vpop.f32.mrb[0].mxu0
    %v2163 = vadd.f32 0.0, %v2162
    %2164 = vmatprep.mubr.f32.mxu0 0.0
    %2165 = vmatmul.mubr.f32.gmra.mrb[0].mxu0 %v2038
    %v2166 = vpop.f32.mrb[0].mxu0
    %v2167 = vadd.f32 0.0, %v2166
    %v2168 = vpop.f32.mrb[0].mxu0
    %v2169 = vadd.f32 0.0, %v2168
    %2170 = vmatprep.mubr.f32.mxu0 0.0
    %2171 = vmatmul.mubr.f32.gmra.mrb[0].mxu0 %v2041
    %v2172 = vpop.f32.mrb[0].mxu0
    %v2173 = vadd.f32 0.0, %v2172
    %v2174 = vpop.f32.mrb[0].mxu0
    %v2175 = vadd.f32 0.0, %v2174
    %2176 = vmatprep.mubr.f32.mxu0 0.0
    %2177 = vmatmul.mubr.f32.gmra.mrb[0].mxu0 %v2044
    %v2178 = vpop.f32.mrb[0].mxu0
    %v2179 = vadd.f32 0.0, %v2178
    %v2180 = vpop.f32.mrb[0].mxu0
    %v2181 = vadd.f32 0.0, %v2180
    %2182 = vmatprep.mubr.f32.mxu0 0.0
    %2183 = vmatmul.mubr.f32.gmra.mrb[0].mxu0 %v2047
    %v2184 = vpop.f32.mrb[0].mxu0
    %v2185 = vadd.f32 0.0, %v2184
    %v2186 = vpop.f32.mrb[0].mxu0
    %v2187 = vadd.f32 0.0, %v2186
    %2188 = vmatprep.mubr.f32.mxu0 0.0
    %2189 = vmatmul.mubr.f32.gmra.mrb[0].mxu0 %v2050
    %v2190 = vpop.f32.mrb[0].mxu0
    %v2191 = vadd.f32 0.0, %v2190
    %v2192 = vpop.f32.mrb[0].mxu0
    %v2193 = vadd.f32 0.0, %v2192
    %2194 = vmatprep.mubr.f32.mxu0 0.0
    %2195 = vmatmul.mubr.f32.gmra.mrb[0].mxu0 %v2053
    %v2196 = vpop.f32.mrb[0].mxu0
    %v2197 = vadd.f32 0.0, %v2196
    %v2198 = vpop.f32.mrb[0].mxu0
    %v2199 = vadd.f32 0.0, %v2198
    %2200 = vmatprep.mubr.f32.mxu0 0.0
    %2201 = vmatmul.mubr.f32.gmra.mrb[0].mxu0 %v2056
    %v2202 = vpop.f32.mrb[0].mxu0
    %v2203 = vadd.f32 0.0, %v2202
    %v2204 = vpop.f32.mrb[0].mxu0
    %v2205 = vadd.f32 0.0, %v2204
    %2206 = vmatprep.mubr.f32.mxu0 0.0
    %2207 = vmatmul.mubr.f32.gmra.mrb[0].mxu0 %v2059
    %v2208 = vpop.f32.mrb[0].mxu0
    %v2209 = vadd.f32 0.0, %v2208
    %v2210 = vpop.f32.mrb[0].mxu0
    %v2211 = vadd.f32 0.0, %v2210
    %2212 = vmatprep.mubr.f32.mxu0 0.0
    %2213 = vmatmul.mubr.f32.gmra.mrb[0].mxu0 %v2062
    %v2214 = vpop.f32.mrb[0].mxu0
    %v2215 = vadd.f32 0.0, %v2214
    %v2216 = vpop.f32.mrb[0].mxu0
    %v2217 = vadd.f32 0.0, %v2216
    %2218 = vmatprep.mubr.f32.mxu0 0.0
    %2219 = vmatmul.mubr.f32.gmra.mrb[0].mxu0 %v2065
    %v2220 = vpop.f32.mrb[0].mxu0
    %v2221 = vadd.f32 0.0, %v2220
    %v2222 = vpop.f32.mrb[0].mxu0
    %v2223 = vadd.f32 0.0, %v2222
    %2224 = vmatprep.mubr.f32.mxu0 0.0
    %2225 = vmatmul.mubr.f32.gmra.mrb[0].mxu0 %v2068
    %v2226 = vpop.f32.mrb[0].mxu0
    %v2227 = vadd.f32 0.0, %v2226
    %v2228 = vpop.f32.mrb[0].mxu0
    %v2229 = vadd.f32 0.0, %v2228
    %2230 = vdwg.mxu0
    %v2231 = vmul.f32 %v2137, %v2137
    %v2232 = vmul.f32 %v2143, %v2143
    %v2233 = vmul.f32 %v2149, %v2149
    %v2234 = vmul.f32 %v2155, %v2155
    %v2235 = vmul.f32 %v2161, %v2161
    %v2236 = vmul.f32 %v2167, %v2167
    %v2237 = vmul.f32 %v2173, %v2173
    %v2238 = vmul.f32 %v2179, %v2179
    %v2239 = vmul.f32 %v2185, %v2185
    %v2240 = vmul.f32 %v2191, %v2191
    %v2241 = vmul.f32 %v2197, %v2197
    %v2242 = vmul.f32 %v2203, %v2203
    %v2243 = vmul.f32 %v2209, %v2209
    %v2244 = vmul.f32 %v2215, %v2215
    %v2245 = vmul.f32 %v2221, %v2221
    %v2246 = vmul.f32 %v2227, %v2227
    %2247 = vadd.xlane.f32.xlu0 %v2231
    %v2248 = vpop.xlane.xlu0 %2247
    %2249 = vadd.xlane.f32.xlu0 %v2232
    %v2250 = vpop.xlane.xlu0 %2249
    %2251 = vadd.xlane.f32.xlu0 %v2233
    %v2252 = vpop.xlane.xlu0 %2251
    %2253 = vadd.xlane.f32.xlu0 %v2234
    %v2254 = vpop.xlane.xlu0 %2253
    %2255 = vadd.xlane.f32.xlu0 %v2235
    %v2256 = vpop.xlane.xlu0 %2255
    %2257 = vadd.xlane.f32.xlu0 %v2236
    %v2258 = vpop.xlane.xlu0 %2257
    %2259 = vadd.xlane.f32.xlu0 %v2237
    %v2260 = vpop.xlane.xlu0 %2259
    %2261 = vadd.xlane.f32.xlu0 %v2238
    %v2262 = vpop.xlane.xlu0 %2261
    %2263 = vadd.xlane.f32.xlu0 %v2239
    %v2264 = vpop.xlane.xlu0 %2263
    %2265 = vadd.xlane.f32.xlu0 %v2240
    %v2266 = vpop.xlane.xlu0 %2265
    %2267 = vadd.xlane.f32.xlu0 %v2241
    %v2268 = vpop.xlane.xlu0 %2267
    %2269 = vadd.xlane.f32.xlu0 %v2242
    %v2270 = vpop.xlane.xlu0 %2269
    %2271 = vadd.xlane.f32.xlu0 %v2243
    %v2272 = vpop.xlane.xlu0 %2271
    %2273 = vadd.xlane.f32.xlu0 %v2244
    %v2274 = vpop.xlane.xlu0 %2273
    %2275 = vadd.xlane.f32.xlu0 %v2245
    %v2276 = vpop.xlane.xlu0 %2275
    %2277 = vadd.xlane.f32.xlu0 %v2246
    %v2278 = vpop.xlane.xlu0 %2277
    %v2279 = vmul.f32 %v2137, 2.0
    %v2280 = vmul.f32 %v2143, 2.0
    %v2281 = vmul.f32 %v2149, 2.0
    %v2282 = vmul.f32 %v2155, 2.0
    %v2283 = vmul.f32 %v2161, 2.0
    %v2284 = vmul.f32 %v2167, 2.0
    %v2285 = vmul.f32 %v2173, 2.0
    %v2286 = vmul.f32 %v2179, 2.0
    %v2287 = vmul.f32 %v2185, 2.0
    %v2288 = vmul.f32 %v2191, 2.0
    %v2289 = vmul.f32 %v2197, 2.0
    %v2290 = vmul.f32 %v2203, 2.0
    %v2291 = vmul.f32 %v2209, 2.0
    %v2292 = vmul.f32 %v2215, 2.0
    %v2293 = vmul.f32 %v2221, 2.0
    %v2294 = vmul.f32 %v2227, 2.0
    %v2295 = vmul.f32 %v2279, %v2137
    %v2296 = vmul.f32 %v2280, %v2143
    %v2297 = vmul.f32 %v2281, %v2149
    %v2298 = vmul.f32 %v2282, %v2155
    %v2299 = vmul.f32 %v2283, %v2161
    %v2300 = vmul.f32 %v2284, %v2167
    %v2301 = vmul.f32 %v2285, %v2173
    %v2302 = vmul.f32 %v2286, %v2179
    %v2303 = vmul.f32 %v2287, %v2185
    %v2304 = vmul.f32 %v2288, %v2191
    %v2305 = vmul.f32 %v2289, %v2197
    %v2306 = vmul.f32 %v2290, %v2203
    %v2307 = vmul.f32 %v2291, %v2209
    %v2308 = vmul.f32 %v2292, %v2215
    %v2309 = vmul.f32 %v2293, %v2221
    %v2310 = vmul.f32 %v2294, %v2227
    %v2311 = vsub.f32 %v2248, %v2295
    %v2312 = vsub.f32 %v2250, %v2296
    %v2313 = vsub.f32 %v2252, %v2297
    %v2314 = vsub.f32 %v2254, %v2298
    %v2315 = vsub.f32 %v2256, %v2299
    %v2316 = vsub.f32 %v2258, %v2300
    %v2317 = vsub.f32 %v2260, %v2301
    %v2318 = vsub.f32 %v2262, %v2302
    %v2319 = vsub.f32 %v2264, %v2303
    %v2320 = vsub.f32 %v2266, %v2304
    %v2321 = vsub.f32 %v2268, %v2305
    %v2322 = vsub.f32 %v2270, %v2306
    %v2323 = vsub.f32 %v2272, %v2307
    %v2324 = vsub.f32 %v2274, %v2308
    %v2325 = vsub.f32 %v2276, %v2309
    %v2326 = vsub.f32 %v2278, %v2310
    %v2327 = vand.u32 2147483647, %v2311
    %v2328 = vand.u32 2147483647, %v2312
    %v2329 = vand.u32 2147483647, %v2313
    %v2330 = vand.u32 2147483647, %v2314
    %v2331 = vand.u32 2147483647, %v2315
    %v2332 = vand.u32 2147483647, %v2316
    %v2333 = vand.u32 2147483647, %v2317
    %v2334 = vand.u32 2147483647, %v2318
    %v2335 = vand.u32 2147483647, %v2319
    %v2336 = vand.u32 2147483647, %v2320
    %v2337 = vand.u32 2147483647, %v2321
    %v2338 = vand.u32 2147483647, %v2322
    %v2339 = vand.u32 2147483647, %v2323
    %v2340 = vand.u32 2147483647, %v2324
    %v2341 = vand.u32 2147483647, %v2325
    %v2342 = vand.u32 2147483647, %v2326
    %v2343 = vmax.f32 %v2327, 1e-08
    %v2344 = vmax.f32 %v2328, 1e-08
    %v2345 = vmax.f32 %v2329, 1e-08
    %v2346 = vmax.f32 %v2330, 1e-08
    %v2347 = vmax.f32 %v2331, 1e-08
    %v2348 = vmax.f32 %v2332, 1e-08
    %v2349 = vmax.f32 %v2333, 1e-08
    %v2350 = vmax.f32 %v2334, 1e-08
    %v2351 = vmax.f32 %v2335, 1e-08
    %v2352 = vmax.f32 %v2336, 1e-08
    %v2353 = vmax.f32 %v2337, 1e-08
    %v2354 = vmax.f32 %v2338, 1e-08
    %v2355 = vmax.f32 %v2339, 1e-08
    %v2356 = vmax.f32 %v2340, 1e-08
    %v2357 = vmax.f32 %v2341, 1e-08
    %v2358 = vmax.f32 %v2342, 1e-08
    %v2359 = vrsqrt.pop %v2343
    %v2360 = vrsqrt.pop %v2344
    %v2361 = vrsqrt.pop %v2345
    %v2362 = vrsqrt.pop %v2346
    %v2363 = vrsqrt.pop %v2347
    %v2364 = vrsqrt.pop %v2348
    %v2365 = vrsqrt.pop %v2349
    %v2366 = vrsqrt.pop %v2350
    %v2367 = vrsqrt.pop %v2351
    %v2368 = vrsqrt.pop %v2352
    %v2369 = vrsqrt.pop %v2353
    %v2370 = vrsqrt.pop %v2354
    %v2371 = vrsqrt.pop %v2355
    %v2372 = vrsqrt.pop %v2356
    %v2373 = vrsqrt.pop %v2357
    %v2374 = vrsqrt.pop %v2358
    %2376 = vset.pattern.permute.xlu0 0
    %2377 = vperm.xlu0 %2376, %v2359
    %v2378 = vpop.permute.xlu0 %2377
    %2381 = vset.pattern.permute.xlu0 0
    %2382 = vperm.xlu0 %2381, %v2360
    %v2383 = vpop.permute.xlu0 %2382
    %2386 = vset.pattern.permute.xlu0 0
    %2387 = vperm.xlu0 %2386, %v2361
    %v2388 = vpop.permute.xlu0 %2387
    %2391 = vset.pattern.permute.xlu0 0
    %2392 = vperm.xlu0 %2391, %v2362
    %v2393 = vpop.permute.xlu0 %2392
    %2396 = vset.pattern.permute.xlu0 0
    %2397 = vperm.xlu0 %2396, %v2363
    %v2398 = vpop.permute.xlu0 %2397
    %2401 = vset.pattern.permute.xlu0 0
    %2402 = vperm.xlu0 %2401, %v2364
    %v2403 = vpop.permute.xlu0 %2402
    %2406 = vset.pattern.permute.xlu0 0
    %2407 = vperm.xlu0 %2406, %v2365
    %v2408 = vpop.permute.xlu0 %2407
    %2411 = vset.pattern.permute.xlu0 0
    %2412 = vperm.xlu0 %2411, %v2366
    %v2413 = vpop.permute.xlu0 %2412
    %2416 = vset.pattern.permute.xlu0 0
    %2417 = vperm.xlu0 %2416, %v2367
    %v2418 = vpop.permute.xlu0 %2417
    %2421 = vset.pattern.permute.xlu0 0
    %2422 = vperm.xlu0 %2421, %v2368
    %v2423 = vpop.permute.xlu0 %2422
    %2426 = vset.pattern.permute.xlu0 0
    %2427 = vperm.xlu0 %2426, %v2369
    %v2428 = vpop.permute.xlu0 %2427
    %2431 = vset.pattern.permute.xlu0 0
    %2432 = vperm.xlu0 %2431, %v2370
    %v2433 = vpop.permute.xlu0 %2432
    %2436 = vset.pattern.permute.xlu0 0
    %2437 = vperm.xlu0 %2436, %v2371
    %v2438 = vpop.permute.xlu0 %2437
    %2441 = vset.pattern.permute.xlu0 0
    %2442 = vperm.xlu0 %2441, %v2372
    %v2443 = vpop.permute.xlu0 %2442
    %2446 = vset.pattern.permute.xlu0 0
    %2447 = vperm.xlu0 %2446, %v2373
    %v2448 = vpop.permute.xlu0 %2447
    %2451 = vset.pattern.permute.xlu0 0
    %2452 = vperm.xlu0 %2451, %v2374
    %v2453 = vpop.permute.xlu0 %2452
    %v2455 = vmul.f32 %v2137, %v2378
    %v2456 = vmul.f32 %v2143, %v2383
    %v2457 = vmul.f32 %v2149, %v2388
    %v2458 = vmul.f32 %v2155, %v2393
    %v2459 = vmul.f32 %v2161, %v2398
    %v2460 = vmul.f32 %v2167, %v2403
    %v2461 = vmul.f32 %v2173, %v2408
    %v2462 = vmul.f32 %v2179, %v2413
    %v2463 = vmul.f32 %v2185, %v2418
    %v2464 = vmul.f32 %v2191, %v2423
    %v2465 = vmul.f32 %v2197, %v2428
    %v2466 = vmul.f32 %v2203, %v2433
    %v2467 = vmul.f32 %v2209, %v2438
    %v2468 = vmul.f32 %v2215, %v2443
    %v2469 = vmul.f32 %v2221, %v2448
    %v2470 = vmul.f32 %v2227, %v2453
    %2471 = vst [vmem:[%s16] sm:$0xff] %v2455
    %2472 = vst [vmem:[%s16 + $0x8] sm:$0xff] %v2456
    %2473 = vst [vmem:[%s16 + $0x10] sm:$0xff] %v2457
    %2474 = vst [vmem:[%s16 + $0x18] sm:$0xff] %v2458
    %2475 = vst [vmem:[%s16 + $0x20] sm:$0xff] %v2459
    %2476 = vst [vmem:[%s16 + $0x28] sm:$0xff] %v2460
    %2477 = vst [vmem:[%s16 + $0x30] sm:$0xff] %v2461
    %2478 = vst [vmem:[%s16 + $0x38] sm:$0xff] %v2462
    %2479 = vst [vmem:[%s16 + $0x40] sm:$0xff] %v2463
    %2480 = vst [vmem:[%s16 + $0x48] sm:$0xff] %v2464
    %2481 = vst [vmem:[%s16 + $0x50] sm:$0xff] %v2465
    %2482 = vst [vmem:[%s16 + $0x58] sm:$0xff] %v2466
    %2483 = vst [vmem:[%s16 + $0x60] sm:$0xff] %v2467
    %2484 = vst [vmem:[%s16 + $0x68] sm:$0xff] %v2468
    %2485 = vst [vmem:[%s16 + $0x70] sm:$0xff] %v2469
    %2486 = vst [vmem:[%s16 + $0x78] sm:$0xff] %v2470
    %v2487 = vsel %vm192, 0.0, %v2139
    %v2488 = vsel %vm193, 0.0, %v2145
    %v2489 = vsel %vm194, 0.0, %v2151
    %v2490 = vsel %vm195, 0.0, %v2157
    %v2491 = vsel %vm196, 0.0, %v2163
    %v2492 = vsel %vm197, 0.0, %v2169
    %v2493 = vsel %vm198, 0.0, %v2175
    %v2494 = vsel %vm199, 0.0, %v2181
    %v2495 = vsel %vm200, 0.0, %v2187
    %v2496 = vsel %vm201, 0.0, %v2193
    %v2497 = vsel %vm202, 0.0, %v2199
    %v2498 = vsel %vm203, 0.0, %v2205
    %v2499 = vsel %vm204, 0.0, %v2211
    %v2500 = vsel %vm205, 0.0, %v2217
    %v2501 = vsel %vm206, 0.0, %v2223
    %v2502 = vsel %vm207, 0.0, %v2229
    %v2503 = vmul.f32 %v2487, 5.0
    %v2504 = vmul.f32 %v2488, 5.0
    %v2505 = vmul.f32 %v2489, 5.0
    %v2506 = vmul.f32 %v2490, 5.0
    %v2507 = vmul.f32 %v2491, 5.0
    %v2508 = vmul.f32 %v2492, 5.0
    %v2509 = vmul.f32 %v2493, 5.0
    %v2510 = vmul.f32 %v2494, 5.0
    %v2511 = vmul.f32 %v2495, 5.0
    %v2512 = vmul.f32 %v2496, 5.0
    %v2513 = vmul.f32 %v2497, 5.0
    %v2514 = vmul.f32 %v2498, 5.0
    %v2515 = vmul.f32 %v2499, 5.0
    %v2516 = vmul.f32 %v2500, 5.0
    %v2517 = vmul.f32 %v2501, 5.0
    %v2518 = vmul.f32 %v2502, 5.0
    %v2519 = vxor.u32 %v2503, 2147483648
    %v2520 = vxor.u32 %v2504, 2147483648
    %v2521 = vxor.u32 %v2505, 2147483648
    %v2522 = vxor.u32 %v2506, 2147483648
    %v2523 = vxor.u32 %v2507, 2147483648
    %v2524 = vxor.u32 %v2508, 2147483648
    %v2525 = vxor.u32 %v2509, 2147483648
    %v2526 = vxor.u32 %v2510, 2147483648
    %v2527 = vxor.u32 %v2511, 2147483648
    %v2528 = vxor.u32 %v2512, 2147483648
    %v2529 = vxor.u32 %v2513, 2147483648
    %v2530 = vxor.u32 %v2514, 2147483648
    %v2531 = vxor.u32 %v2515, 2147483648
    %v2532 = vxor.u32 %v2516, 2147483648
    %v2533 = vxor.u32 %v2517, 2147483648
    %v2534 = vxor.u32 %v2518, 2147483648
    %v2535 = vmul.f32 %v2519, 1.442695
    %v2536 = vpow.pop %v2535
    %v2537 = vmul.f32 %v2520, 1.442695
    %v2538 = vpow.pop %v2537
    %v2539 = vmul.f32 %v2521, 1.442695
    %v2540 = vpow.pop %v2539
    %v2541 = vmul.f32 %v2522, 1.442695
    %v2542 = vpow.pop %v2541
    %v2543 = vmul.f32 %v2523, 1.442695
    %v2544 = vpow.pop %v2543
    %v2545 = vmul.f32 %v2524, 1.442695
    %v2546 = vpow.pop %v2545
    %v2547 = vmul.f32 %v2525, 1.442695
    %v2548 = vpow.pop %v2547
    %v2549 = vmul.f32 %v2526, 1.442695
    %v2550 = vpow.pop %v2549
    %v2551 = vmul.f32 %v2527, 1.442695
    %v2552 = vpow.pop %v2551
    %v2553 = vmul.f32 %v2528, 1.442695
    %v2554 = vpow.pop %v2553
    %v2555 = vmul.f32 %v2529, 1.442695
    %v2556 = vpow.pop %v2555
    %v2557 = vmul.f32 %v2530, 1.442695
    %v2558 = vpow.pop %v2557
    %v2559 = vmul.f32 %v2531, 1.442695
    %v2560 = vpow.pop %v2559
    %v2561 = vmul.f32 %v2532, 1.442695
    %v2562 = vpow.pop %v2561
    %v2563 = vmul.f32 %v2533, 1.442695
    %v2564 = vpow.pop %v2563
    %v2565 = vmul.f32 %v2534, 1.442695
    %v2566 = vpow.pop %v2565
    %v2567 = vadd.f32 %v2536, 1.0
    %v2568 = vadd.f32 %v2538, 1.0
    %v2569 = vadd.f32 %v2540, 1.0
    %v2570 = vadd.f32 %v2542, 1.0
    %v2571 = vadd.f32 %v2544, 1.0
    %v2572 = vadd.f32 %v2546, 1.0
    %v2573 = vadd.f32 %v2548, 1.0
    %v2574 = vadd.f32 %v2550, 1.0
    %v2575 = vadd.f32 %v2552, 1.0
    %v2576 = vadd.f32 %v2554, 1.0
    %v2577 = vadd.f32 %v2556, 1.0
    %v2578 = vadd.f32 %v2558, 1.0
    %v2579 = vadd.f32 %v2560, 1.0
    %v2580 = vadd.f32 %v2562, 1.0
    %v2581 = vadd.f32 %v2564, 1.0
    %v2582 = vadd.f32 %v2566, 1.0
    %v2583 = vrcp.pop %v2567
    %v2584 = vmul.f32 1.0, %v2583
    %v2585 = vrcp.pop %v2568
    %v2586 = vmul.f32 1.0, %v2585
    %v2587 = vrcp.pop %v2569
    %v2588 = vmul.f32 1.0, %v2587
    %v2589 = vrcp.pop %v2570
    %v2590 = vmul.f32 1.0, %v2589
    %v2591 = vrcp.pop %v2571
    %v2592 = vmul.f32 1.0, %v2591
    %v2593 = vrcp.pop %v2572
    %v2594 = vmul.f32 1.0, %v2593
    %v2595 = vrcp.pop %v2573
    %v2596 = vmul.f32 1.0, %v2595
    %v2597 = vrcp.pop %v2574
    %v2598 = vmul.f32 1.0, %v2597
    %v2599 = vrcp.pop %v2575
    %v2600 = vmul.f32 1.0, %v2599
    %v2601 = vrcp.pop %v2576
    %v2602 = vmul.f32 1.0, %v2601
    %v2603 = vrcp.pop %v2577
    %v2604 = vmul.f32 1.0, %v2603
    %v2605 = vrcp.pop %v2578
    %v2606 = vmul.f32 1.0, %v2605
    %v2607 = vrcp.pop %v2579
    %v2608 = vmul.f32 1.0, %v2607
    %v2609 = vrcp.pop %v2580
    %v2610 = vmul.f32 1.0, %v2609
    %v2611 = vrcp.pop %v2581
    %v2612 = vmul.f32 1.0, %v2611
    %v2613 = vrcp.pop %v2582
    %v2614 = vmul.f32 1.0, %v2613
    %vm2615 = vcmp.ge.s32.totalorder %v175, 1
    %vm2616 = vcmp.ge.s32.totalorder %v176, 1
    %vm2617 = vcmp.ge.s32.totalorder %v177, 1
    %vm2618 = vcmp.ge.s32.totalorder %v178, 1
    %vm2619 = vcmp.ge.s32.totalorder %v179, 1
    %vm2620 = vcmp.ge.s32.totalorder %v180, 1
    %vm2621 = vcmp.ge.s32.totalorder %v181, 1
    %vm2622 = vcmp.ge.s32.totalorder %v182, 1
    %vm2623 = vcmp.ge.s32.totalorder %v183, 1
    %vm2624 = vcmp.ge.s32.totalorder %v184, 1
    %vm2625 = vcmp.ge.s32.totalorder %v185, 1
    %vm2626 = vcmp.ge.s32.totalorder %v186, 1
    %vm2627 = vcmp.ge.s32.totalorder %v187, 1
    %vm2628 = vcmp.ge.s32.totalorder %v188, 1
    %vm2629 = vcmp.ge.s32.totalorder %v189, 1
    %vm2630 = vcmp.ge.s32.totalorder %v190, 1
    %vm2631 = vcmp.le.s32.totalorder %v175, 10
    %vm2632 = vcmp.le.s32.totalorder %v176, 10
    %vm2633 = vcmp.le.s32.totalorder %v177, 10
    %vm2634 = vcmp.le.s32.totalorder %v178, 10
    %vm2635 = vcmp.le.s32.totalorder %v179, 10
    %vm2636 = vcmp.le.s32.totalorder %v180, 10
    %vm2637 = vcmp.le.s32.totalorder %v181, 10
    %vm2638 = vcmp.le.s32.totalorder %v182, 10
    %vm2639 = vcmp.le.s32.totalorder %v183, 10
    %vm2640 = vcmp.le.s32.totalorder %v184, 10
    %vm2641 = vcmp.le.s32.totalorder %v185, 10
    %vm2642 = vcmp.le.s32.totalorder %v186, 10
    %vm2643 = vcmp.le.s32.totalorder %v187, 10
    %vm2644 = vcmp.le.s32.totalorder %v188, 10
    %vm2645 = vcmp.le.s32.totalorder %v189, 10
    %vm2646 = vcmp.le.s32.totalorder %v190, 10
    %vm2647 = vmand %vm2615, %vm2631
    %vm2648 = vmand %vm2616, %vm2632
    %vm2649 = vmand %vm2617, %vm2633
    %vm2650 = vmand %vm2618, %vm2634
    %vm2651 = vmand %vm2619, %vm2635
    %vm2652 = vmand %vm2620, %vm2636
    %vm2653 = vmand %vm2621, %vm2637
    %vm2654 = vmand %vm2622, %vm2638
    %vm2655 = vmand %vm2623, %vm2639
    %vm2656 = vmand %vm2624, %vm2640
    %vm2657 = vmand %vm2625, %vm2641
    %vm2658 = vmand %vm2626, %vm2642
    %vm2659 = vmand %vm2627, %vm2643
    %vm2660 = vmand %vm2628, %vm2644
    %vm2661 = vmand %vm2629, %vm2645
    %vm2662 = vmand %vm2630, %vm2646
    %vm2663 = vmand %vm2647, %vm1854
    %vm2664 = vmand %vm2648, %vm1854
    %vm2665 = vmand %vm2649, %vm1854
    %vm2666 = vmand %vm2650, %vm1854
    %vm2667 = vmand %vm2651, %vm1854
    %vm2668 = vmand %vm2652, %vm1854
    %vm2669 = vmand %vm2653, %vm1854
    %vm2670 = vmand %vm2654, %vm1854
    %vm2671 = vmand %vm2655, %vm1854
    %vm2672 = vmand %vm2656, %vm1854
    %vm2673 = vmand %vm2657, %vm1854
    %vm2674 = vmand %vm2658, %vm1854
    %vm2675 = vmand %vm2659, %vm1854
    %vm2676 = vmand %vm2660, %vm1854
    %vm2677 = vmand %vm2661, %vm1854
    %vm2678 = vmand %vm2662, %vm1854
    %vm2679 = vmand %vm2663, %vm1855
    %vm2680 = vmand %vm2664, %vm1855
    %vm2681 = vmand %vm2665, %vm1855
    %vm2682 = vmand %vm2666, %vm1855
    %vm2683 = vmand %vm2667, %vm1855
    %vm2684 = vmand %vm2668, %vm1855
    %vm2685 = vmand %vm2669, %vm1855
    %vm2686 = vmand %vm2670, %vm1855
    %vm2687 = vmand %vm2671, %vm1855
    %vm2688 = vmand %vm2672, %vm1855
    %vm2689 = vmand %vm2673, %vm1855
    %vm2690 = vmand %vm2674, %vm1855
    %vm2691 = vmand %vm2675, %vm1855
    %vm2692 = vmand %vm2676, %vm1855
    %vm2693 = vmand %vm2677, %vm1855
    %vm2694 = vmand %vm2678, %vm1855
    %v2695 = vsel %vm2679, %v2584, 0.0
    %v2696 = vsel %vm2680, %v2586, 0.0
    %v2697 = vsel %vm2681, %v2588, 0.0
    %v2698 = vsel %vm2682, %v2590, 0.0
    %v2699 = vsel %vm2683, %v2592, 0.0
    %v2700 = vsel %vm2684, %v2594, 0.0
    %v2701 = vsel %vm2685, %v2596, 0.0
    %v2702 = vsel %vm2686, %v2598, 0.0
    %v2703 = vsel %vm2687, %v2600, 0.0
    %v2704 = vsel %vm2688, %v2602, 0.0
    %v2705 = vsel %vm2689, %v2604, 0.0
    %v2706 = vsel %vm2690, %v2606, 0.0
    %v2707 = vsel %vm2691, %v2608, 0.0
    %v2708 = vsel %vm2692, %v2610, 0.0
    %v2709 = vsel %vm2693, %v2612, 0.0
    %v2710 = vsel %vm2694, %v2614, 0.0
    %2711 = vmax.xlane.f32.xlu0 %v1901
    %v2712 = vpop.xlane.xlu0 %2711
    %2713 = vmax.xlane.f32.xlu0 %v1902
    %v2714 = vpop.xlane.xlu0 %2713
    %2715 = vmax.xlane.f32.xlu0 %v1903
    %v2716 = vpop.xlane.xlu0 %2715
    %2717 = vmax.xlane.f32.xlu0 %v1904
    %v2718 = vpop.xlane.xlu0 %2717
    %vm2719 = vcmp.ge.f32.partialorder %v1901, %v2712
    %vm2720 = vcmp.ge.f32.partialorder %v1902, %v2714
    %vm2721 = vcmp.ge.f32.partialorder %v1903, %v2716
    %vm2722 = vcmp.ge.f32.partialorder %v1904, %v2718
    %v2723 = vsel %vm2719, %v173, 128
    %v2724 = vsel %vm2720, %v173, 128
    %v2725 = vsel %vm2721, %v173, 128
    %v2726 = vsel %vm2722, %v173, 128
    %v2727 = vand.u32 %v2723, 65535
    %v2728 = vshra.s32 %v2723, 16
    %v2729 = vcvt.s32.f32 %v2727
    %v2730 = vcvt.s32.f32 %v2728
    %2731 = vmin.xlane.f32.xlu0 %v2730
    %v2732 = vpop.xlane.xlu0 %2731
    %vm2733 = vcmp.eq.f32.partialorder %v2730, %v2732
    %v2734 = vsel %vm2733, %v2729, inf
    %2735 = vmin.xlane.f32.xlu0 %v2734
    %v2736 = vpop.xlane.xlu0 %2735
    %v2737 = vcvt.f32.s32 %v2736
    %v2738 = vcvt.f32.s32 %v2732
    %v2739 = vshll.u32 %v2738, 16
    %v2740 = vadd.s32 %v2739, %v2737
    %v2741 = vand.u32 %v2724, 65535
    %v2742 = vshra.s32 %v2724, 16
    %v2743 = vcvt.s32.f32 %v2741
    %v2744 = vcvt.s32.f32 %v2742
    %2745 = vmin.xlane.f32.xlu0 %v2744
    %v2746 = vpop.xlane.xlu0 %2745
    %vm2747 = vcmp.eq.f32.partialorder %v2744, %v2746
    %v2748 = vsel %vm2747, %v2743, inf
    %2749 = vmin.xlane.f32.xlu0 %v2748
    %v2750 = vpop.xlane.xlu0 %2749
    %v2751 = vcvt.f32.s32 %v2750
    %v2752 = vcvt.f32.s32 %v2746
    %v2753 = vshll.u32 %v2752, 16
    %v2754 = vadd.s32 %v2753, %v2751
    %v2755 = vand.u32 %v2725, 65535
    %v2756 = vshra.s32 %v2725, 16
    %v2757 = vcvt.s32.f32 %v2755
    %v2758 = vcvt.s32.f32 %v2756
    %2759 = vmin.xlane.f32.xlu0 %v2758
    %v2760 = vpop.xlane.xlu0 %2759
    %vm2761 = vcmp.eq.f32.partialorder %v2758, %v2760
    %v2762 = vsel %vm2761, %v2757, inf
    %2763 = vmin.xlane.f32.xlu0 %v2762
    %v2764 = vpop.xlane.xlu0 %2763
    %v2765 = vcvt.f32.s32 %v2764
    %v2766 = vcvt.f32.s32 %v2760
    %v2767 = vshll.u32 %v2766, 16
    %v2768 = vadd.s32 %v2767, %v2765
    %v2769 = vand.u32 %v2726, 65535
    %v2770 = vshra.s32 %v2726, 16
    %v2771 = vcvt.s32.f32 %v2769
    %v2772 = vcvt.s32.f32 %v2770
    %2773 = vmin.xlane.f32.xlu0 %v2772
    %v2774 = vpop.xlane.xlu0 %2773
    %vm2775 = vcmp.eq.f32.partialorder %v2772, %v2774
    %v2776 = vsel %vm2775, %v2771, inf
    %2777 = vmin.xlane.f32.xlu0 %v2776
    %v2778 = vpop.xlane.xlu0 %2777
    %v2779 = vcvt.f32.s32 %v2778
    %v2780 = vcvt.f32.s32 %v2774
    %v2781 = vshll.u32 %v2780, 16
    %v2782 = vadd.s32 %v2781, %v2779
    %vm2783 = vcmp.eq.s32.totalorder %v173, %v2740
    %vm2784 = vcmp.eq.s32.totalorder %v173, %v2754
    %vm2785 = vcmp.eq.s32.totalorder %v173, %v2768
    %vm2786 = vcmp.eq.s32.totalorder %v173, %v2782
    %v2787 = vsel %vm2783, 1.0, 0.0
    %v2788 = vsel %vm2784, 1.0, 0.0
    %v2789 = vsel %vm2785, 1.0, 0.0
    %v2790 = vsel %vm2786, 1.0, 0.0
    %2791 = vst [vmem:[%s19] sm:$0xff] %v2787
    %2792 = vst [vmem:[%s19 + $0x8] sm:$0xff] %v2788
    %2793 = vst [vmem:[%s19 + $0x10] sm:$0xff] %v2789
    %2794 = vst [vmem:[%s19 + $0x18] sm:$0xff] %v2790
    %v2795 = vld [vmem:[#allocation12] sm:$0xff]
    %v2796 = vld [vmem:[#allocation12 + $0x8] sm:$0xff]
    %v2797 = vld [vmem:[#allocation12 + $0x10] sm:$0xff]
    %v2798 = vld [vmem:[#allocation12 + $0x18] sm:$0xff]
    %v2799 = vld [vmem:[#allocation12 + $0x20] sm:$0xff]
    %v2800 = vld [vmem:[#allocation12 + $0x28] sm:$0xff]
    %v2801 = vld [vmem:[#allocation12 + $0x30] sm:$0xff]
    %v2802 = vld [vmem:[#allocation12 + $0x38] sm:$0xff]
    %v2803 = vld [vmem:[#allocation12 + $0x40] sm:$0xff]
    %v2804 = vld [vmem:[#allocation12 + $0x48] sm:$0xff]
    %v2805 = vld [vmem:[#allocation12 + $0x50] sm:$0xff]
    %v2806 = vld [vmem:[#allocation12 + $0x58] sm:$0xff]
    %v2807 = vld [vmem:[#allocation12 + $0x60] sm:$0xff]
    %v2808 = vld [vmem:[#allocation12 + $0x68] sm:$0xff]
    %v2809 = vld [vmem:[#allocation12 + $0x70] sm:$0xff]
    %v2810 = vld [vmem:[#allocation12 + $0x78] sm:$0xff]
    %v2811 = vld [vmem:[#allocation14] sm:$0x1]
    %v2813 = vlaneseq
    %v2814 = vshrl.u32 %v2813, 7
    %v2815 = vsub.s32 0, %v2814
    %v2816 = vrot.slane %v2811, %v2815
    %2818 = vmatprep.subr.mxu0 0.0
    %2819 = vmatpush1.msra.mxu0 %v2795
    %2820 = vmatprep.subr.mxu0 0.0
    %2821 = vmatpush1.msra.mxu0 %v2796
    %2822 = vmatprep.subr.mxu0 0.0
    %2823 = vmatpush1.msra.mxu0 %v2797
    %2824 = vmatprep.subr.mxu0 0.0
    %2825 = vmatpush1.msra.mxu0 %v2798
    %2826 = vmatprep.subr.mxu0 0.0
    %2827 = vmatpush1.msra.mxu0 %v2799
    %2828 = vmatprep.subr.mxu0 0.0
    %2829 = vmatpush1.msra.mxu0 %v2800
    %2830 = vmatprep.subr.mxu0 0.0
    %2831 = vmatpush1.msra.mxu0 %v2801
    %2832 = vmatprep.subr.mxu0 0.0
    %2833 = vmatpush1.msra.mxu0 %v2802
    %2834 = vmatprep.subr.mxu0 0.0
    %2835 = vmatpush1.msra.mxu0 %v2803
    %2836 = vmatprep.subr.mxu0 0.0
    %2837 = vmatpush1.msra.mxu0 %v2804
    %2838 = vmatprep.subr.mxu0 0.0
    %2839 = vmatpush1.msra.mxu0 %v2805
    %2840 = vmatprep.subr.mxu0 0.0
    %2841 = vmatpush1.msra.mxu0 %v2806
    %2842 = vmatprep.subr.mxu0 0.0
    %2843 = vmatpush1.msra.mxu0 %v2807
    %2844 = vmatprep.subr.mxu0 0.0
    %2845 = vmatpush1.msra.mxu0 %v2808
    %2846 = vmatprep.subr.mxu0 0.0
    %2847 = vmatpush1.msra.mxu0 %v2809
    %2848 = vmatprep.subr.mxu0 0.0
    %2849 = vmatpush1.msra.mxu0 %v2810
    %2850 = vmatprep.subr.mxu0 0.0
    %2851 = vmatpush1.msra.mxu0 0.0
    %2852 = vmatprep.subr.mxu0 0.0
    %2853 = vmatpush1.msra.mxu0 0.0
    %2854 = vmatprep.subr.mxu0 0.0
    %2855 = vmatpush1.msra.mxu0 0.0
    %2856 = vmatprep.subr.mxu0 0.0
    %2857 = vmatpush1.msra.mxu0 0.0
    %2858 = vmatprep.subr.mxu0 0.0
    %2859 = vmatpush1.msra.mxu0 0.0
    %2860 = vmatprep.subr.mxu0 0.0
    %2861 = vmatpush1.msra.mxu0 0.0
    %2862 = vmatprep.subr.mxu0 0.0
    %2863 = vmatpush1.msra.mxu0 0.0
    %2864 = vmatprep.subr.mxu0 0.0
    %2865 = vmatpush1.msra.mxu0 0.0
    %2866 = vmatprep.subr.mxu0 0.0
    %2867 = vmatpush1.msra.mxu0 0.0
    %2868 = vmatprep.subr.mxu0 0.0
    %2869 = vmatpush1.msra.mxu0 0.0
    %2870 = vmatprep.subr.mxu0 0.0
    %2871 = vmatpush1.msra.mxu0 0.0
    %2872 = vmatprep.subr.mxu0 0.0
    %2873 = vmatpush1.msra.mxu0 0.0
    %2874 = vmatprep.subr.mxu0 0.0
    %2875 = vmatpush1.msra.mxu0 0.0
    %2876 = vmatprep.subr.mxu0 0.0
    %2877 = vmatpush1.msra.mxu0 0.0
    %2878 = vmatprep.subr.mxu0 0.0
    %2879 = vmatpush1.msra.mxu0 0.0
    %2880 = vmatprep.subr.mxu0 0.0
    %2881 = vmatpush1.msra.mxu0 0.0
    %2882 = vmatprep.mubr.f32.mxu0 0.0
    %2883 = vmatmul.mubr.f32.gmra.mrb[0].mxu0 %v2455
    %v2884 = vpop.f32.mrb[0].mxu0
    %v2885 = vadd.f32 %v2816, %v2884
    %v2886 = vpop.f32.mrb[0].mxu0
    %2887 = vmatprep.mubr.f32.mxu0 0.0
    %2888 = vmatmul.mubr.f32.gmra.mrb[0].mxu0 %v2456
    %v2889 = vpop.f32.mrb[0].mxu0
    %v2890 = vadd.f32 %v2816, %v2889
    %v2891 = vpop.f32.mrb[0].mxu0
    %2892 = vmatprep.mubr.f32.mxu0 0.0
    %2893 = vmatmul.mubr.f32.gmra.mrb[0].mxu0 %v2457
    %v2894 = vpop.f32.mrb[0].mxu0
    %v2895 = vadd.f32 %v2816, %v2894
    %v2896 = vpop.f32.mrb[0].mxu0
    %2897 = vmatprep.mubr.f32.mxu0 0.0
    %2898 = vmatmul.mubr.f32.gmra.mrb[0].mxu0 %v2458
    %v2899 = vpop.f32.mrb[0].mxu0
    %v2900 = vadd.f32 %v2816, %v2899
    %v2901 = vpop.f32.mrb[0].mxu0
    %2902 = vmatprep.mubr.f32.mxu0 0.0
    %2903 = vmatmul.mubr.f32.gmra.mrb[0].mxu0 %v2459
    %v2904 = vpop.f32.mrb[0].mxu0
    %v2905 = vadd.f32 %v2816, %v2904
    %v2906 = vpop.f32.mrb[0].mxu0
    %2907 = vmatprep.mubr.f32.mxu0 0.0
    %2908 = vmatmul.mubr.f32.gmra.mrb[0].mxu0 %v2460
    %v2909 = vpop.f32.mrb[0].mxu0
    %v2910 = vadd.f32 %v2816, %v2909
    %v2911 = vpop.f32.mrb[0].mxu0
    %2912 = vmatprep.mubr.f32.mxu0 0.0
    %2913 = vmatmul.mubr.f32.gmra.mrb[0].mxu0 %v2461
    %v2914 = vpop.f32.mrb[0].mxu0
    %v2915 = vadd.f32 %v2816, %v2914
    %v2916 = vpop.f32.mrb[0].mxu0
    %2917 = vmatprep.mubr.f32.mxu0 0.0
    %2918 = vmatmul.mubr.f32.gmra.mrb[0].mxu0 %v2462
    %v2919 = vpop.f32.mrb[0].mxu0
    %v2920 = vadd.f32 %v2816, %v2919
    %v2921 = vpop.f32.mrb[0].mxu0
    %2922 = vmatprep.mubr.f32.mxu0 0.0
    %2923 = vmatmul.mubr.f32.gmra.mrb[0].mxu0 %v2463
    %v2924 = vpop.f32.mrb[0].mxu0
    %v2925 = vadd.f32 %v2816, %v2924
    %v2926 = vpop.f32.mrb[0].mxu0
    %2927 = vmatprep.mubr.f32.mxu0 0.0
    %2928 = vmatmul.mubr.f32.gmra.mrb[0].mxu0 %v2464
    %v2929 = vpop.f32.mrb[0].mxu0
    %v2930 = vadd.f32 %v2816, %v2929
    %v2931 = vpop.f32.mrb[0].mxu0
    %2932 = vmatprep.mubr.f32.mxu0 0.0
    %2933 = vmatmul.mubr.f32.gmra.mrb[0].mxu0 %v2465
    %v2934 = vpop.f32.mrb[0].mxu0
    %v2935 = vadd.f32 %v2816, %v2934
    %v2936 = vpop.f32.mrb[0].mxu0
    %2937 = vmatprep.mubr.f32.mxu0 0.0
    %2938 = vmatmul.mubr.f32.gmra.mrb[0].mxu0 %v2466
    %v2939 = vpop.f32.mrb[0].mxu0
    %v2940 = vadd.f32 %v2816, %v2939
    %v2941 = vpop.f32.mrb[0].mxu0
    %2942 = vmatprep.mubr.f32.mxu0 0.0
    %2943 = vmatmul.mubr.f32.gmra.mrb[0].mxu0 %v2467
    %v2944 = vpop.f32.mrb[0].mxu0
    %v2945 = vadd.f32 %v2816, %v2944
    %v2946 = vpop.f32.mrb[0].mxu0
    %2947 = vmatprep.mubr.f32.mxu0 0.0
    %2948 = vmatmul.mubr.f32.gmra.mrb[0].mxu0 %v2468
    %v2949 = vpop.f32.mrb[0].mxu0
    %v2950 = vadd.f32 %v2816, %v2949
    %v2951 = vpop.f32.mrb[0].mxu0
    %2952 = vmatprep.mubr.f32.mxu0 0.0
    %2953 = vmatmul.mubr.f32.gmra.mrb[0].mxu0 %v2469
    %v2954 = vpop.f32.mrb[0].mxu0
    %v2955 = vadd.f32 %v2816, %v2954
    %v2956 = vpop.f32.mrb[0].mxu0
    %2957 = vmatprep.mubr.f32.mxu0 0.0
    %2958 = vmatmul.mubr.f32.gmra.mrb[0].mxu0 %v2470
    %v2959 = vpop.f32.mrb[0].mxu0
    %v2960 = vadd.f32 %v2816, %v2959
    %v2961 = vpop.f32.mrb[0].mxu0
    %2962 = vdwg.mxu0
    %v2963 = vxor.u32 %v2885, 2147483648
    %v2964 = vxor.u32 %v2890, 2147483648
    %v2965 = vxor.u32 %v2895, 2147483648
    %v2966 = vxor.u32 %v2900, 2147483648
    %v2967 = vxor.u32 %v2905, 2147483648
    %v2968 = vxor.u32 %v2910, 2147483648
    %v2969 = vxor.u32 %v2915, 2147483648
    %v2970 = vxor.u32 %v2920, 2147483648
    %v2971 = vxor.u32 %v2925, 2147483648
    %v2972 = vxor.u32 %v2930, 2147483648
    %v2973 = vxor.u32 %v2935, 2147483648
    %v2974 = vxor.u32 %v2940, 2147483648
    %v2975 = vxor.u32 %v2945, 2147483648
    %v2976 = vxor.u32 %v2950, 2147483648
    %v2977 = vxor.u32 %v2955, 2147483648
    %v2978 = vxor.u32 %v2960, 2147483648
    %v2979 = vmul.f32 %v2963, 1.442695
    %v2980 = vpow.pop %v2979
    %v2981 = vmul.f32 %v2964, 1.442695
    %v2982 = vpow.pop %v2981
    %v2983 = vmul.f32 %v2965, 1.442695
    %v2984 = vpow.pop %v2983
    %v2985 = vmul.f32 %v2966, 1.442695
    %v2986 = vpow.pop %v2985
    %v2987 = vmul.f32 %v2967, 1.442695
    %v2988 = vpow.pop %v2987
    %v2989 = vmul.f32 %v2968, 1.442695
    %v2990 = vpow.pop %v2989
    %v2991 = vmul.f32 %v2969, 1.442695
    %v2992 = vpow.pop %v2991
    %v2993 = vmul.f32 %v2970, 1.442695
    %v2994 = vpow.pop %v2993
    %v2995 = vmul.f32 %v2971, 1.442695
    %v2996 = vpow.pop %v2995
    %v2997 = vmul.f32 %v2972, 1.442695
    %v2998 = vpow.pop %v2997
    %v2999 = vmul.f32 %v2973, 1.442695
    %v3000 = vpow.pop %v2999
    %v3001 = vmul.f32 %v2974, 1.442695
    %v3002 = vpow.pop %v3001
    %v3003 = vmul.f32 %v2975, 1.442695
    %v3004 = vpow.pop %v3003
    %v3005 = vmul.f32 %v2976, 1.442695
    %v3006 = vpow.pop %v3005
    %v3007 = vmul.f32 %v2977, 1.442695
    %v3008 = vpow.pop %v3007
    %v3009 = vmul.f32 %v2978, 1.442695
    %v3010 = vpow.pop %v3009
    %v3011 = vadd.f32 %v2980, 1.0
    %v3012 = vadd.f32 %v2982, 1.0
    %v3013 = vadd.f32 %v2984, 1.0
    %v3014 = vadd.f32 %v2986, 1.0
    %v3015 = vadd.f32 %v2988, 1.0
    %v3016 = vadd.f32 %v2990, 1.0
    %v3017 = vadd.f32 %v2992, 1.0
    %v3018 = vadd.f32 %v2994, 1.0
    %v3019 = vadd.f32 %v2996, 1.0
    %v3020 = vadd.f32 %v2998, 1.0
    %v3021 = vadd.f32 %v3000, 1.0
    %v3022 = vadd.f32 %v3002, 1.0
    %v3023 = vadd.f32 %v3004, 1.0
    %v3024 = vadd.f32 %v3006, 1.0
    %v3025 = vadd.f32 %v3008, 1.0
    %v3026 = vadd.f32 %v3010, 1.0
    %v3027 = vrcp.pop %v3011
    %v3028 = vmul.f32 1.0, %v3027
    %v3029 = vrcp.pop %v3012
    %v3030 = vmul.f32 1.0, %v3029
    %v3031 = vrcp.pop %v3013
    %v3032 = vmul.f32 1.0, %v3031
    %v3033 = vrcp.pop %v3014
    %v3034 = vmul.f32 1.0, %v3033
    %v3035 = vrcp.pop %v3015
    %v3036 = vmul.f32 1.0, %v3035
    %v3037 = vrcp.pop %v3016
    %v3038 = vmul.f32 1.0, %v3037
    %v3039 = vrcp.pop %v3017
    %v3040 = vmul.f32 1.0, %v3039
    %v3041 = vrcp.pop %v3018
    %v3042 = vmul.f32 1.0, %v3041
    %v3043 = vrcp.pop %v3019
    %v3044 = vmul.f32 1.0, %v3043
    %v3045 = vrcp.pop %v3020
    %v3046 = vmul.f32 1.0, %v3045
    %v3047 = vrcp.pop %v3021
    %v3048 = vmul.f32 1.0, %v3047
    %v3049 = vrcp.pop %v3022
    %v3050 = vmul.f32 1.0, %v3049
    %v3051 = vrcp.pop %v3023
    %v3052 = vmul.f32 1.0, %v3051
    %v3053 = vrcp.pop %v3024
    %v3054 = vmul.f32 1.0, %v3053
    %v3055 = vrcp.pop %v3025
    %v3056 = vmul.f32 1.0, %v3055
    %v3057 = vrcp.pop %v3026
    %v3058 = vmul.f32 1.0, %v3057
    %v3059 = vmul.f32 %v3028, 10.0
    %v3060 = vmul.f32 %v3030, 10.0
    %v3061 = vmul.f32 %v3032, 10.0
    %v3062 = vmul.f32 %v3034, 10.0
    %v3063 = vmul.f32 %v3036, 10.0
    %v3064 = vmul.f32 %v3038, 10.0
    %v3065 = vmul.f32 %v3040, 10.0
    %v3066 = vmul.f32 %v3042, 10.0
    %v3067 = vmul.f32 %v3044, 10.0
    %v3068 = vmul.f32 %v3046, 10.0
    %v3069 = vmul.f32 %v3048, 10.0
    %v3070 = vmul.f32 %v3050, 10.0
    %v3071 = vmul.f32 %v3052, 10.0
    %v3072 = vmul.f32 %v3054, 10.0
    %v3073 = vmul.f32 %v3056, 10.0
    %v3074 = vmul.f32 %v3058, 10.0
    %v3075 = vadd.f32 %v3059, 1.1
    %v3076 = vadd.f32 %v3060, 1.1
    %v3077 = vadd.f32 %v3061, 1.1
    %v3078 = vadd.f32 %v3062, 1.1
    %v3079 = vadd.f32 %v3063, 1.1
    %v3080 = vadd.f32 %v3064, 1.1
    %v3081 = vadd.f32 %v3065, 1.1
    %v3082 = vadd.f32 %v3066, 1.1
    %v3083 = vadd.f32 %v3067, 1.1
    %v3084 = vadd.f32 %v3068, 1.1
    %v3085 = vadd.f32 %v3069, 1.1
    %v3086 = vadd.f32 %v3070, 1.1
    %v3087 = vadd.f32 %v3071, 1.1
    %v3088 = vadd.f32 %v3072, 1.1
    %v3089 = vadd.f32 %v3073, 1.1
    %v3090 = vadd.f32 %v3074, 1.1
    %v3091 = vmul.f32 %v2885, %v2885
    %v3092 = vmul.f32 %v2890, %v2890
    %v3093 = vmul.f32 %v2895, %v2895
    %v3094 = vmul.f32 %v2900, %v2900
    %v3095 = vmul.f32 %v2905, %v2905
    %v3096 = vmul.f32 %v2910, %v2910
    %v3097 = vmul.f32 %v2915, %v2915
    %v3098 = vmul.f32 %v2920, %v2920
    %v3099 = vmul.f32 %v2925, %v2925
    %v3100 = vmul.f32 %v2930, %v2930
    %v3101 = vmul.f32 %v2935, %v2935
    %v3102 = vmul.f32 %v2940, %v2940
    %v3103 = vmul.f32 %v2945, %v2945
    %v3104 = vmul.f32 %v2950, %v2950
    %v3105 = vmul.f32 %v2955, %v2955
    %v3106 = vmul.f32 %v2960, %v2960
    %3107 = vadd.xlane.f32.xlu0 %v3091
    %v3108 = vpop.xlane.xlu0 %3107
    %3109 = vadd.xlane.f32.xlu0 %v3092
    %v3110 = vpop.xlane.xlu0 %3109
    %3111 = vadd.xlane.f32.xlu0 %v3093
    %v3112 = vpop.xlane.xlu0 %3111
    %3113 = vadd.xlane.f32.xlu0 %v3094
    %v3114 = vpop.xlane.xlu0 %3113
    %3115 = vadd.xlane.f32.xlu0 %v3095
    %v3116 = vpop.xlane.xlu0 %3115
    %3117 = vadd.xlane.f32.xlu0 %v3096
    %v3118 = vpop.xlane.xlu0 %3117
    %3119 = vadd.xlane.f32.xlu0 %v3097
    %v3120 = vpop.xlane.xlu0 %3119
    %3121 = vadd.xlane.f32.xlu0 %v3098
    %v3122 = vpop.xlane.xlu0 %3121
    %3123 = vadd.xlane.f32.xlu0 %v3099
    %v3124 = vpop.xlane.xlu0 %3123
    %3125 = vadd.xlane.f32.xlu0 %v3100
    %v3126 = vpop.xlane.xlu0 %3125
    %3127 = vadd.xlane.f32.xlu0 %v3101
    %v3128 = vpop.xlane.xlu0 %3127
    %3129 = vadd.xlane.f32.xlu0 %v3102
    %v3130 = vpop.xlane.xlu0 %3129
    %3131 = vadd.xlane.f32.xlu0 %v3103
    %v3132 = vpop.xlane.xlu0 %3131
    %3133 = vadd.xlane.f32.xlu0 %v3104
    %v3134 = vpop.xlane.xlu0 %3133
    %3135 = vadd.xlane.f32.xlu0 %v3105
    %v3136 = vpop.xlane.xlu0 %3135
    %3137 = vadd.xlane.f32.xlu0 %v3106
    %v3138 = vpop.xlane.xlu0 %3137
    %v3139 = vsub.f32 %v3108, %v3091
    %v3140 = vsub.f32 %v3110, %v3092
    %v3141 = vsub.f32 %v3112, %v3093
    %v3142 = vsub.f32 %v3114, %v3094
    %v3143 = vsub.f32 %v3116, %v3095
    %v3144 = vsub.f32 %v3118, %v3096
    %v3145 = vsub.f32 %v3120, %v3097
    %v3146 = vsub.f32 %v3122, %v3098
    %v3147 = vsub.f32 %v3124, %v3099
    %v3148 = vsub.f32 %v3126, %v3100
    %v3149 = vsub.f32 %v3128, %v3101
    %v3150 = vsub.f32 %v3130, %v3102
    %v3151 = vsub.f32 %v3132, %v3103
    %v3152 = vsub.f32 %v3134, %v3104
    %v3153 = vsub.f32 %v3136, %v3105
    %v3154 = vsub.f32 %v3138, %v3106
    %v3155 = vmax.f32 %v3139, 1e-08
    %v3156 = vmax.f32 %v3140, 1e-08
    %v3157 = vmax.f32 %v3141, 1e-08
    %v3158 = vmax.f32 %v3142, 1e-08
    %v3159 = vmax.f32 %v3143, 1e-08
    %v3160 = vmax.f32 %v3144, 1e-08
    %v3161 = vmax.f32 %v3145, 1e-08
    %v3162 = vmax.f32 %v3146, 1e-08
    %v3163 = vmax.f32 %v3147, 1e-08
    %v3164 = vmax.f32 %v3148, 1e-08
    %v3165 = vmax.f32 %v3149, 1e-08
    %v3166 = vmax.f32 %v3150, 1e-08
    %v3167 = vmax.f32 %v3151, 1e-08
    %v3168 = vmax.f32 %v3152, 1e-08
    %v3169 = vmax.f32 %v3153, 1e-08
    %v3170 = vmax.f32 %v3154, 1e-08
    %v3171 = vmul.f32 %v3075, %v3075
    %v3172 = vmul.f32 %v3076, %v3076
    %v3173 = vmul.f32 %v3077, %v3077
    %v3174 = vmul.f32 %v3078, %v3078
    %v3175 = vmul.f32 %v3079, %v3079
    %v3176 = vmul.f32 %v3080, %v3080
    %v3177 = vmul.f32 %v3081, %v3081
    %v3178 = vmul.f32 %v3082, %v3082
    %v3179 = vmul.f32 %v3083, %v3083
    %v3180 = vmul.f32 %v3084, %v3084
    %v3181 = vmul.f32 %v3085, %v3085
    %v3182 = vmul.f32 %v3086, %v3086
    %v3183 = vmul.f32 %v3087, %v3087
    %v3184 = vmul.f32 %v3088, %v3088
    %v3185 = vmul.f32 %v3089, %v3089
    %v3186 = vmul.f32 %v3090, %v3090
    %v3187 = vsub.f32 %v3171, 1.0
    %v3188 = vsub.f32 %v3172, 1.0
    %v3189 = vsub.f32 %v3173, 1.0
    %v3190 = vsub.f32 %v3174, 1.0
    %v3191 = vsub.f32 %v3175, 1.0
    %v3192 = vsub.f32 %v3176, 1.0
    %v3193 = vsub.f32 %v3177, 1.0
    %v3194 = vsub.f32 %v3178, 1.0
    %v3195 = vsub.f32 %v3179, 1.0
    %v3196 = vsub.f32 %v3180, 1.0
    %v3197 = vsub.f32 %v3181, 1.0
    %v3198 = vsub.f32 %v3182, 1.0
    %v3199 = vsub.f32 %v3183, 1.0
    %v3200 = vsub.f32 %v3184, 1.0
    %v3201 = vsub.f32 %v3185, 1.0
    %v3202 = vsub.f32 %v3186, 1.0
    %v3203 = vrsqrt.pop %v3187
    %v3204 = vmul.f32 %v3187, %v3203
    %vm3205 = vcmp.eq.f32.partialorder %v3187, inf
    %v3206 = vsel %vm3205, %v3187, %v3204
    %vm3207 = vcmp.eq.f32.partialorder %v3187, 0.0
    %v3208 = vand.u32 %v3187, 2147483648
    %v3209 = vsel %vm3207, %v3208, %v3206
    %v3210 = vrsqrt.pop %v3188
    %v3211 = vmul.f32 %v3188, %v3210
    %vm3212 = vcmp.eq.f32.partialorder %v3188, inf
    %v3213 = vsel %vm3212, %v3188, %v3211
    %vm3214 = vcmp.eq.f32.partialorder %v3188, 0.0
    %v3215 = vand.u32 %v3188, 2147483648
    %v3216 = vsel %vm3214, %v3215, %v3213
    %v3217 = vrsqrt.pop %v3189
    %v3218 = vmul.f32 %v3189, %v3217
    %vm3219 = vcmp.eq.f32.partialorder %v3189, inf
    %v3220 = vsel %vm3219, %v3189, %v3218
    %vm3221 = vcmp.eq.f32.partialorder %v3189, 0.0
    %v3222 = vand.u32 %v3189, 2147483648
    %v3223 = vsel %vm3221, %v3222, %v3220
    %v3224 = vrsqrt.pop %v3190
    %v3225 = vmul.f32 %v3190, %v3224
    %vm3226 = vcmp.eq.f32.partialorder %v3190, inf
    %v3227 = vsel %vm3226, %v3190, %v3225
    %vm3228 = vcmp.eq.f32.partialorder %v3190, 0.0
    %v3229 = vand.u32 %v3190, 2147483648
    %v3230 = vsel %vm3228, %v3229, %v3227
    %v3231 = vrsqrt.pop %v3191
    %v3232 = vmul.f32 %v3191, %v3231
    %vm3233 = vcmp.eq.f32.partialorder %v3191, inf
    %v3234 = vsel %vm3233, %v3191, %v3232
    %vm3235 = vcmp.eq.f32.partialorder %v3191, 0.0
    %v3236 = vand.u32 %v3191, 2147483648
    %v3237 = vsel %vm3235, %v3236, %v3234
    %v3238 = vrsqrt.pop %v3192
    %v3239 = vmul.f32 %v3192, %v3238
    %vm3240 = vcmp.eq.f32.partialorder %v3192, inf
    %v3241 = vsel %vm3240, %v3192, %v3239
    %vm3242 = vcmp.eq.f32.partialorder %v3192, 0.0
    %v3243 = vand.u32 %v3192, 2147483648
    %v3244 = vsel %vm3242, %v3243, %v3241
    %v3245 = vrsqrt.pop %v3193
    %v3246 = vmul.f32 %v3193, %v3245
    %vm3247 = vcmp.eq.f32.partialorder %v3193, inf
    %v3248 = vsel %vm3247, %v3193, %v3246
    %vm3249 = vcmp.eq.f32.partialorder %v3193, 0.0
    %v3250 = vand.u32 %v3193, 2147483648
    %v3251 = vsel %vm3249, %v3250, %v3248
    %v3252 = vrsqrt.pop %v3194
    %v3253 = vmul.f32 %v3194, %v3252
    %vm3254 = vcmp.eq.f32.partialorder %v3194, inf
    %v3255 = vsel %vm3254, %v3194, %v3253
    %vm3256 = vcmp.eq.f32.partialorder %v3194, 0.0
    %v3257 = vand.u32 %v3194, 2147483648
    %v3258 = vsel %vm3256, %v3257, %v3255
    %v3259 = vrsqrt.pop %v3195
    %v3260 = vmul.f32 %v3195, %v3259
    %vm3261 = vcmp.eq.f32.partialorder %v3195, inf
    %v3262 = vsel %vm3261, %v3195, %v3260
    %vm3263 = vcmp.eq.f32.partialorder %v3195, 0.0
    %v3264 = vand.u32 %v3195, 2147483648
    %v3265 = vsel %vm3263, %v3264, %v3262
    %v3266 = vrsqrt.pop %v3196
    %v3267 = vmul.f32 %v3196, %v3266
    %vm3268 = vcmp.eq.f32.partialorder %v3196, inf
    %v3269 = vsel %vm3268, %v3196, %v3267
    %vm3270 = vcmp.eq.f32.partialorder %v3196, 0.0
    %v3271 = vand.u32 %v3196, 2147483648
    %v3272 = vsel %vm3270, %v3271, %v3269
    %v3273 = vrsqrt.pop %v3197
    %v3274 = vmul.f32 %v3197, %v3273
    %vm3275 = vcmp.eq.f32.partialorder %v3197, inf
    %v3276 = vsel %vm3275, %v3197, %v3274
    %vm3277 = vcmp.eq.f32.partialorder %v3197, 0.0
    %v3278 = vand.u32 %v3197, 2147483648
    %v3279 = vsel %vm3277, %v3278, %v3276
    %v3280 = vrsqrt.pop %v3198
    %v3281 = vmul.f32 %v3198, %v3280
    %vm3282 = vcmp.eq.f32.partialorder %v3198, inf
    %v3283 = vsel %vm3282, %v3198, %v3281
    %vm3284 = vcmp.eq.f32.partialorder %v3198, 0.0
    %v3285 = vand.u32 %v3198, 2147483648
    %v3286 = vsel %vm3284, %v3285, %v3283
    %v3287 = vrsqrt.pop %v3199
    %v3288 = vmul.f32 %v3199, %v3287
    %vm3289 = vcmp.eq.f32.partialorder %v3199, inf
    %v3290 = vsel %vm3289, %v3199, %v3288
    %vm3291 = vcmp.eq.f32.partialorder %v3199, 0.0
    %v3292 = vand.u32 %v3199, 2147483648
    %v3293 = vsel %vm3291, %v3292, %v3290
    %v3294 = vrsqrt.pop %v3200
    %v3295 = vmul.f32 %v3200, %v3294
    %vm3296 = vcmp.eq.f32.partialorder %v3200, inf
    %v3297 = vsel %vm3296, %v3200, %v3295
    %vm3298 = vcmp.eq.f32.partialorder %v3200, 0.0
    %v3299 = vand.u32 %v3200, 2147483648
    %v3300 = vsel %vm3298, %v3299, %v3297
    %v3301 = vrsqrt.pop %v3201
    %v3302 = vmul.f32 %v3201, %v3301
    %vm3303 = vcmp.eq.f32.partialorder %v3201, inf
    %v3304 = vsel %vm3303, %v3201, %v3302
    %vm3305 = vcmp.eq.f32.partialorder %v3201, 0.0
    %v3306 = vand.u32 %v3201, 2147483648
    %v3307 = vsel %vm3305, %v3306, %v3304
    %v3308 = vrsqrt.pop %v3202
    %v3309 = vmul.f32 %v3202, %v3308
    %vm3310 = vcmp.eq.f32.partialorder %v3202, inf
    %v3311 = vsel %vm3310, %v3202, %v3309
    %vm3312 = vcmp.eq.f32.partialorder %v3202, 0.0
    %v3313 = vand.u32 %v3202, 2147483648
    %v3314 = vsel %vm3312, %v3313, %v3311
    %v3315 = vrsqrt.pop %v3155
    %v3316 = vrsqrt.pop %v3156
    %v3317 = vrsqrt.pop %v3157
    %v3318 = vrsqrt.pop %v3158
    %v3319 = vrsqrt.pop %v3159
    %v3320 = vrsqrt.pop %v3160
    %v3321 = vrsqrt.pop %v3161
    %v3322 = vrsqrt.pop %v3162
    %v3323 = vrsqrt.pop %v3163
    %v3324 = vrsqrt.pop %v3164
    %v3325 = vrsqrt.pop %v3165
    %v3326 = vrsqrt.pop %v3166
    %v3327 = vrsqrt.pop %v3167
    %v3328 = vrsqrt.pop %v3168
    %v3329 = vrsqrt.pop %v3169
    %v3330 = vrsqrt.pop %v3170
    %v3331 = vmul.f32 %v3209, %v3315
    %v3332 = vmul.f32 %v3216, %v3316
    %v3333 = vmul.f32 %v3223, %v3317
    %v3334 = vmul.f32 %v3230, %v3318
    %v3335 = vmul.f32 %v3237, %v3319
    %v3336 = vmul.f32 %v3244, %v3320
    %v3337 = vmul.f32 %v3251, %v3321
    %v3338 = vmul.f32 %v3258, %v3322
    %v3339 = vmul.f32 %v3265, %v3323
    %v3340 = vmul.f32 %v3272, %v3324
    %v3341 = vmul.f32 %v3279, %v3325
    %v3342 = vmul.f32 %v3286, %v3326
    %v3343 = vmul.f32 %v3293, %v3327
    %v3344 = vmul.f32 %v3300, %v3328
    %v3345 = vmul.f32 %v3307, %v3329
    %v3346 = vmul.f32 %v3314, %v3330
    %3348 = vset.pattern.permute.xlu0 0
    %3349 = vperm.xlu0 %3348, %v3331
    %v3350 = vpop.permute.xlu0 %3349
    %3353 = vset.pattern.permute.xlu0 0
    %3354 = vperm.xlu0 %3353, %v3332
    %v3355 = vpop.permute.xlu0 %3354
    %3358 = vset.pattern.permute.xlu0 0
    %3359 = vperm.xlu0 %3358, %v3333
    %v3360 = vpop.permute.xlu0 %3359
    %3363 = vset.pattern.permute.xlu0 0
    %3364 = vperm.xlu0 %3363, %v3334
    %v3365 = vpop.permute.xlu0 %3364
    %3368 = vset.pattern.permute.xlu0 0
    %3369 = vperm.xlu0 %3368, %v3335
    %v3370 = vpop.permute.xlu0 %3369
    %3373 = vset.pattern.permute.xlu0 0
    %3374 = vperm.xlu0 %3373, %v3336
    %v3375 = vpop.permute.xlu0 %3374
    %3378 = vset.pattern.permute.xlu0 0
    %3379 = vperm.xlu0 %3378, %v3337
    %v3380 = vpop.permute.xlu0 %3379
    %3383 = vset.pattern.permute.xlu0 0
    %3384 = vperm.xlu0 %3383, %v3338
    %v3385 = vpop.permute.xlu0 %3384
    %3388 = vset.pattern.permute.xlu0 0
    %3389 = vperm.xlu0 %3388, %v3339
    %v3390 = vpop.permute.xlu0 %3389
    %3393 = vset.pattern.permute.xlu0 0
    %3394 = vperm.xlu0 %3393, %v3340
    %v3395 = vpop.permute.xlu0 %3394
    %3398 = vset.pattern.permute.xlu0 0
    %3399 = vperm.xlu0 %3398, %v3341
    %v3400 = vpop.permute.xlu0 %3399
    %3403 = vset.pattern.permute.xlu0 0
    %3404 = vperm.xlu0 %3403, %v3342
    %v3405 = vpop.permute.xlu0 %3404
    %3408 = vset.pattern.permute.xlu0 0
    %3409 = vperm.xlu0 %3408, %v3343
    %v3410 = vpop.permute.xlu0 %3409
    %3413 = vset.pattern.permute.xlu0 0
    %3414 = vperm.xlu0 %3413, %v3344
    %v3415 = vpop.permute.xlu0 %3414
    %3418 = vset.pattern.permute.xlu0 0
    %3419 = vperm.xlu0 %3418, %v3345
    %v3420 = vpop.permute.xlu0 %3419
    %3423 = vset.pattern.permute.xlu0 0
    %3424 = vperm.xlu0 %3423, %v3346
    %v3425 = vpop.permute.xlu0 %3424
    %v3427 = vmul.f32 %v2885, %v3350
    %v3428 = vmul.f32 %v2890, %v3355
    %v3429 = vmul.f32 %v2895, %v3360
    %v3430 = vmul.f32 %v2900, %v3365
    %v3431 = vmul.f32 %v2905, %v3370
    %v3432 = vmul.f32 %v2910, %v3375
    %v3433 = vmul.f32 %v2915, %v3380
    %v3434 = vmul.f32 %v2920, %v3385
    %v3435 = vmul.f32 %v2925, %v3390
    %v3436 = vmul.f32 %v2930, %v3395
    %v3437 = vmul.f32 %v2935, %v3400
    %v3438 = vmul.f32 %v2940, %v3405
    %v3439 = vmul.f32 %v2945, %v3410
    %v3440 = vmul.f32 %v2950, %v3415
    %v3441 = vmul.f32 %v2955, %v3420
    %v3442 = vmul.f32 %v2960, %v3425
    %3444 = vset.pattern.permute.xlu0 0
    %3445 = vperm.xlu0 %3444, %v3075
    %v3446 = vpop.permute.xlu0 %3445
    %3449 = vset.pattern.permute.xlu0 0
    %3450 = vperm.xlu0 %3449, %v3076
    %v3451 = vpop.permute.xlu0 %3450
    %3454 = vset.pattern.permute.xlu0 0
    %3455 = vperm.xlu0 %3454, %v3077
    %v3456 = vpop.permute.xlu0 %3455
    %3459 = vset.pattern.permute.xlu0 0
    %3460 = vperm.xlu0 %3459, %v3078
    %v3461 = vpop.permute.xlu0 %3460
    %3464 = vset.pattern.permute.xlu0 0
    %3465 = vperm.xlu0 %3464, %v3079
    %v3466 = vpop.permute.xlu0 %3465
    %3469 = vset.pattern.permute.xlu0 0
    %3470 = vperm.xlu0 %3469, %v3080
    %v3471 = vpop.permute.xlu0 %3470
    %3474 = vset.pattern.permute.xlu0 0
    %3475 = vperm.xlu0 %3474, %v3081
    %v3476 = vpop.permute.xlu0 %3475
    %3479 = vset.pattern.permute.xlu0 0
    %3480 = vperm.xlu0 %3479, %v3082
    %v3481 = vpop.permute.xlu0 %3480
    %3484 = vset.pattern.permute.xlu0 0
    %3485 = vperm.xlu0 %3484, %v3083
    %v3486 = vpop.permute.xlu0 %3485
    %3489 = vset.pattern.permute.xlu0 0
    %3490 = vperm.xlu0 %3489, %v3084
    %v3491 = vpop.permute.xlu0 %3490
    %3494 = vset.pattern.permute.xlu0 0
    %3495 = vperm.xlu0 %3494, %v3085
    %v3496 = vpop.permute.xlu0 %3495
    %3499 = vset.pattern.permute.xlu0 0
    %3500 = vperm.xlu0 %3499, %v3086
    %v3501 = vpop.permute.xlu0 %3500
    %3504 = vset.pattern.permute.xlu0 0
    %3505 = vperm.xlu0 %3504, %v3087
    %v3506 = vpop.permute.xlu0 %3505
    %3509 = vset.pattern.permute.xlu0 0
    %3510 = vperm.xlu0 %3509, %v3088
    %v3511 = vpop.permute.xlu0 %3510
    %3514 = vset.pattern.permute.xlu0 0
    %3515 = vperm.xlu0 %3514, %v3089
    %v3516 = vpop.permute.xlu0 %3515
    %3519 = vset.pattern.permute.xlu0 0
    %3520 = vperm.xlu0 %3519, %v3090
    %v3521 = vpop.permute.xlu0 %3520
    %v3523 = vsel %vm191, %v3446, %v3427
    %v3524 = vsel %vm191, %v3451, %v3428
    %v3525 = vsel %vm191, %v3456, %v3429
    %v3526 = vsel %vm191, %v3461, %v3430
    %v3527 = vsel %vm191, %v3466, %v3431
    %v3528 = vsel %vm191, %v3471, %v3432
    %v3529 = vsel %vm191, %v3476, %v3433
    %v3530 = vsel %vm191, %v3481, %v3434
    %v3531 = vsel %vm191, %v3486, %v3435
    %v3532 = vsel %vm191, %v3491, %v3436
    %v3533 = vsel %vm191, %v3496, %v3437
    %v3534 = vsel %vm191, %v3501, %v3438
    %v3535 = vsel %vm191, %v3506, %v3439
    %v3536 = vsel %vm191, %v3511, %v3440
    %v3537 = vsel %vm191, %v3516, %v3441
    %v3538 = vsel %vm191, %v3521, %v3442
    %v3539 = vld [vmem:[#allocation15] sm:$0xff]
    %v3540 = vld [vmem:[#allocation15 + $0x8] sm:$0xff]
    %v3541 = vld [vmem:[#allocation15 + $0x10] sm:$0xff]
    %v3542 = vld [vmem:[#allocation15 + $0x18] sm:$0xff]
    %v3543 = vld [vmem:[#allocation15 + $0x20] sm:$0xff]
    %v3544 = vld [vmem:[#allocation15 + $0x28] sm:$0xff]
    %v3545 = vld [vmem:[#allocation15 + $0x30] sm:$0xff]
    %v3546 = vld [vmem:[#allocation15 + $0x38] sm:$0xff]
    %v3547 = vld [vmem:[#allocation15 + $0x40] sm:$0xff]
    %v3548 = vld [vmem:[#allocation15 + $0x48] sm:$0xff]
    %v3549 = vld [vmem:[#allocation15 + $0x50] sm:$0xff]
    %v3550 = vld [vmem:[#allocation15 + $0x58] sm:$0xff]
    %v3551 = vld [vmem:[#allocation15 + $0x60] sm:$0xff]
    %v3552 = vld [vmem:[#allocation15 + $0x68] sm:$0xff]
    %v3553 = vld [vmem:[#allocation15 + $0x70] sm:$0xff]
    %v3554 = vld [vmem:[#allocation15 + $0x78] sm:$0xff]
    %v3555 = vld [vmem:[#allocation17] sm:$0x1]
    %v3556 = vmax.f32 %v3523, 0.0
    %v3557 = vmax.f32 %v3524, 0.0
    %v3558 = vmax.f32 %v3525, 0.0
    %v3559 = vmax.f32 %v3526, 0.0
    %v3560 = vmax.f32 %v3527, 0.0
    %v3561 = vmax.f32 %v3528, 0.0
    %v3562 = vmax.f32 %v3529, 0.0
    %v3563 = vmax.f32 %v3530, 0.0
    %v3564 = vmax.f32 %v3531, 0.0
    %v3565 = vmax.f32 %v3532, 0.0
    %v3566 = vmax.f32 %v3533, 0.0
    %v3567 = vmax.f32 %v3534, 0.0
    %v3568 = vmax.f32 %v3535, 0.0
    %v3569 = vmax.f32 %v3536, 0.0
    %v3570 = vmax.f32 %v3537, 0.0
    %v3571 = vmax.f32 %v3538, 0.0
    %v3573 = vlaneseq
    %v3574 = vshrl.u32 %v3573, 7
    %v3575 = vsub.s32 0, %v3574
    %v3576 = vrot.slane %v3555, %v3575
    %3578 = vmatprep.subr.mxu0 0.0
    %3579 = vmatpush1.msra.mxu0 %v3539
    %3580 = vmatprep.subr.mxu0 0.0
    %3581 = vmatpush1.msra.mxu0 %v3540
    %3582 = vmatprep.subr.mxu0 0.0
    %3583 = vmatpush1.msra.mxu0 %v3541
    %3584 = vmatprep.subr.mxu0 0.0
    %3585 = vmatpush1.msra.mxu0 %v3542
    %3586 = vmatprep.subr.mxu0 0.0
    %3587 = vmatpush1.msra.mxu0 %v3543
    %3588 = vmatprep.subr.mxu0 0.0
    %3589 = vmatpush1.msra.mxu0 %v3544
    %3590 = vmatprep.subr.mxu0 0.0
    %3591 = vmatpush1.msra.mxu0 %v3545
    %3592 = vmatprep.subr.mxu0 0.0
    %3593 = vmatpush1.msra.mxu0 %v3546
    %3594 = vmatprep.subr.mxu0 0.0
    %3595 = vmatpush1.msra.mxu0 %v3547
    %3596 = vmatprep.subr.mxu0 0.0
    %3597 = vmatpush1.msra.mxu0 %v3548
    %3598 = vmatprep.subr.mxu0 0.0
    %3599 = vmatpush1.msra.mxu0 %v3549
    %3600 = vmatprep.subr.mxu0 0.0
    %3601 = vmatpush1.msra.mxu0 %v3550
    %3602 = vmatprep.subr.mxu0 0.0
    %3603 = vmatpush1.msra.mxu0 %v3551
    %3604 = vmatprep.subr.mxu0 0.0
    %3605 = vmatpush1.msra.mxu0 %v3552
    %3606 = vmatprep.subr.mxu0 0.0
    %3607 = vmatpush1.msra.mxu0 %v3553
    %3608 = vmatprep.subr.mxu0 0.0
    %3609 = vmatpush1.msra.mxu0 %v3554
    %3610 = vmatprep.subr.mxu0 0.0
    %3611 = vmatpush1.msra.mxu0 0.0
    %3612 = vmatprep.subr.mxu0 0.0
    %3613 = vmatpush1.msra.mxu0 0.0
    %3614 = vmatprep.subr.mxu0 0.0
    %3615 = vmatpush1.msra.mxu0 0.0
    %3616 = vmatprep.subr.mxu0 0.0
    %3617 = vmatpush1.msra.mxu0 0.0
    %3618 = vmatprep.subr.mxu0 0.0
    %3619 = vmatpush1.msra.mxu0 0.0
    %3620 = vmatprep.subr.mxu0 0.0
    %3621 = vmatpush1.msra.mxu0 0.0
    %3622 = vmatprep.subr.mxu0 0.0
    %3623 = vmatpush1.msra.mxu0 0.0
    %3624 = vmatprep.subr.mxu0 0.0
    %3625 = vmatpush1.msra.mxu0 0.0
    %3626 = vmatprep.subr.mxu0 0.0
    %3627 = vmatpush1.msra.mxu0 0.0
    %3628 = vmatprep.subr.mxu0 0.0
    %3629 = vmatpush1.msra.mxu0 0.0
    %3630 = vmatprep.subr.mxu0 0.0
    %3631 = vmatpush1.msra.mxu0 0.0
    %3632 = vmatprep.subr.mxu0 0.0
    %3633 = vmatpush1.msra.mxu0 0.0
    %3634 = vmatprep.subr.mxu0 0.0
    %3635 = vmatpush1.msra.mxu0 0.0
    %3636 = vmatprep.subr.mxu0 0.0
    %3637 = vmatpush1.msra.mxu0 0.0
    %3638 = vmatprep.subr.mxu0 0.0
    %3639 = vmatpush1.msra.mxu0 0.0
    %3640 = vmatprep.subr.mxu0 0.0
    %3641 = vmatpush1.msra.mxu0 0.0
    %3642 = vmatprep.mubr.f32.mxu0 0.0
    %3643 = vmatmul.mubr.f32.gmra.mrb[0].mxu0 %v3556
    %v3644 = vpop.f32.mrb[0].mxu0
    %v3645 = vadd.f32 %v3576, %v3644
    %v3646 = vpop.f32.mrb[0].mxu0
    %3647 = vmatprep.mubr.f32.mxu0 0.0
    %3648 = vmatmul.mubr.f32.gmra.mrb[0].mxu0 %v3557
    %v3649 = vpop.f32.mrb[0].mxu0
    %v3650 = vadd.f32 %v3576, %v3649
    %v3651 = vpop.f32.mrb[0].mxu0
    %3652 = vmatprep.mubr.f32.mxu0 0.0
    %3653 = vmatmul.mubr.f32.gmra.mrb[0].mxu0 %v3558
    %v3654 = vpop.f32.mrb[0].mxu0
    %v3655 = vadd.f32 %v3576, %v3654
    %v3656 = vpop.f32.mrb[0].mxu0
    %3657 = vmatprep.mubr.f32.mxu0 0.0
    %3658 = vmatmul.mubr.f32.gmra.mrb[0].mxu0 %v3559
    %v3659 = vpop.f32.mrb[0].mxu0
    %v3660 = vadd.f32 %v3576, %v3659
    %v3661 = vpop.f32.mrb[0].mxu0
    %3662 = vmatprep.mubr.f32.mxu0 0.0
    %3663 = vmatmul.mubr.f32.gmra.mrb[0].mxu0 %v3560
    %v3664 = vpop.f32.mrb[0].mxu0
    %v3665 = vadd.f32 %v3576, %v3664
    %v3666 = vpop.f32.mrb[0].mxu0
    %3667 = vmatprep.mubr.f32.mxu0 0.0
    %3668 = vmatmul.mubr.f32.gmra.mrb[0].mxu0 %v3561
    %v3669 = vpop.f32.mrb[0].mxu0
    %v3670 = vadd.f32 %v3576, %v3669
    %v3671 = vpop.f32.mrb[0].mxu0
    %3672 = vmatprep.mubr.f32.mxu0 0.0
    %3673 = vmatmul.mubr.f32.gmra.mrb[0].mxu0 %v3562
    %v3674 = vpop.f32.mrb[0].mxu0
    %v3675 = vadd.f32 %v3576, %v3674
    %v3676 = vpop.f32.mrb[0].mxu0
    %3677 = vmatprep.mubr.f32.mxu0 0.0
    %3678 = vmatmul.mubr.f32.gmra.mrb[0].mxu0 %v3563
    %v3679 = vpop.f32.mrb[0].mxu0
    %v3680 = vadd.f32 %v3576, %v3679
    %v3681 = vpop.f32.mrb[0].mxu0
    %3682 = vmatprep.mubr.f32.mxu0 0.0
    %3683 = vmatmul.mubr.f32.gmra.mrb[0].mxu0 %v3564
    %v3684 = vpop.f32.mrb[0].mxu0
    %v3685 = vadd.f32 %v3576, %v3684
    %v3686 = vpop.f32.mrb[0].mxu0
    %3687 = vmatprep.mubr.f32.mxu0 0.0
    %3688 = vmatmul.mubr.f32.gmra.mrb[0].mxu0 %v3565
    %v3689 = vpop.f32.mrb[0].mxu0
    %v3690 = vadd.f32 %v3576, %v3689
    %v3691 = vpop.f32.mrb[0].mxu0
    %3692 = vmatprep.mubr.f32.mxu0 0.0
    %3693 = vmatmul.mubr.f32.gmra.mrb[0].mxu0 %v3566
    %v3694 = vpop.f32.mrb[0].mxu0
    %v3695 = vadd.f32 %v3576, %v3694
    %v3696 = vpop.f32.mrb[0].mxu0
    %3697 = vmatprep.mubr.f32.mxu0 0.0
    %3698 = vmatmul.mubr.f32.gmra.mrb[0].mxu0 %v3567
    %v3699 = vpop.f32.mrb[0].mxu0
    %v3700 = vadd.f32 %v3576, %v3699
    %v3701 = vpop.f32.mrb[0].mxu0
    %3702 = vmatprep.mubr.f32.mxu0 0.0
    %3703 = vmatmul.mubr.f32.gmra.mrb[0].mxu0 %v3568
    %v3704 = vpop.f32.mrb[0].mxu0
    %v3705 = vadd.f32 %v3576, %v3704
    %v3706 = vpop.f32.mrb[0].mxu0
    %3707 = vmatprep.mubr.f32.mxu0 0.0
    %3708 = vmatmul.mubr.f32.gmra.mrb[0].mxu0 %v3569
    %v3709 = vpop.f32.mrb[0].mxu0
    %v3710 = vadd.f32 %v3576, %v3709
    %v3711 = vpop.f32.mrb[0].mxu0
    %3712 = vmatprep.mubr.f32.mxu0 0.0
    %3713 = vmatmul.mubr.f32.gmra.mrb[0].mxu0 %v3570
    %v3714 = vpop.f32.mrb[0].mxu0
    %v3715 = vadd.f32 %v3576, %v3714
    %v3716 = vpop.f32.mrb[0].mxu0
    %3717 = vmatprep.mubr.f32.mxu0 0.0
    %3718 = vmatmul.mubr.f32.gmra.mrb[0].mxu0 %v3571
    %v3719 = vpop.f32.mrb[0].mxu0
    %v3720 = vadd.f32 %v3576, %v3719
    %v3721 = vpop.f32.mrb[0].mxu0
    %3722 = vdwg.mxu0
    %v3723 = vxor.u32 %v3645, 2147483648
    %v3724 = vxor.u32 %v3650, 2147483648
    %v3725 = vxor.u32 %v3655, 2147483648
    %v3726 = vxor.u32 %v3660, 2147483648
    %v3727 = vxor.u32 %v3665, 2147483648
    %v3728 = vxor.u32 %v3670, 2147483648
    %v3729 = vxor.u32 %v3675, 2147483648
    %v3730 = vxor.u32 %v3680, 2147483648
    %v3731 = vxor.u32 %v3685, 2147483648
    %v3732 = vxor.u32 %v3690, 2147483648
    %v3733 = vxor.u32 %v3695, 2147483648
    %v3734 = vxor.u32 %v3700, 2147483648
    %v3735 = vxor.u32 %v3705, 2147483648
    %v3736 = vxor.u32 %v3710, 2147483648
    %v3737 = vxor.u32 %v3715, 2147483648
    %v3738 = vxor.u32 %v3720, 2147483648
    %v3739 = vmul.f32 %v3723, 1.442695
    %v3740 = vpow.pop %v3739
    %v3741 = vmul.f32 %v3724, 1.442695
    %v3742 = vpow.pop %v3741
    %v3743 = vmul.f32 %v3725, 1.442695
    %v3744 = vpow.pop %v3743
    %v3745 = vmul.f32 %v3726, 1.442695
    %v3746 = vpow.pop %v3745
    %v3747 = vmul.f32 %v3727, 1.442695
    %v3748 = vpow.pop %v3747
    %v3749 = vmul.f32 %v3728, 1.442695
    %v3750 = vpow.pop %v3749
    %v3751 = vmul.f32 %v3729, 1.442695
    %v3752 = vpow.pop %v3751
    %v3753 = vmul.f32 %v3730, 1.442695
    %v3754 = vpow.pop %v3753
    %v3755 = vmul.f32 %v3731, 1.442695
    %v3756 = vpow.pop %v3755
    %v3757 = vmul.f32 %v3732, 1.442695
    %v3758 = vpow.pop %v3757
    %v3759 = vmul.f32 %v3733, 1.442695
    %v3760 = vpow.pop %v3759
    %v3761 = vmul.f32 %v3734, 1.442695
    %v3762 = vpow.pop %v3761
    %v3763 = vmul.f32 %v3735, 1.442695
    %v3764 = vpow.pop %v3763
    %v3765 = vmul.f32 %v3736, 1.442695
    %v3766 = vpow.pop %v3765
    %v3767 = vmul.f32 %v3737, 1.442695
    %v3768 = vpow.pop %v3767
    %v3769 = vmul.f32 %v3738, 1.442695
    %v3770 = vpow.pop %v3769
    %v3771 = vadd.f32 %v3740, 1.0
    %v3772 = vadd.f32 %v3742, 1.0
    %v3773 = vadd.f32 %v3744, 1.0
    %v3774 = vadd.f32 %v3746, 1.0
    %v3775 = vadd.f32 %v3748, 1.0
    %v3776 = vadd.f32 %v3750, 1.0
    %v3777 = vadd.f32 %v3752, 1.0
    %v3778 = vadd.f32 %v3754, 1.0
    %v3779 = vadd.f32 %v3756, 1.0
    %v3780 = vadd.f32 %v3758, 1.0
    %v3781 = vadd.f32 %v3760, 1.0
    %v3782 = vadd.f32 %v3762, 1.0
    %v3783 = vadd.f32 %v3764, 1.0
    %v3784 = vadd.f32 %v3766, 1.0
    %v3785 = vadd.f32 %v3768, 1.0
    %v3786 = vadd.f32 %v3770, 1.0
    %v3787 = vrcp.pop %v3771
    %v3788 = vmul.f32 1.0, %v3787
    %v3789 = vrcp.pop %v3772
    %v3790 = vmul.f32 1.0, %v3789
    %v3791 = vrcp.pop %v3773
    %v3792 = vmul.f32 1.0, %v3791
    %v3793 = vrcp.pop %v3774
    %v3794 = vmul.f32 1.0, %v3793
    %v3795 = vrcp.pop %v3775
    %v3796 = vmul.f32 1.0, %v3795
    %v3797 = vrcp.pop %v3776
    %v3798 = vmul.f32 1.0, %v3797
    %v3799 = vrcp.pop %v3777
    %v3800 = vmul.f32 1.0, %v3799
    %v3801 = vrcp.pop %v3778
    %v3802 = vmul.f32 1.0, %v3801
    %v3803 = vrcp.pop %v3779
    %v3804 = vmul.f32 1.0, %v3803
    %v3805 = vrcp.pop %v3780
    %v3806 = vmul.f32 1.0, %v3805
    %v3807 = vrcp.pop %v3781
    %v3808 = vmul.f32 1.0, %v3807
    %v3809 = vrcp.pop %v3782
    %v3810 = vmul.f32 1.0, %v3809
    %v3811 = vrcp.pop %v3783
    %v3812 = vmul.f32 1.0, %v3811
    %v3813 = vrcp.pop %v3784
    %v3814 = vmul.f32 1.0, %v3813
    %v3815 = vrcp.pop %v3785
    %v3816 = vmul.f32 1.0, %v3815
    %v3817 = vrcp.pop %v3786
    %v3818 = vmul.f32 1.0, %v3817
    %v3819 = vmul.f32 %v3788, 10.0
    %v3820 = vmul.f32 %v3790, 10.0
    %v3821 = vmul.f32 %v3792, 10.0
    %v3822 = vmul.f32 %v3794, 10.0
    %v3823 = vmul.f32 %v3796, 10.0
    %v3824 = vmul.f32 %v3798, 10.0
    %v3825 = vmul.f32 %v3800, 10.0
    %v3826 = vmul.f32 %v3802, 10.0
    %v3827 = vmul.f32 %v3804, 10.0
    %v3828 = vmul.f32 %v3806, 10.0
    %v3829 = vmul.f32 %v3808, 10.0
    %v3830 = vmul.f32 %v3810, 10.0
    %v3831 = vmul.f32 %v3812, 10.0
    %v3832 = vmul.f32 %v3814, 10.0
    %v3833 = vmul.f32 %v3816, 10.0
    %v3834 = vmul.f32 %v3818, 10.0
    %v3835 = vadd.f32 %v3819, 1.1
    %v3836 = vadd.f32 %v3820, 1.1
    %v3837 = vadd.f32 %v3821, 1.1
    %v3838 = vadd.f32 %v3822, 1.1
    %v3839 = vadd.f32 %v3823, 1.1
    %v3840 = vadd.f32 %v3824, 1.1
    %v3841 = vadd.f32 %v3825, 1.1
    %v3842 = vadd.f32 %v3826, 1.1
    %v3843 = vadd.f32 %v3827, 1.1
    %v3844 = vadd.f32 %v3828, 1.1
    %v3845 = vadd.f32 %v3829, 1.1
    %v3846 = vadd.f32 %v3830, 1.1
    %v3847 = vadd.f32 %v3831, 1.1
    %v3848 = vadd.f32 %v3832, 1.1
    %v3849 = vadd.f32 %v3833, 1.1
    %v3850 = vadd.f32 %v3834, 1.1
    %v3851 = vmul.f32 %v3645, %v3645
    %v3852 = vmul.f32 %v3650, %v3650
    %v3853 = vmul.f32 %v3655, %v3655
    %v3854 = vmul.f32 %v3660, %v3660
    %v3855 = vmul.f32 %v3665, %v3665
    %v3856 = vmul.f32 %v3670, %v3670
    %v3857 = vmul.f32 %v3675, %v3675
    %v3858 = vmul.f32 %v3680, %v3680
    %v3859 = vmul.f32 %v3685, %v3685
    %v3860 = vmul.f32 %v3690, %v3690
    %v3861 = vmul.f32 %v3695, %v3695
    %v3862 = vmul.f32 %v3700, %v3700
    %v3863 = vmul.f32 %v3705, %v3705
    %v3864 = vmul.f32 %v3710, %v3710
    %v3865 = vmul.f32 %v3715, %v3715
    %v3866 = vmul.f32 %v3720, %v3720
    %3867 = vadd.xlane.f32.xlu0 %v3851
    %v3868 = vpop.xlane.xlu0 %3867
    %3869 = vadd.xlane.f32.xlu0 %v3852
    %v3870 = vpop.xlane.xlu0 %3869
    %3871 = vadd.xlane.f32.xlu0 %v3853
    %v3872 = vpop.xlane.xlu0 %3871
    %3873 = vadd.xlane.f32.xlu0 %v3854
    %v3874 = vpop.xlane.xlu0 %3873
    %3875 = vadd.xlane.f32.xlu0 %v3855
    %v3876 = vpop.xlane.xlu0 %3875
    %3877 = vadd.xlane.f32.xlu0 %v3856
    %v3878 = vpop.xlane.xlu0 %3877
    %3879 = vadd.xlane.f32.xlu0 %v3857
    %v3880 = vpop.xlane.xlu0 %3879
    %3881 = vadd.xlane.f32.xlu0 %v3858
    %v3882 = vpop.xlane.xlu0 %3881
    %3883 = vadd.xlane.f32.xlu0 %v3859
    %v3884 = vpop.xlane.xlu0 %3883
    %3885 = vadd.xlane.f32.xlu0 %v3860
    %v3886 = vpop.xlane.xlu0 %3885
    %3887 = vadd.xlane.f32.xlu0 %v3861
    %v3888 = vpop.xlane.xlu0 %3887
    %3889 = vadd.xlane.f32.xlu0 %v3862
    %v3890 = vpop.xlane.xlu0 %3889
    %3891 = vadd.xlane.f32.xlu0 %v3863
    %v3892 = vpop.xlane.xlu0 %3891
    %3893 = vadd.xlane.f32.xlu0 %v3864
    %v3894 = vpop.xlane.xlu0 %3893
    %3895 = vadd.xlane.f32.xlu0 %v3865
    %v3896 = vpop.xlane.xlu0 %3895
    %3897 = vadd.xlane.f32.xlu0 %v3866
    %v3898 = vpop.xlane.xlu0 %3897
    %v3899 = vsub.f32 %v3868, %v3851
    %v3900 = vsub.f32 %v3870, %v3852
    %v3901 = vsub.f32 %v3872, %v3853
    %v3902 = vsub.f32 %v3874, %v3854
    %v3903 = vsub.f32 %v3876, %v3855
    %v3904 = vsub.f32 %v3878, %v3856
    %v3905 = vsub.f32 %v3880, %v3857
    %v3906 = vsub.f32 %v3882, %v3858
    %v3907 = vsub.f32 %v3884, %v3859
    %v3908 = vsub.f32 %v3886, %v3860
    %v3909 = vsub.f32 %v3888, %v3861
    %v3910 = vsub.f32 %v3890, %v3862
    %v3911 = vsub.f32 %v3892, %v3863
    %v3912 = vsub.f32 %v3894, %v3864
    %v3913 = vsub.f32 %v3896, %v3865
    %v3914 = vsub.f32 %v3898, %v3866
    %v3915 = vmax.f32 %v3899, 1e-08
    %v3916 = vmax.f32 %v3900, 1e-08
    %v3917 = vmax.f32 %v3901, 1e-08
    %v3918 = vmax.f32 %v3902, 1e-08
    %v3919 = vmax.f32 %v3903, 1e-08
    %v3920 = vmax.f32 %v3904, 1e-08
    %v3921 = vmax.f32 %v3905, 1e-08
    %v3922 = vmax.f32 %v3906, 1e-08
    %v3923 = vmax.f32 %v3907, 1e-08
    %v3924 = vmax.f32 %v3908, 1e-08
    %v3925 = vmax.f32 %v3909, 1e-08
    %v3926 = vmax.f32 %v3910, 1e-08
    %v3927 = vmax.f32 %v3911, 1e-08
    %v3928 = vmax.f32 %v3912, 1e-08
    %v3929 = vmax.f32 %v3913, 1e-08
    %v3930 = vmax.f32 %v3914, 1e-08
    %v3931 = vmul.f32 %v3835, %v3835
    %v3932 = vmul.f32 %v3836, %v3836
    %v3933 = vmul.f32 %v3837, %v3837
    %v3934 = vmul.f32 %v3838, %v3838
    %v3935 = vmul.f32 %v3839, %v3839
    %v3936 = vmul.f32 %v3840, %v3840
    %v3937 = vmul.f32 %v3841, %v3841
    %v3938 = vmul.f32 %v3842, %v3842
    %v3939 = vmul.f32 %v3843, %v3843
    %v3940 = vmul.f32 %v3844, %v3844
    %v3941 = vmul.f32 %v3845, %v3845
    %v3942 = vmul.f32 %v3846, %v3846
    %v3943 = vmul.f32 %v3847, %v3847
    %v3944 = vmul.f32 %v3848, %v3848
    %v3945 = vmul.f32 %v3849, %v3849
    %v3946 = vmul.f32 %v3850, %v3850
    %v3947 = vsub.f32 %v3931, 1.0
    %v3948 = vsub.f32 %v3932, 1.0
    %v3949 = vsub.f32 %v3933, 1.0
    %v3950 = vsub.f32 %v3934, 1.0
    %v3951 = vsub.f32 %v3935, 1.0
    %v3952 = vsub.f32 %v3936, 1.0
    %v3953 = vsub.f32 %v3937, 1.0
    %v3954 = vsub.f32 %v3938, 1.0
    %v3955 = vsub.f32 %v3939, 1.0
    %v3956 = vsub.f32 %v3940, 1.0
    %v3957 = vsub.f32 %v3941, 1.0
    %v3958 = vsub.f32 %v3942, 1.0
    %v3959 = vsub.f32 %v3943, 1.0
    %v3960 = vsub.f32 %v3944, 1.0
    %v3961 = vsub.f32 %v3945, 1.0
    %v3962 = vsub.f32 %v3946, 1.0
    %v3963 = vrsqrt.pop %v3947
    %v3964 = vmul.f32 %v3947, %v3963
    %vm3965 = vcmp.eq.f32.partialorder %v3947, inf
    %v3966 = vsel %vm3965, %v3947, %v3964
    %vm3967 = vcmp.eq.f32.partialorder %v3947, 0.0
    %v3968 = vand.u32 %v3947, 2147483648
    %v3969 = vsel %vm3967, %v3968, %v3966
    %v3970 = vrsqrt.pop %v3948
    %v3971 = vmul.f32 %v3948, %v3970
    %vm3972 = vcmp.eq.f32.partialorder %v3948, inf
    %v3973 = vsel %vm3972, %v3948, %v3971
    %vm3974 = vcmp.eq.f32.partialorder %v3948, 0.0
    %v3975 = vand.u32 %v3948, 2147483648
    %v3976 = vsel %vm3974, %v3975, %v3973
    %v3977 = vrsqrt.pop %v3949
    %v3978 = vmul.f32 %v3949, %v3977
    %vm3979 = vcmp.eq.f32.partialorder %v3949, inf
    %v3980 = vsel %vm3979, %v3949, %v3978
    %vm3981 = vcmp.eq.f32.partialorder %v3949, 0.0
    %v3982 = vand.u32 %v3949, 2147483648
    %v3983 = vsel %vm3981, %v3982, %v3980
    %v3984 = vrsqrt.pop %v3950
    %v3985 = vmul.f32 %v3950, %v3984
    %vm3986 = vcmp.eq.f32.partialorder %v3950, inf
    %v3987 = vsel %vm3986, %v3950, %v3985
    %vm3988 = vcmp.eq.f32.partialorder %v3950, 0.0
    %v3989 = vand.u32 %v3950, 2147483648
    %v3990 = vsel %vm3988, %v3989, %v3987
    %v3991 = vrsqrt.pop %v3951
    %v3992 = vmul.f32 %v3951, %v3991
    %vm3993 = vcmp.eq.f32.partialorder %v3951, inf
    %v3994 = vsel %vm3993, %v3951, %v3992
    %vm3995 = vcmp.eq.f32.partialorder %v3951, 0.0
    %v3996 = vand.u32 %v3951, 2147483648
    %v3997 = vsel %vm3995, %v3996, %v3994
    %v3998 = vrsqrt.pop %v3952
    %v3999 = vmul.f32 %v3952, %v3998
    %vm4000 = vcmp.eq.f32.partialorder %v3952, inf
    %v4001 = vsel %vm4000, %v3952, %v3999
    %vm4002 = vcmp.eq.f32.partialorder %v3952, 0.0
    %v4003 = vand.u32 %v3952, 2147483648
    %v4004 = vsel %vm4002, %v4003, %v4001
    %v4005 = vrsqrt.pop %v3953
    %v4006 = vmul.f32 %v3953, %v4005
    %vm4007 = vcmp.eq.f32.partialorder %v3953, inf
    %v4008 = vsel %vm4007, %v3953, %v4006
    %vm4009 = vcmp.eq.f32.partialorder %v3953, 0.0
    %v4010 = vand.u32 %v3953, 2147483648
    %v4011 = vsel %vm4009, %v4010, %v4008
    %v4012 = vrsqrt.pop %v3954
    %v4013 = vmul.f32 %v3954, %v4012
    %vm4014 = vcmp.eq.f32.partialorder %v3954, inf
    %v4015 = vsel %vm4014, %v3954, %v4013
    %vm4016 = vcmp.eq.f32.partialorder %v3954, 0.0
    %v4017 = vand.u32 %v3954, 2147483648
    %v4018 = vsel %vm4016, %v4017, %v4015
    %v4019 = vrsqrt.pop %v3955
    %v4020 = vmul.f32 %v3955, %v4019
    %vm4021 = vcmp.eq.f32.partialorder %v3955, inf
    %v4022 = vsel %vm4021, %v3955, %v4020
    %vm4023 = vcmp.eq.f32.partialorder %v3955, 0.0
    %v4024 = vand.u32 %v3955, 2147483648
    %v4025 = vsel %vm4023, %v4024, %v4022
    %v4026 = vrsqrt.pop %v3956
    %v4027 = vmul.f32 %v3956, %v4026
    %vm4028 = vcmp.eq.f32.partialorder %v3956, inf
    %v4029 = vsel %vm4028, %v3956, %v4027
    %vm4030 = vcmp.eq.f32.partialorder %v3956, 0.0
    %v4031 = vand.u32 %v3956, 2147483648
    %v4032 = vsel %vm4030, %v4031, %v4029
    %v4033 = vrsqrt.pop %v3957
    %v4034 = vmul.f32 %v3957, %v4033
    %vm4035 = vcmp.eq.f32.partialorder %v3957, inf
    %v4036 = vsel %vm4035, %v3957, %v4034
    %vm4037 = vcmp.eq.f32.partialorder %v3957, 0.0
    %v4038 = vand.u32 %v3957, 2147483648
    %v4039 = vsel %vm4037, %v4038, %v4036
    %v4040 = vrsqrt.pop %v3958
    %v4041 = vmul.f32 %v3958, %v4040
    %vm4042 = vcmp.eq.f32.partialorder %v3958, inf
    %v4043 = vsel %vm4042, %v3958, %v4041
    %vm4044 = vcmp.eq.f32.partialorder %v3958, 0.0
    %v4045 = vand.u32 %v3958, 2147483648
    %v4046 = vsel %vm4044, %v4045, %v4043
    %v4047 = vrsqrt.pop %v3959
    %v4048 = vmul.f32 %v3959, %v4047
    %vm4049 = vcmp.eq.f32.partialorder %v3959, inf
    %v4050 = vsel %vm4049, %v3959, %v4048
    %vm4051 = vcmp.eq.f32.partialorder %v3959, 0.0
    %v4052 = vand.u32 %v3959, 2147483648
    %v4053 = vsel %vm4051, %v4052, %v4050
    %v4054 = vrsqrt.pop %v3960
    %v4055 = vmul.f32 %v3960, %v4054
    %vm4056 = vcmp.eq.f32.partialorder %v3960, inf
    %v4057 = vsel %vm4056, %v3960, %v4055
    %vm4058 = vcmp.eq.f32.partialorder %v3960, 0.0
    %v4059 = vand.u32 %v3960, 2147483648
    %v4060 = vsel %vm4058, %v4059, %v4057
    %v4061 = vrsqrt.pop %v3961
    %v4062 = vmul.f32 %v3961, %v4061
    %vm4063 = vcmp.eq.f32.partialorder %v3961, inf
    %v4064 = vsel %vm4063, %v3961, %v4062
    %vm4065 = vcmp.eq.f32.partialorder %v3961, 0.0
    %v4066 = vand.u32 %v3961, 2147483648
    %v4067 = vsel %vm4065, %v4066, %v4064
    %v4068 = vrsqrt.pop %v3962
    %v4069 = vmul.f32 %v3962, %v4068
    %vm4070 = vcmp.eq.f32.partialorder %v3962, inf
    %v4071 = vsel %vm4070, %v3962, %v4069
    %vm4072 = vcmp.eq.f32.partialorder %v3962, 0.0
    %v4073 = vand.u32 %v3962, 2147483648
    %v4074 = vsel %vm4072, %v4073, %v4071
    %v4075 = vrsqrt.pop %v3915
    %v4076 = vrsqrt.pop %v3916
    %v4077 = vrsqrt.pop %v3917
    %v4078 = vrsqrt.pop %v3918
    %v4079 = vrsqrt.pop %v3919
    %v4080 = vrsqrt.pop %v3920
    %v4081 = vrsqrt.pop %v3921
    %v4082 = vrsqrt.pop %v3922
    %v4083 = vrsqrt.pop %v3923
    %v4084 = vrsqrt.pop %v3924
    %v4085 = vrsqrt.pop %v3925
    %v4086 = vrsqrt.pop %v3926
    %v4087 = vrsqrt.pop %v3927
    %v4088 = vrsqrt.pop %v3928
    %v4089 = vrsqrt.pop %v3929
    %v4090 = vrsqrt.pop %v3930
    %v4091 = vmul.f32 %v3969, %v4075
    %v4092 = vmul.f32 %v3976, %v4076
    %v4093 = vmul.f32 %v3983, %v4077
    %v4094 = vmul.f32 %v3990, %v4078
    %v4095 = vmul.f32 %v3997, %v4079
    %v4096 = vmul.f32 %v4004, %v4080
    %v4097 = vmul.f32 %v4011, %v4081
    %v4098 = vmul.f32 %v4018, %v4082
    %v4099 = vmul.f32 %v4025, %v4083
    %v4100 = vmul.f32 %v4032, %v4084
    %v4101 = vmul.f32 %v4039, %v4085
    %v4102 = vmul.f32 %v4046, %v4086
    %v4103 = vmul.f32 %v4053, %v4087
    %v4104 = vmul.f32 %v4060, %v4088
    %v4105 = vmul.f32 %v4067, %v4089
    %v4106 = vmul.f32 %v4074, %v4090
    %4108 = vset.pattern.permute.xlu0 0
    %4109 = vperm.xlu0 %4108, %v4091
    %v4110 = vpop.permute.xlu0 %4109
    %4113 = vset.pattern.permute.xlu0 0
    %4114 = vperm.xlu0 %4113, %v4092
    %v4115 = vpop.permute.xlu0 %4114
    %4118 = vset.pattern.permute.xlu0 0
    %4119 = vperm.xlu0 %4118, %v4093
    %v4120 = vpop.permute.xlu0 %4119
    %4123 = vset.pattern.permute.xlu0 0
    %4124 = vperm.xlu0 %4123, %v4094
    %v4125 = vpop.permute.xlu0 %4124
    %4128 = vset.pattern.permute.xlu0 0
    %4129 = vperm.xlu0 %4128, %v4095
    %v4130 = vpop.permute.xlu0 %4129
    %4133 = vset.pattern.permute.xlu0 0
    %4134 = vperm.xlu0 %4133, %v4096
    %v4135 = vpop.permute.xlu0 %4134
    %4138 = vset.pattern.permute.xlu0 0
    %4139 = vperm.xlu0 %4138, %v4097
    %v4140 = vpop.permute.xlu0 %4139
    %4143 = vset.pattern.permute.xlu0 0
    %4144 = vperm.xlu0 %4143, %v4098
    %v4145 = vpop.permute.xlu0 %4144
    %4148 = vset.pattern.permute.xlu0 0
    %4149 = vperm.xlu0 %4148, %v4099
    %v4150 = vpop.permute.xlu0 %4149
    %4153 = vset.pattern.permute.xlu0 0
    %4154 = vperm.xlu0 %4153, %v4100
    %v4155 = vpop.permute.xlu0 %4154
    %4158 = vset.pattern.permute.xlu0 0
    %4159 = vperm.xlu0 %4158, %v4101
    %v4160 = vpop.permute.xlu0 %4159
    %4163 = vset.pattern.permute.xlu0 0
    %4164 = vperm.xlu0 %4163, %v4102
    %v4165 = vpop.permute.xlu0 %4164
    %4168 = vset.pattern.permute.xlu0 0
    %4169 = vperm.xlu0 %4168, %v4103
    %v4170 = vpop.permute.xlu0 %4169
    %4173 = vset.pattern.permute.xlu0 0
    %4174 = vperm.xlu0 %4173, %v4104
    %v4175 = vpop.permute.xlu0 %4174
    %4178 = vset.pattern.permute.xlu0 0
    %4179 = vperm.xlu0 %4178, %v4105
    %v4180 = vpop.permute.xlu0 %4179
    %4183 = vset.pattern.permute.xlu0 0
    %4184 = vperm.xlu0 %4183, %v4106
    %v4185 = vpop.permute.xlu0 %4184
    %v4187 = vmul.f32 %v3645, %v4110
    %v4188 = vmul.f32 %v3650, %v4115
    %v4189 = vmul.f32 %v3655, %v4120
    %v4190 = vmul.f32 %v3660, %v4125
    %v4191 = vmul.f32 %v3665, %v4130
    %v4192 = vmul.f32 %v3670, %v4135
    %v4193 = vmul.f32 %v3675, %v4140
    %v4194 = vmul.f32 %v3680, %v4145
    %v4195 = vmul.f32 %v3685, %v4150
    %v4196 = vmul.f32 %v3690, %v4155
    %v4197 = vmul.f32 %v3695, %v4160
    %v4198 = vmul.f32 %v3700, %v4165
    %v4199 = vmul.f32 %v3705, %v4170
    %v4200 = vmul.f32 %v3710, %v4175
    %v4201 = vmul.f32 %v3715, %v4180
    %v4202 = vmul.f32 %v3720, %v4185
    %4204 = vset.pattern.permute.xlu0 0
    %4205 = vperm.xlu0 %4204, %v3835
    %v4206 = vpop.permute.xlu0 %4205
    %4209 = vset.pattern.permute.xlu0 0
    %4210 = vperm.xlu0 %4209, %v3836
    %v4211 = vpop.permute.xlu0 %4210
    %4214 = vset.pattern.permute.xlu0 0
    %4215 = vperm.xlu0 %4214, %v3837
    %v4216 = vpop.permute.xlu0 %4215
    %4219 = vset.pattern.permute.xlu0 0
    %4220 = vperm.xlu0 %4219, %v3838
    %v4221 = vpop.permute.xlu0 %4220
    %4224 = vset.pattern.permute.xlu0 0
    %4225 = vperm.xlu0 %4224, %v3839
    %v4226 = vpop.permute.xlu0 %4225
    %4229 = vset.pattern.permute.xlu0 0
    %4230 = vperm.xlu0 %4229, %v3840
    %v4231 = vpop.permute.xlu0 %4230
    %4234 = vset.pattern.permute.xlu0 0
    %4235 = vperm.xlu0 %4234, %v3841
    %v4236 = vpop.permute.xlu0 %4235
    %4239 = vset.pattern.permute.xlu0 0
    %4240 = vperm.xlu0 %4239, %v3842
    %v4241 = vpop.permute.xlu0 %4240
    %4244 = vset.pattern.permute.xlu0 0
    %4245 = vperm.xlu0 %4244, %v3843
    %v4246 = vpop.permute.xlu0 %4245
    %4249 = vset.pattern.permute.xlu0 0
    %4250 = vperm.xlu0 %4249, %v3844
    %v4251 = vpop.permute.xlu0 %4250
    %4254 = vset.pattern.permute.xlu0 0
    %4255 = vperm.xlu0 %4254, %v3845
    %v4256 = vpop.permute.xlu0 %4255
    %4259 = vset.pattern.permute.xlu0 0
    %4260 = vperm.xlu0 %4259, %v3846
    %v4261 = vpop.permute.xlu0 %4260
    %4264 = vset.pattern.permute.xlu0 0
    %4265 = vperm.xlu0 %4264, %v3847
    %v4266 = vpop.permute.xlu0 %4265
    %4269 = vset.pattern.permute.xlu0 0
    %4270 = vperm.xlu0 %4269, %v3848
    %v4271 = vpop.permute.xlu0 %4270
    %4274 = vset.pattern.permute.xlu0 0
    %4275 = vperm.xlu0 %4274, %v3849
    %v4276 = vpop.permute.xlu0 %4275
    %4279 = vset.pattern.permute.xlu0 0
    %4280 = vperm.xlu0 %4279, %v3850
    %v4281 = vpop.permute.xlu0 %4280
    %v4283 = vsel %vm191, %v4206, %v4187
    %v4284 = vsel %vm191, %v4211, %v4188
    %v4285 = vsel %vm191, %v4216, %v4189
    %v4286 = vsel %vm191, %v4221, %v4190
    %v4287 = vsel %vm191, %v4226, %v4191
    %v4288 = vsel %vm191, %v4231, %v4192
    %v4289 = vsel %vm191, %v4236, %v4193
    %v4290 = vsel %vm191, %v4241, %v4194
    %v4291 = vsel %vm191, %v4246, %v4195
    %v4292 = vsel %vm191, %v4251, %v4196
    %v4293 = vsel %vm191, %v4256, %v4197
    %v4294 = vsel %vm191, %v4261, %v4198
    %v4295 = vsel %vm191, %v4266, %v4199
    %v4296 = vsel %vm191, %v4271, %v4200
    %v4297 = vsel %vm191, %v4276, %v4201
    %v4298 = vsel %vm191, %v4281, %v4202
    %4299 = vmatprep.subr.mxu0 0.0
    %4300 = vmatpush1.msra.mxu0 %v4283
    %4301 = vmatprep.subr.mxu0 0.0
    %4302 = vmatpush1.msra.mxu0 %v4284
    %4303 = vmatprep.subr.mxu0 0.0
    %4304 = vmatpush1.msra.mxu0 %v4285
    %4305 = vmatprep.subr.mxu0 0.0
    %4306 = vmatpush1.msra.mxu0 %v4286
    %4307 = vmatprep.subr.mxu0 0.0
    %4308 = vmatpush1.msra.mxu0 %v4287
    %4309 = vmatprep.subr.mxu0 0.0
    %4310 = vmatpush1.msra.mxu0 %v4288
    %4311 = vmatprep.subr.mxu0 0.0
    %4312 = vmatpush1.msra.mxu0 %v4289
    %4313 = vmatprep.subr.mxu0 0.0
    %4314 = vmatpush1.msra.mxu0 %v4290
    %4315 = vmatprep.subr.mxu0 0.0
    %4316 = vmatpush1.msra.mxu0 %v4291
    %4317 = vmatprep.subr.mxu0 0.0
    %4318 = vmatpush1.msra.mxu0 %v4292
    %4319 = vmatprep.subr.mxu0 0.0
    %4320 = vmatpush1.msra.mxu0 %v4293
    %4321 = vmatprep.subr.mxu0 0.0
    %4322 = vmatpush1.msra.mxu0 %v4294
    %4323 = vmatprep.subr.mxu0 0.0
    %4324 = vmatpush1.msra.mxu0 %v4295
    %4325 = vmatprep.subr.mxu0 0.0
    %4326 = vmatpush1.msra.mxu0 %v4296
    %4327 = vmatprep.subr.mxu0 0.0
    %4328 = vmatpush1.msra.mxu0 %v4297
    %4329 = vmatprep.subr.mxu0 0.0
    %4330 = vmatpush1.msra.mxu0 %v4298
    %4331 = vmatprep.subr.mxu0 0.0
    %4332 = vmatpush1.msra.mxu0 0.0
    %4333 = vmatprep.subr.mxu0 0.0
    %4334 = vmatpush1.msra.mxu0 0.0
    %4335 = vmatprep.subr.mxu0 0.0
    %4336 = vmatpush1.msra.mxu0 0.0
    %4337 = vmatprep.subr.mxu0 0.0
    %4338 = vmatpush1.msra.mxu0 0.0
    %4339 = vmatprep.subr.mxu0 0.0
    %4340 = vmatpush1.msra.mxu0 0.0
    %4341 = vmatprep.subr.mxu0 0.0
    %4342 = vmatpush1.msra.mxu0 0.0
    %4343 = vmatprep.subr.mxu0 0.0
    %4344 = vmatpush1.msra.mxu0 0.0
    %4345 = vmatprep.subr.mxu0 0.0
    %4346 = vmatpush1.msra.mxu0 0.0
    %4347 = vmatprep.subr.mxu0 0.0
    %4348 = vmatpush1.msra.mxu0 0.0
    %4349 = vmatprep.subr.mxu0 0.0
    %4350 = vmatpush1.msra.mxu0 0.0
    %4351 = vmatprep.subr.mxu0 0.0
    %4352 = vmatpush1.msra.mxu0 0.0
    %4353 = vmatprep.subr.mxu0 0.0
    %4354 = vmatpush1.msra.mxu0 0.0
    %4355 = vmatprep.subr.mxu0 0.0
    %4356 = vmatpush1.msra.mxu0 0.0
    %4357 = vmatprep.subr.mxu0 0.0
    %4358 = vmatpush1.msra.mxu0 0.0
    %4359 = vmatprep.subr.mxu0 0.0
    %4360 = vmatpush1.msra.mxu0 0.0
    %4361 = vmatprep.subr.mxu0 0.0
    %4362 = vmatpush1.msra.mxu0 0.0
    %4363 = vmatprep.mubr.f32.mxu0 0.0
    %4364 = vmatmul.mubr.f32.gmra.mrb[0].mxu0 %v2695
    %v4365 = vpop.f32.mrb[0].mxu0
    %v4366 = vadd.f32 0.0, %v4365
    %v4367 = vpop.f32.mrb[0].mxu0
    %4368 = vmatprep.mubr.f32.mxu0 0.0
    %4369 = vmatmul.mubr.f32.gmra.mrb[0].mxu0 %v2696
    %v4370 = vpop.f32.mrb[0].mxu0
    %v4371 = vadd.f32 0.0, %v4370
    %v4372 = vpop.f32.mrb[0].mxu0
    %4373 = vmatprep.mubr.f32.mxu0 0.0
    %4374 = vmatmul.mubr.f32.gmra.mrb[0].mxu0 %v2697
    %v4375 = vpop.f32.mrb[0].mxu0
    %v4376 = vadd.f32 0.0, %v4375
    %v4377 = vpop.f32.mrb[0].mxu0
    %4378 = vmatprep.mubr.f32.mxu0 0.0
    %4379 = vmatmul.mubr.f32.gmra.mrb[0].mxu0 %v2698
    %v4380 = vpop.f32.mrb[0].mxu0
    %v4381 = vadd.f32 0.0, %v4380
    %v4382 = vpop.f32.mrb[0].mxu0
    %4383 = vmatprep.mubr.f32.mxu0 0.0
    %4384 = vmatmul.mubr.f32.gmra.mrb[0].mxu0 %v2699
    %v4385 = vpop.f32.mrb[0].mxu0
    %v4386 = vadd.f32 0.0, %v4385
    %v4387 = vpop.f32.mrb[0].mxu0
    %4388 = vmatprep.mubr.f32.mxu0 0.0
    %4389 = vmatmul.mubr.f32.gmra.mrb[0].mxu0 %v2700
    %v4390 = vpop.f32.mrb[0].mxu0
    %v4391 = vadd.f32 0.0, %v4390
    %v4392 = vpop.f32.mrb[0].mxu0
    %4393 = vmatprep.mubr.f32.mxu0 0.0
    %4394 = vmatmul.mubr.f32.gmra.mrb[0].mxu0 %v2701
    %v4395 = vpop.f32.mrb[0].mxu0
    %v4396 = vadd.f32 0.0, %v4395
    %v4397 = vpop.f32.mrb[0].mxu0
    %4398 = vmatprep.mubr.f32.mxu0 0.0
    %4399 = vmatmul.mubr.f32.gmra.mrb[0].mxu0 %v2702
    %v4400 = vpop.f32.mrb[0].mxu0
    %v4401 = vadd.f32 0.0, %v4400
    %v4402 = vpop.f32.mrb[0].mxu0
    %4403 = vmatprep.mubr.f32.mxu0 0.0
    %4404 = vmatmul.mubr.f32.gmra.mrb[0].mxu0 %v2703
    %v4405 = vpop.f32.mrb[0].mxu0
    %v4406 = vadd.f32 0.0, %v4405
    %v4407 = vpop.f32.mrb[0].mxu0
    %4408 = vmatprep.mubr.f32.mxu0 0.0
    %4409 = vmatmul.mubr.f32.gmra.mrb[0].mxu0 %v2704
    %v4410 = vpop.f32.mrb[0].mxu0
    %v4411 = vadd.f32 0.0, %v4410
    %v4412 = vpop.f32.mrb[0].mxu0
    %4413 = vmatprep.mubr.f32.mxu0 0.0
    %4414 = vmatmul.mubr.f32.gmra.mrb[0].mxu0 %v2705
    %v4415 = vpop.f32.mrb[0].mxu0
    %v4416 = vadd.f32 0.0, %v4415
    %v4417 = vpop.f32.mrb[0].mxu0
    %4418 = vmatprep.mubr.f32.mxu0 0.0
    %4419 = vmatmul.mubr.f32.gmra.mrb[0].mxu0 %v2706
    %v4420 = vpop.f32.mrb[0].mxu0
    %v4421 = vadd.f32 0.0, %v4420
    %v4422 = vpop.f32.mrb[0].mxu0
    %4423 = vmatprep.mubr.f32.mxu0 0.0
    %4424 = vmatmul.mubr.f32.gmra.mrb[0].mxu0 %v2707
    %v4425 = vpop.f32.mrb[0].mxu0
    %v4426 = vadd.f32 0.0, %v4425
    %v4427 = vpop.f32.mrb[0].mxu0
    %4428 = vmatprep.mubr.f32.mxu0 0.0
    %4429 = vmatmul.mubr.f32.gmra.mrb[0].mxu0 %v2708
    %v4430 = vpop.f32.mrb[0].mxu0
    %v4431 = vadd.f32 0.0, %v4430
    %v4432 = vpop.f32.mrb[0].mxu0
    %4433 = vmatprep.mubr.f32.mxu0 0.0
    %4434 = vmatmul.mubr.f32.gmra.mrb[0].mxu0 %v2709
    %v4435 = vpop.f32.mrb[0].mxu0
    %v4436 = vadd.f32 0.0, %v4435
    %v4437 = vpop.f32.mrb[0].mxu0
    %4438 = vmatprep.mubr.f32.mxu0 0.0
    %4439 = vmatmul.mubr.f32.gmra.mrb[0].mxu0 %v2710
    %v4440 = vpop.f32.mrb[0].mxu0
    %v4441 = vadd.f32 0.0, %v4440
    %v4442 = vpop.f32.mrb[0].mxu0
    %4443 = vdwg.mxu0
    %v4444 = vmul.f32 %v4366, %v4366
    %v4445 = vmul.f32 %v4371, %v4371
    %v4446 = vmul.f32 %v4376, %v4376
    %v4447 = vmul.f32 %v4381, %v4381
    %v4448 = vmul.f32 %v4386, %v4386
    %v4449 = vmul.f32 %v4391, %v4391
    %v4450 = vmul.f32 %v4396, %v4396
    %v4451 = vmul.f32 %v4401, %v4401
    %v4452 = vmul.f32 %v4406, %v4406
    %v4453 = vmul.f32 %v4411, %v4411
    %v4454 = vmul.f32 %v4416, %v4416
    %v4455 = vmul.f32 %v4421, %v4421
    %v4456 = vmul.f32 %v4426, %v4426
    %v4457 = vmul.f32 %v4431, %v4431
    %v4458 = vmul.f32 %v4436, %v4436
    %v4459 = vmul.f32 %v4441, %v4441
    %4460 = vadd.xlane.f32.xlu0 %v4444
    %v4461 = vpop.xlane.xlu0 %4460
    %4462 = vadd.xlane.f32.xlu0 %v4445
    %v4463 = vpop.xlane.xlu0 %4462
    %4464 = vadd.xlane.f32.xlu0 %v4446
    %v4465 = vpop.xlane.xlu0 %4464
    %4466 = vadd.xlane.f32.xlu0 %v4447
    %v4467 = vpop.xlane.xlu0 %4466
    %4468 = vadd.xlane.f32.xlu0 %v4448
    %v4469 = vpop.xlane.xlu0 %4468
    %4470 = vadd.xlane.f32.xlu0 %v4449
    %v4471 = vpop.xlane.xlu0 %4470
    %4472 = vadd.xlane.f32.xlu0 %v4450
    %v4473 = vpop.xlane.xlu0 %4472
    %4474 = vadd.xlane.f32.xlu0 %v4451
    %v4475 = vpop.xlane.xlu0 %4474
    %4476 = vadd.xlane.f32.xlu0 %v4452
    %v4477 = vpop.xlane.xlu0 %4476
    %4478 = vadd.xlane.f32.xlu0 %v4453
    %v4479 = vpop.xlane.xlu0 %4478
    %4480 = vadd.xlane.f32.xlu0 %v4454
    %v4481 = vpop.xlane.xlu0 %4480
    %4482 = vadd.xlane.f32.xlu0 %v4455
    %v4483 = vpop.xlane.xlu0 %4482
    %4484 = vadd.xlane.f32.xlu0 %v4456
    %v4485 = vpop.xlane.xlu0 %4484
    %4486 = vadd.xlane.f32.xlu0 %v4457
    %v4487 = vpop.xlane.xlu0 %4486
    %4488 = vadd.xlane.f32.xlu0 %v4458
    %v4489 = vpop.xlane.xlu0 %4488
    %4490 = vadd.xlane.f32.xlu0 %v4459
    %v4491 = vpop.xlane.xlu0 %4490
    %v4492 = vmul.f32 %v4366, 2.0
    %v4493 = vmul.f32 %v4371, 2.0
    %v4494 = vmul.f32 %v4376, 2.0
    %v4495 = vmul.f32 %v4381, 2.0
    %v4496 = vmul.f32 %v4386, 2.0
    %v4497 = vmul.f32 %v4391, 2.0
    %v4498 = vmul.f32 %v4396, 2.0
    %v4499 = vmul.f32 %v4401, 2.0
    %v4500 = vmul.f32 %v4406, 2.0
    %v4501 = vmul.f32 %v4411, 2.0
    %v4502 = vmul.f32 %v4416, 2.0
    %v4503 = vmul.f32 %v4421, 2.0
    %v4504 = vmul.f32 %v4426, 2.0
    %v4505 = vmul.f32 %v4431, 2.0
    %v4506 = vmul.f32 %v4436, 2.0
    %v4507 = vmul.f32 %v4441, 2.0
    %v4508 = vmul.f32 %v4492, %v4366
    %v4509 = vmul.f32 %v4493, %v4371
    %v4510 = vmul.f32 %v4494, %v4376
    %v4511 = vmul.f32 %v4495, %v4381
    %v4512 = vmul.f32 %v4496, %v4386
    %v4513 = vmul.f32 %v4497, %v4391
    %v4514 = vmul.f32 %v4498, %v4396
    %v4515 = vmul.f32 %v4499, %v4401
    %v4516 = vmul.f32 %v4500, %v4406
    %v4517 = vmul.f32 %v4501, %v4411
    %v4518 = vmul.f32 %v4502, %v4416
    %v4519 = vmul.f32 %v4503, %v4421
    %v4520 = vmul.f32 %v4504, %v4426
    %v4521 = vmul.f32 %v4505, %v4431
    %v4522 = vmul.f32 %v4506, %v4436
    %v4523 = vmul.f32 %v4507, %v4441
    %v4524 = vsub.f32 %v4461, %v4508
    %v4525 = vsub.f32 %v4463, %v4509
    %v4526 = vsub.f32 %v4465, %v4510
    %v4527 = vsub.f32 %v4467, %v4511
    %v4528 = vsub.f32 %v4469, %v4512
    %v4529 = vsub.f32 %v4471, %v4513
    %v4530 = vsub.f32 %v4473, %v4514
    %v4531 = vsub.f32 %v4475, %v4515
    %v4532 = vsub.f32 %v4477, %v4516
    %v4533 = vsub.f32 %v4479, %v4517
    %v4534 = vsub.f32 %v4481, %v4518
    %v4535 = vsub.f32 %v4483, %v4519
    %v4536 = vsub.f32 %v4485, %v4520
    %v4537 = vsub.f32 %v4487, %v4521
    %v4538 = vsub.f32 %v4489, %v4522
    %v4539 = vsub.f32 %v4491, %v4523
    %v4540 = vand.u32 2147483647, %v4524
    %v4541 = vand.u32 2147483647, %v4525
    %v4542 = vand.u32 2147483647, %v4526
    %v4543 = vand.u32 2147483647, %v4527
    %v4544 = vand.u32 2147483647, %v4528
    %v4545 = vand.u32 2147483647, %v4529
    %v4546 = vand.u32 2147483647, %v4530
    %v4547 = vand.u32 2147483647, %v4531
    %v4548 = vand.u32 2147483647, %v4532
    %v4549 = vand.u32 2147483647, %v4533
    %v4550 = vand.u32 2147483647, %v4534
    %v4551 = vand.u32 2147483647, %v4535
    %v4552 = vand.u32 2147483647, %v4536
    %v4553 = vand.u32 2147483647, %v4537
    %v4554 = vand.u32 2147483647, %v4538
    %v4555 = vand.u32 2147483647, %v4539
    %v4556 = vmax.f32 %v4540, 1e-08
    %v4557 = vmax.f32 %v4541, 1e-08
    %v4558 = vmax.f32 %v4542, 1e-08
    %v4559 = vmax.f32 %v4543, 1e-08
    %v4560 = vmax.f32 %v4544, 1e-08
    %v4561 = vmax.f32 %v4545, 1e-08
    %v4562 = vmax.f32 %v4546, 1e-08
    %v4563 = vmax.f32 %v4547, 1e-08
    %v4564 = vmax.f32 %v4548, 1e-08
    %v4565 = vmax.f32 %v4549, 1e-08
    %v4566 = vmax.f32 %v4550, 1e-08
    %v4567 = vmax.f32 %v4551, 1e-08
    %v4568 = vmax.f32 %v4552, 1e-08
    %v4569 = vmax.f32 %v4553, 1e-08
    %v4570 = vmax.f32 %v4554, 1e-08
    %v4571 = vmax.f32 %v4555, 1e-08
    %v4572 = vrsqrt.pop %v4556
    %v4573 = vrsqrt.pop %v4557
    %v4574 = vrsqrt.pop %v4558
    %v4575 = vrsqrt.pop %v4559
    %v4576 = vrsqrt.pop %v4560
    %v4577 = vrsqrt.pop %v4561
    %v4578 = vrsqrt.pop %v4562
    %v4579 = vrsqrt.pop %v4563
    %v4580 = vrsqrt.pop %v4564
    %v4581 = vrsqrt.pop %v4565
    %v4582 = vrsqrt.pop %v4566
    %v4583 = vrsqrt.pop %v4567
    %v4584 = vrsqrt.pop %v4568
    %v4585 = vrsqrt.pop %v4569
    %v4586 = vrsqrt.pop %v4570
    %v4587 = vrsqrt.pop %v4571
    %4589 = vset.pattern.permute.xlu0 0
    %4590 = vperm.xlu0 %4589, %v4572
    %v4591 = vpop.permute.xlu0 %4590
    %4594 = vset.pattern.permute.xlu0 0
    %4595 = vperm.xlu0 %4594, %v4573
    %v4596 = vpop.permute.xlu0 %4595
    %4599 = vset.pattern.permute.xlu0 0
    %4600 = vperm.xlu0 %4599, %v4574
    %v4601 = vpop.permute.xlu0 %4600
    %4604 = vset.pattern.permute.xlu0 0
    %4605 = vperm.xlu0 %4604, %v4575
    %v4606 = vpop.permute.xlu0 %4605
    %4609 = vset.pattern.permute.xlu0 0
    %4610 = vperm.xlu0 %4609, %v4576
    %v4611 = vpop.permute.xlu0 %4610
    %4614 = vset.pattern.permute.xlu0 0
    %4615 = vperm.xlu0 %4614, %v4577
    %v4616 = vpop.permute.xlu0 %4615
    %4619 = vset.pattern.permute.xlu0 0
    %4620 = vperm.xlu0 %4619, %v4578
    %v4621 = vpop.permute.xlu0 %4620
    %4624 = vset.pattern.permute.xlu0 0
    %4625 = vperm.xlu0 %4624, %v4579
    %v4626 = vpop.permute.xlu0 %4625
    %4629 = vset.pattern.permute.xlu0 0
    %4630 = vperm.xlu0 %4629, %v4580
    %v4631 = vpop.permute.xlu0 %4630
    %4634 = vset.pattern.permute.xlu0 0
    %4635 = vperm.xlu0 %4634, %v4581
    %v4636 = vpop.permute.xlu0 %4635
    %4639 = vset.pattern.permute.xlu0 0
    %4640 = vperm.xlu0 %4639, %v4582
    %v4641 = vpop.permute.xlu0 %4640
    %4644 = vset.pattern.permute.xlu0 0
    %4645 = vperm.xlu0 %4644, %v4583
    %v4646 = vpop.permute.xlu0 %4645
    %4649 = vset.pattern.permute.xlu0 0
    %4650 = vperm.xlu0 %4649, %v4584
    %v4651 = vpop.permute.xlu0 %4650
    %4654 = vset.pattern.permute.xlu0 0
    %4655 = vperm.xlu0 %4654, %v4585
    %v4656 = vpop.permute.xlu0 %4655
    %4659 = vset.pattern.permute.xlu0 0
    %4660 = vperm.xlu0 %4659, %v4586
    %v4661 = vpop.permute.xlu0 %4660
    %4664 = vset.pattern.permute.xlu0 0
    %4665 = vperm.xlu0 %4664, %v4587
    %v4666 = vpop.permute.xlu0 %4665
    %v4668 = vmul.f32 %v4366, %v4591
    %v4669 = vmul.f32 %v4371, %v4596
    %v4670 = vmul.f32 %v4376, %v4601
    %v4671 = vmul.f32 %v4381, %v4606
    %v4672 = vmul.f32 %v4386, %v4611
    %v4673 = vmul.f32 %v4391, %v4616
    %v4674 = vmul.f32 %v4396, %v4621
    %v4675 = vmul.f32 %v4401, %v4626
    %v4676 = vmul.f32 %v4406, %v4631
    %v4677 = vmul.f32 %v4411, %v4636
    %v4678 = vmul.f32 %v4416, %v4641
    %v4679 = vmul.f32 %v4421, %v4646
    %v4680 = vmul.f32 %v4426, %v4651
    %v4681 = vmul.f32 %v4431, %v4656
    %v4682 = vmul.f32 %v4436, %v4661
    %v4683 = vmul.f32 %v4441, %v4666
    %vm4684 = vcmp.le.s32.totalorder %v173, 3
    %vm4685 = vmand %vm1854, %vm4684
    %v4686 = vmul.f32 %v4668, 5.0
    %v4687 = vmul.f32 %v4669, 5.0
    %v4688 = vmul.f32 %v4670, 5.0
    %v4689 = vmul.f32 %v4671, 5.0
    %v4690 = vmul.f32 %v4672, 5.0
    %v4691 = vmul.f32 %v4673, 5.0
    %v4692 = vmul.f32 %v4674, 5.0
    %v4693 = vmul.f32 %v4675, 5.0
    %v4694 = vmul.f32 %v4676, 5.0
    %v4695 = vmul.f32 %v4677, 5.0
    %v4696 = vmul.f32 %v4678, 5.0
    %v4697 = vmul.f32 %v4679, 5.0
    %v4698 = vmul.f32 %v4680, 5.0
    %v4699 = vmul.f32 %v4681, 5.0
    %v4700 = vmul.f32 %v4682, 5.0
    %v4701 = vmul.f32 %v4683, 5.0
    %v4702 = vsel %vm4685, %v4686, -1e+30
    %v4703 = vsel %vm4685, %v4687, -1e+30
    %v4704 = vsel %vm4685, %v4688, -1e+30
    %v4705 = vsel %vm4685, %v4689, -1e+30
    %v4706 = vsel %vm4685, %v4690, -1e+30
    %v4707 = vsel %vm4685, %v4691, -1e+30
    %v4708 = vsel %vm4685, %v4692, -1e+30
    %v4709 = vsel %vm4685, %v4693, -1e+30
    %v4710 = vsel %vm4685, %v4694, -1e+30
    %v4711 = vsel %vm4685, %v4695, -1e+30
    %v4712 = vsel %vm4685, %v4696, -1e+30
    %v4713 = vsel %vm4685, %v4697, -1e+30
    %v4714 = vsel %vm4685, %v4698, -1e+30
    %v4715 = vsel %vm4685, %v4699, -1e+30
    %v4716 = vsel %vm4685, %v4700, -1e+30
    %v4717 = vsel %vm4685, %v4701, -1e+30
    %4718 = vmax.xlane.f32.xlu0 %v4702
    %v4719 = vpop.xlane.xlu0 %4718
    %4720 = vmax.xlane.f32.xlu0 %v4703
    %v4721 = vpop.xlane.xlu0 %4720
    %4722 = vmax.xlane.f32.xlu0 %v4704
    %v4723 = vpop.xlane.xlu0 %4722
    %4724 = vmax.xlane.f32.xlu0 %v4705
    %v4725 = vpop.xlane.xlu0 %4724
    %4726 = vmax.xlane.f32.xlu0 %v4706
    %v4727 = vpop.xlane.xlu0 %4726
    %4728 = vmax.xlane.f32.xlu0 %v4707
    %v4729 = vpop.xlane.xlu0 %4728
    %4730 = vmax.xlane.f32.xlu0 %v4708
    %v4731 = vpop.xlane.xlu0 %4730
    %4732 = vmax.xlane.f32.xlu0 %v4709
    %v4733 = vpop.xlane.xlu0 %4732
    %4734 = vmax.xlane.f32.xlu0 %v4710
    %v4735 = vpop.xlane.xlu0 %4734
    %4736 = vmax.xlane.f32.xlu0 %v4711
    %v4737 = vpop.xlane.xlu0 %4736
    %4738 = vmax.xlane.f32.xlu0 %v4712
    %v4739 = vpop.xlane.xlu0 %4738
    %4740 = vmax.xlane.f32.xlu0 %v4713
    %v4741 = vpop.xlane.xlu0 %4740
    %4742 = vmax.xlane.f32.xlu0 %v4714
    %v4743 = vpop.xlane.xlu0 %4742
    %4744 = vmax.xlane.f32.xlu0 %v4715
    %v4745 = vpop.xlane.xlu0 %4744
    %4746 = vmax.xlane.f32.xlu0 %v4716
    %v4747 = vpop.xlane.xlu0 %4746
    %4748 = vmax.xlane.f32.xlu0 %v4717
    %v4749 = vpop.xlane.xlu0 %4748
    %v4750 = vsub.f32 %v4702, %v4719
    %v4751 = vsub.f32 %v4703, %v4721
    %v4752 = vsub.f32 %v4704, %v4723
    %v4753 = vsub.f32 %v4705, %v4725
    %v4754 = vsub.f32 %v4706, %v4727
    %v4755 = vsub.f32 %v4707, %v4729
    %v4756 = vsub.f32 %v4708, %v4731
    %v4757 = vsub.f32 %v4709, %v4733
    %v4758 = vsub.f32 %v4710, %v4735
    %v4759 = vsub.f32 %v4711, %v4737
    %v4760 = vsub.f32 %v4712, %v4739
    %v4761 = vsub.f32 %v4713, %v4741
    %v4762 = vsub.f32 %v4714, %v4743
    %v4763 = vsub.f32 %v4715, %v4745
    %v4764 = vsub.f32 %v4716, %v4747
    %v4765 = vsub.f32 %v4717, %v4749
    %v4766 = vmul.f32 %v4750, 1.442695
    %v4767 = vpow.pop %v4766
    %v4768 = vmul.f32 %v4751, 1.442695
    %v4769 = vpow.pop %v4768
    %v4770 = vmul.f32 %v4752, 1.442695
    %v4771 = vpow.pop %v4770
    %v4772 = vmul.f32 %v4753, 1.442695
    %v4773 = vpow.pop %v4772
    %v4774 = vmul.f32 %v4754, 1.442695
    %v4775 = vpow.pop %v4774
    %v4776 = vmul.f32 %v4755, 1.442695
    %v4777 = vpow.pop %v4776
    %v4778 = vmul.f32 %v4756, 1.442695
    %v4779 = vpow.pop %v4778
    %v4780 = vmul.f32 %v4757, 1.442695
    %v4781 = vpow.pop %v4780
    %v4782 = vmul.f32 %v4758, 1.442695
    %v4783 = vpow.pop %v4782
    %v4784 = vmul.f32 %v4759, 1.442695
    %v4785 = vpow.pop %v4784
    %v4786 = vmul.f32 %v4760, 1.442695
    %v4787 = vpow.pop %v4786
    %v4788 = vmul.f32 %v4761, 1.442695
    %v4789 = vpow.pop %v4788
    %v4790 = vmul.f32 %v4762, 1.442695
    %v4791 = vpow.pop %v4790
    %v4792 = vmul.f32 %v4763, 1.442695
    %v4793 = vpow.pop %v4792
    %v4794 = vmul.f32 %v4764, 1.442695
    %v4795 = vpow.pop %v4794
    %v4796 = vmul.f32 %v4765, 1.442695
    %v4797 = vpow.pop %v4796
    %v4798 = vsel %vm4685, %v4767, 0.0
    %v4799 = vsel %vm4685, %v4769, 0.0
    %v4800 = vsel %vm4685, %v4771, 0.0
    %v4801 = vsel %vm4685, %v4773, 0.0
    %v4802 = vsel %vm4685, %v4775, 0.0
    %v4803 = vsel %vm4685, %v4777, 0.0
    %v4804 = vsel %vm4685, %v4779, 0.0
    %v4805 = vsel %vm4685, %v4781, 0.0
    %v4806 = vsel %vm4685, %v4783, 0.0
    %v4807 = vsel %vm4685, %v4785, 0.0
    %v4808 = vsel %vm4685, %v4787, 0.0
    %v4809 = vsel %vm4685, %v4789, 0.0
    %v4810 = vsel %vm4685, %v4791, 0.0
    %v4811 = vsel %vm4685, %v4793, 0.0
    %v4812 = vsel %vm4685, %v4795, 0.0
    %v4813 = vsel %vm4685, %v4797, 0.0
    %4814 = vadd.xlane.f32.xlu0 %v4798
    %v4815 = vpop.xlane.xlu0 %4814
    %4816 = vadd.xlane.f32.xlu0 %v4799
    %v4817 = vpop.xlane.xlu0 %4816
    %4818 = vadd.xlane.f32.xlu0 %v4800
    %v4819 = vpop.xlane.xlu0 %4818
    %4820 = vadd.xlane.f32.xlu0 %v4801
    %v4821 = vpop.xlane.xlu0 %4820
    %4822 = vadd.xlane.f32.xlu0 %v4802
    %v4823 = vpop.xlane.xlu0 %4822
    %4824 = vadd.xlane.f32.xlu0 %v4803
    %v4825 = vpop.xlane.xlu0 %4824
    %4826 = vadd.xlane.f32.xlu0 %v4804
    %v4827 = vpop.xlane.xlu0 %4826
    %4828 = vadd.xlane.f32.xlu0 %v4805
    %v4829 = vpop.xlane.xlu0 %4828
    %4830 = vadd.xlane.f32.xlu0 %v4806
    %v4831 = vpop.xlane.xlu0 %4830
    %4832 = vadd.xlane.f32.xlu0 %v4807
    %v4833 = vpop.xlane.xlu0 %4832
    %4834 = vadd.xlane.f32.xlu0 %v4808
    %v4835 = vpop.xlane.xlu0 %4834
    %4836 = vadd.xlane.f32.xlu0 %v4809
    %v4837 = vpop.xlane.xlu0 %4836
    %4838 = vadd.xlane.f32.xlu0 %v4810
    %v4839 = vpop.xlane.xlu0 %4838
    %4840 = vadd.xlane.f32.xlu0 %v4811
    %v4841 = vpop.xlane.xlu0 %4840
    %4842 = vadd.xlane.f32.xlu0 %v4812
    %v4843 = vpop.xlane.xlu0 %4842
    %4844 = vadd.xlane.f32.xlu0 %v4813
    %v4845 = vpop.xlane.xlu0 %4844
    %v4846 = vrcp.pop %v4815
    %v4847 = vrcp.pop %v4817
    %v4848 = vrcp.pop %v4819
    %v4849 = vrcp.pop %v4821
    %v4850 = vrcp.pop %v4823
    %v4851 = vrcp.pop %v4825
    %v4852 = vrcp.pop %v4827
    %v4853 = vrcp.pop %v4829
    %v4854 = vrcp.pop %v4831
    %v4855 = vrcp.pop %v4833
    %v4856 = vrcp.pop %v4835
    %v4857 = vrcp.pop %v4837
    %v4858 = vrcp.pop %v4839
    %v4859 = vrcp.pop %v4841
    %v4860 = vrcp.pop %v4843
    %v4861 = vrcp.pop %v4845
    %v4862 = vmul.f32 %v4798, %v4846
    %v4863 = vmul.f32 %v4799, %v4847
    %v4864 = vmul.f32 %v4800, %v4848
    %v4865 = vmul.f32 %v4801, %v4849
    %v4866 = vmul.f32 %v4802, %v4850
    %v4867 = vmul.f32 %v4803, %v4851
    %v4868 = vmul.f32 %v4804, %v4852
    %v4869 = vmul.f32 %v4805, %v4853
    %v4870 = vmul.f32 %v4806, %v4854
    %v4871 = vmul.f32 %v4807, %v4855
    %v4872 = vmul.f32 %v4808, %v4856
    %v4873 = vmul.f32 %v4809, %v4857
    %v4874 = vmul.f32 %v4810, %v4858
    %v4875 = vmul.f32 %v4811, %v4859
    %v4876 = vmul.f32 %v4812, %v4860
    %v4877 = vmul.f32 %v4813, %v4861
    %4878 = vmatprep.subr.mxu0 0.0
    %4879 = vmatpush1.msra.mxu0 %v4862
    %4880 = vmatprep.subr.mxu0 0.0
    %4881 = vmatpush1.msra.mxu0 %v4863
    %4882 = vmatprep.subr.mxu0 0.0
    %4883 = vmatpush1.msra.mxu0 %v4864
    %4884 = vmatprep.subr.mxu0 0.0
    %4885 = vmatpush1.msra.mxu0 %v4865
    %4886 = vmatprep.subr.mxu0 0.0
    %4887 = vmatpush1.msra.mxu0 %v4866
    %4888 = vmatprep.subr.mxu0 0.0
    %4889 = vmatpush1.msra.mxu0 %v4867
    %4890 = vmatprep.subr.mxu0 0.0
    %4891 = vmatpush1.msra.mxu0 %v4868
    %4892 = vmatprep.subr.mxu0 0.0
    %4893 = vmatpush1.msra.mxu0 %v4869
    %4894 = vmatprep.subr.mxu0 0.0
    %4895 = vmatpush1.msra.mxu0 %v4870
    %4896 = vmatprep.subr.mxu0 0.0
    %4897 = vmatpush1.msra.mxu0 %v4871
    %4898 = vmatprep.subr.mxu0 0.0
    %4899 = vmatpush1.msra.mxu0 %v4872
    %4900 = vmatprep.subr.mxu0 0.0
    %4901 = vmatpush1.msra.mxu0 %v4873
    %4902 = vmatprep.subr.mxu0 0.0
    %4903 = vmatpush1.msra.mxu0 %v4874
    %4904 = vmatprep.subr.mxu0 0.0
    %4905 = vmatpush1.msra.mxu0 %v4875
    %4906 = vmatprep.subr.mxu0 0.0
    %4907 = vmatpush1.msra.mxu0 %v4876
    %4908 = vmatprep.subr.mxu0 0.0
    %4909 = vmatpush1.msra.mxu0 %v4877
    %4910 = vmatprep.subr.mxu0 0.0
    %4911 = vmatpush1.msra.mxu0 0.0
    %4912 = vmatprep.subr.mxu0 0.0
    %4913 = vmatpush1.msra.mxu0 0.0
    %4914 = vmatprep.subr.mxu0 0.0
    %4915 = vmatpush1.msra.mxu0 0.0
    %4916 = vmatprep.subr.mxu0 0.0
    %4917 = vmatpush1.msra.mxu0 0.0
    %4918 = vmatprep.subr.mxu0 0.0
    %4919 = vmatpush1.msra.mxu0 0.0
    %4920 = vmatprep.subr.mxu0 0.0
    %4921 = vmatpush1.msra.mxu0 0.0
    %4922 = vmatprep.subr.mxu0 0.0
    %4923 = vmatpush1.msra.mxu0 0.0
    %4924 = vmatprep.subr.mxu0 0.0
    %4925 = vmatpush1.msra.mxu0 0.0
    %4926 = vmatprep.subr.mxu0 0.0
    %4927 = vmatpush1.msra.mxu0 0.0
    %4928 = vmatprep.subr.mxu0 0.0
    %4929 = vmatpush1.msra.mxu0 0.0
    %4930 = vmatprep.subr.mxu0 0.0
    %4931 = vmatpush1.msra.mxu0 0.0
    %4932 = vmatprep.subr.mxu0 0.0
    %4933 = vmatpush1.msra.mxu0 0.0
    %4934 = vmatprep.subr.mxu0 0.0
    %4935 = vmatpush1.msra.mxu0 0.0
    %4936 = vmatprep.subr.mxu0 0.0
    %4937 = vmatpush1.msra.mxu0 0.0
    %4938 = vmatprep.subr.mxu0 0.0
    %4939 = vmatpush1.msra.mxu0 0.0
    %4940 = vmatprep.subr.mxu0 0.0
    %4941 = vmatpush1.msra.mxu0 0.0
    %4942 = vmatprep.mubr.f32.mxu0 0.0
    %4943 = vmatmul.mubr.f32.gmra.mrb[0].mxu0 %v2695
    %v4944 = vpop.f32.mrb[0].mxu0
    %v4945 = vadd.f32 0.0, %v4944
    %v4946 = vpop.f32.mrb[0].mxu0
    %4947 = vmatprep.mubr.f32.mxu0 0.0
    %4948 = vmatmul.mubr.f32.gmra.mrb[0].mxu0 %v2696
    %v4949 = vpop.f32.mrb[0].mxu0
    %v4950 = vadd.f32 0.0, %v4949
    %v4951 = vpop.f32.mrb[0].mxu0
    %4952 = vmatprep.mubr.f32.mxu0 0.0
    %4953 = vmatmul.mubr.f32.gmra.mrb[0].mxu0 %v2697
    %v4954 = vpop.f32.mrb[0].mxu0
    %v4955 = vadd.f32 0.0, %v4954
    %v4956 = vpop.f32.mrb[0].mxu0
    %4957 = vmatprep.mubr.f32.mxu0 0.0
    %4958 = vmatmul.mubr.f32.gmra.mrb[0].mxu0 %v2698
    %v4959 = vpop.f32.mrb[0].mxu0
    %v4960 = vadd.f32 0.0, %v4959
    %v4961 = vpop.f32.mrb[0].mxu0
    %4962 = vmatprep.mubr.f32.mxu0 0.0
    %4963 = vmatmul.mubr.f32.gmra.mrb[0].mxu0 %v2699
    %v4964 = vpop.f32.mrb[0].mxu0
    %v4965 = vadd.f32 0.0, %v4964
    %v4966 = vpop.f32.mrb[0].mxu0
    %4967 = vmatprep.mubr.f32.mxu0 0.0
    %4968 = vmatmul.mubr.f32.gmra.mrb[0].mxu0 %v2700
    %v4969 = vpop.f32.mrb[0].mxu0
    %v4970 = vadd.f32 0.0, %v4969
    %v4971 = vpop.f32.mrb[0].mxu0
    %4972 = vmatprep.mubr.f32.mxu0 0.0
    %4973 = vmatmul.mubr.f32.gmra.mrb[0].mxu0 %v2701
    %v4974 = vpop.f32.mrb[0].mxu0
    %v4975 = vadd.f32 0.0, %v4974
    %v4976 = vpop.f32.mrb[0].mxu0
    %4977 = vmatprep.mubr.f32.mxu0 0.0
    %4978 = vmatmul.mubr.f32.gmra.mrb[0].mxu0 %v2702
    %v4979 = vpop.f32.mrb[0].mxu0
    %v4980 = vadd.f32 0.0, %v4979
    %v4981 = vpop.f32.mrb[0].mxu0
    %4982 = vmatprep.mubr.f32.mxu0 0.0
    %4983 = vmatmul.mubr.f32.gmra.mrb[0].mxu0 %v2703
    %v4984 = vpop.f32.mrb[0].mxu0
    %v4985 = vadd.f32 0.0, %v4984
    %v4986 = vpop.f32.mrb[0].mxu0
    %4987 = vmatprep.mubr.f32.mxu0 0.0
    %4988 = vmatmul.mubr.f32.gmra.mrb[0].mxu0 %v2704
    %v4989 = vpop.f32.mrb[0].mxu0
    %v4990 = vadd.f32 0.0, %v4989
    %v4991 = vpop.f32.mrb[0].mxu0
    %4992 = vmatprep.mubr.f32.mxu0 0.0
    %4993 = vmatmul.mubr.f32.gmra.mrb[0].mxu0 %v2705
    %v4994 = vpop.f32.mrb[0].mxu0
    %v4995 = vadd.f32 0.0, %v4994
    %v4996 = vpop.f32.mrb[0].mxu0
    %4997 = vmatprep.mubr.f32.mxu0 0.0
    %4998 = vmatmul.mubr.f32.gmra.mrb[0].mxu0 %v2706
    %v4999 = vpop.f32.mrb[0].mxu0
    %v5000 = vadd.f32 0.0, %v4999
    %v5001 = vpop.f32.mrb[0].mxu0
    %5002 = vmatprep.mubr.f32.mxu0 0.0
    %5003 = vmatmul.mubr.f32.gmra.mrb[0].mxu0 %v2707
    %v5004 = vpop.f32.mrb[0].mxu0
    %v5005 = vadd.f32 0.0, %v5004
    %v5006 = vpop.f32.mrb[0].mxu0
    %5007 = vmatprep.mubr.f32.mxu0 0.0
    %5008 = vmatmul.mubr.f32.gmra.mrb[0].mxu0 %v2708
    %v5009 = vpop.f32.mrb[0].mxu0
    %v5010 = vadd.f32 0.0, %v5009
    %v5011 = vpop.f32.mrb[0].mxu0
    %5012 = vmatprep.mubr.f32.mxu0 0.0
    %5013 = vmatmul.mubr.f32.gmra.mrb[0].mxu0 %v2709
    %v5014 = vpop.f32.mrb[0].mxu0
    %v5015 = vadd.f32 0.0, %v5014
    %v5016 = vpop.f32.mrb[0].mxu0
    %5017 = vmatprep.mubr.f32.mxu0 0.0
    %5018 = vmatmul.mubr.f32.gmra.mrb[0].mxu0 %v2710
    %v5019 = vpop.f32.mrb[0].mxu0
    %v5020 = vadd.f32 0.0, %v5019
    %v5021 = vpop.f32.mrb[0].mxu0
    %5022 = vdwg.mxu0
    %5023 = vxpose.xlu0.b32.start [1/16] %v4862, 128
    %5024 = vxpose.xlu0.b32.cont [2/16] %v4863, 128
    %5025 = vxpose.xlu0.b32.cont [3/16] %v4864, 128
    %5026 = vxpose.xlu0.b32.cont [4/16] %v4865, 128
    %5027 = vxpose.xlu0.b32.cont [5/16] %v4866, 128
    %5028 = vxpose.xlu0.b32.cont [6/16] %v4867, 128
    %5029 = vxpose.xlu0.b32.cont [7/16] %v4868, 128
    %5030 = vxpose.xlu0.b32.cont [8/16] %v4869, 128
    %5031 = vxpose.xlu0.b32.cont [9/16] %v4870, 128
    %5032 = vxpose.xlu0.b32.cont [10/16] %v4871, 128
    %5033 = vxpose.xlu0.b32.cont [11/16] %v4872, 128
    %5034 = vxpose.xlu0.b32.cont [12/16] %v4873, 128
    %5035 = vxpose.xlu0.b32.cont [13/16] %v4874, 128
    %5036 = vxpose.xlu0.b32.cont [14/16] %v4875, 128
    %5037 = vxpose.xlu0.b32.cont [15/16] %v4876, 128
    %5038 = vxpose.xlu0.b32.end [16/16] %v4877, 128
    %v5039 = vpop.trf.xlu0
    %v5040 = vpop.trf.xlu0
    %v5041 = vpop.trf.xlu0
    %v5042 = vpop.trf.xlu0
    %v5043 = vpop.trf.xlu0
    %v5044 = vpop.trf.xlu0
    %v5045 = vpop.trf.xlu0
    %v5046 = vpop.trf.xlu0
    %v5047 = vpop.trf.xlu0
    %v5048 = vpop.trf.xlu0
    %v5049 = vpop.trf.xlu0
    %v5050 = vpop.trf.xlu0
    %v5051 = vpop.trf.xlu0
    %v5052 = vpop.trf.xlu0
    %v5053 = vpop.trf.xlu0
    %v5054 = vpop.trf.xlu0
    %5055 = vmatprep.subr.mxu0 %v4945
    %5056 = vmatpush1.msra.mxu0 %v2455
    %5057 = vmatprep.subr.mxu0 %v4950
    %5058 = vmatpush1.msra.mxu0 %v2456
    %5059 = vmatprep.subr.mxu0 %v4955
    %5060 = vmatpush1.msra.mxu0 %v2457
    %5061 = vmatprep.subr.mxu0 %v4960
    %5062 = vmatpush1.msra.mxu0 %v2458
    %5063 = vmatprep.subr.mxu0 %v4965
    %5064 = vmatpush1.msra.mxu0 %v2459
    %5065 = vmatprep.subr.mxu0 %v4970
    %5066 = vmatpush1.msra.mxu0 %v2460
    %5067 = vmatprep.subr.mxu0 %v4975
    %5068 = vmatpush1.msra.mxu0 %v2461
    %5069 = vmatprep.subr.mxu0 %v4980
    %5070 = vmatpush1.msra.mxu0 %v2462
    %5071 = vmatprep.subr.mxu0 %v4985
    %5072 = vmatpush1.msra.mxu0 %v2463
    %5073 = vmatprep.subr.mxu0 %v4990
    %5074 = vmatpush1.msra.mxu0 %v2464
    %5075 = vmatprep.subr.mxu0 %v4995
    %5076 = vmatpush1.msra.mxu0 %v2465
    %5077 = vmatprep.subr.mxu0 %v5000
    %5078 = vmatpush1.msra.mxu0 %v2466
    %5079 = vmatprep.subr.mxu0 %v5005
    %5080 = vmatpush1.msra.mxu0 %v2467
    %5081 = vmatprep.subr.mxu0 %v5010
    %5082 = vmatpush1.msra.mxu0 %v2468
    %5083 = vmatprep.subr.mxu0 %v5015
    %5084 = vmatpush1.msra.mxu0 %v2469
    %5085 = vmatprep.subr.mxu0 %v5020
    %5086 = vmatpush1.msra.mxu0 %v2470
    %5087 = vmatprep.subr.mxu0 0.0
    %5088 = vmatpush1.msra.mxu0 0.0
    %5089 = vmatprep.subr.mxu0 0.0
    %5090 = vmatpush1.msra.mxu0 0.0
    %5091 = vmatprep.subr.mxu0 0.0
    %5092 = vmatpush1.msra.mxu0 0.0
    %5093 = vmatprep.subr.mxu0 0.0
    %5094 = vmatpush1.msra.mxu0 0.0
    %5095 = vmatprep.subr.mxu0 0.0
    %5096 = vmatpush1.msra.mxu0 0.0
    %5097 = vmatprep.subr.mxu0 0.0
    %5098 = vmatpush1.msra.mxu0 0.0
    %5099 = vmatprep.subr.mxu0 0.0
    %5100 = vmatpush1.msra.mxu0 0.0
    %5101 = vmatprep.subr.mxu0 0.0
    %5102 = vmatpush1.msra.mxu0 0.0
    %5103 = vmatprep.subr.mxu0 0.0
    %5104 = vmatpush1.msra.mxu0 0.0
    %5105 = vmatprep.subr.mxu0 0.0
    %5106 = vmatpush1.msra.mxu0 0.0
    %5107 = vmatprep.subr.mxu0 0.0
    %5108 = vmatpush1.msra.mxu0 0.0
    %5109 = vmatprep.subr.mxu0 0.0
    %5110 = vmatpush1.msra.mxu0 0.0
    %5111 = vmatprep.subr.mxu0 0.0
    %5112 = vmatpush1.msra.mxu0 0.0
    %5113 = vmatprep.subr.mxu0 0.0
    %5114 = vmatpush1.msra.mxu0 0.0
    %5115 = vmatprep.subr.mxu0 0.0
    %5116 = vmatpush1.msra.mxu0 0.0
    %5117 = vmatprep.subr.mxu0 0.0
    %5118 = vmatpush1.msra.mxu0 0.0
    %5119 = vmatprep.mubr.f32.mxu0 0.0
    %5120 = vmatmul.mubr.f32.gmra.mrb[0].mxu0 %v5039
    %v5121 = vpop.f32.mrb[0].mxu0
    %v5122 = vadd.f32 0.0, %v5121
    %v5123 = vpop.f32.mrb[0].mxu0
    %5124 = vmatprep.mubr.f32.mxu0 0.0
    %5125 = vmatmul.mubr.f32.gmra.mrb[0].mxu0 %v5040
    %v5126 = vpop.f32.mrb[0].mxu0
    %v5127 = vadd.f32 0.0, %v5126
    %v5128 = vpop.f32.mrb[0].mxu0
    %5129 = vmatprep.mubr.f32.mxu0 0.0
    %5130 = vmatmul.mubr.f32.gmra.mrb[0].mxu0 %v5041
    %v5131 = vpop.f32.mrb[0].mxu0
    %v5132 = vadd.f32 0.0, %v5131
    %v5133 = vpop.f32.mrb[0].mxu0
    %5134 = vmatprep.mubr.f32.mxu0 0.0
    %5135 = vmatmul.mubr.f32.gmra.mrb[0].mxu0 %v5042
    %v5136 = vpop.f32.mrb[0].mxu0
    %v5137 = vadd.f32 0.0, %v5136
    %v5138 = vpop.f32.mrb[0].mxu0
    %5139 = vmatprep.mubr.f32.mxu0 0.0
    %5140 = vmatmul.mubr.f32.gmra.mrb[0].mxu0 %v5043
    %v5141 = vpop.f32.mrb[0].mxu0
    %v5142 = vadd.f32 0.0, %v5141
    %v5143 = vpop.f32.mrb[0].mxu0
    %5144 = vmatprep.mubr.f32.mxu0 0.0
    %5145 = vmatmul.mubr.f32.gmra.mrb[0].mxu0 %v5044
    %v5146 = vpop.f32.mrb[0].mxu0
    %v5147 = vadd.f32 0.0, %v5146
    %v5148 = vpop.f32.mrb[0].mxu0
    %5149 = vmatprep.mubr.f32.mxu0 0.0
    %5150 = vmatmul.mubr.f32.gmra.mrb[0].mxu0 %v5045
    %v5151 = vpop.f32.mrb[0].mxu0
    %v5152 = vadd.f32 0.0, %v5151
    %v5153 = vpop.f32.mrb[0].mxu0
    %5154 = vmatprep.mubr.f32.mxu0 0.0
    %5155 = vmatmul.mubr.f32.gmra.mrb[0].mxu0 %v5046
    %v5156 = vpop.f32.mrb[0].mxu0
    %v5157 = vadd.f32 0.0, %v5156
    %v5158 = vpop.f32.mrb[0].mxu0
    %5159 = vmatprep.mubr.f32.mxu0 0.0
    %5160 = vmatmul.mubr.f32.gmra.mrb[0].mxu0 %v5047
    %v5161 = vpop.f32.mrb[0].mxu0
    %v5162 = vadd.f32 0.0, %v5161
    %v5163 = vpop.f32.mrb[0].mxu0
    %5164 = vmatprep.mubr.f32.mxu0 0.0
    %5165 = vmatmul.mubr.f32.gmra.mrb[0].mxu0 %v5048
    %v5166 = vpop.f32.mrb[0].mxu0
    %v5167 = vadd.f32 0.0, %v5166
    %v5168 = vpop.f32.mrb[0].mxu0
    %5169 = vmatprep.mubr.f32.mxu0 0.0
    %5170 = vmatmul.mubr.f32.gmra.mrb[0].mxu0 %v5049
    %v5171 = vpop.f32.mrb[0].mxu0
    %v5172 = vadd.f32 0.0, %v5171
    %v5173 = vpop.f32.mrb[0].mxu0
    %5174 = vmatprep.mubr.f32.mxu0 0.0
    %5175 = vmatmul.mubr.f32.gmra.mrb[0].mxu0 %v5050
    %v5176 = vpop.f32.mrb[0].mxu0
    %v5177 = vadd.f32 0.0, %v5176
    %v5178 = vpop.f32.mrb[0].mxu0
    %5179 = vmatprep.mubr.f32.mxu0 0.0
    %5180 = vmatmul.mubr.f32.gmra.mrb[0].mxu0 %v5051
    %v5181 = vpop.f32.mrb[0].mxu0
    %v5182 = vadd.f32 0.0, %v5181
    %v5183 = vpop.f32.mrb[0].mxu0
    %5184 = vmatprep.mubr.f32.mxu0 0.0
    %5185 = vmatmul.mubr.f32.gmra.mrb[0].mxu0 %v5052
    %v5186 = vpop.f32.mrb[0].mxu0
    %v5187 = vadd.f32 0.0, %v5186
    %v5188 = vpop.f32.mrb[0].mxu0
    %5189 = vmatprep.mubr.f32.mxu0 0.0
    %5190 = vmatmul.mubr.f32.gmra.mrb[0].mxu0 %v5053
    %v5191 = vpop.f32.mrb[0].mxu0
    %v5192 = vadd.f32 0.0, %v5191
    %v5193 = vpop.f32.mrb[0].mxu0
    %5194 = vmatprep.mubr.f32.mxu0 0.0
    %5195 = vmatmul.mubr.f32.gmra.mrb[0].mxu0 %v5054
    %v5196 = vpop.f32.mrb[0].mxu0
    %v5197 = vadd.f32 0.0, %v5196
    %v5198 = vpop.f32.mrb[0].mxu0
    %5199 = vdwg.mxu0
    %v5200 = vmul.f32 %v5122, %v5122
    %v5201 = vmul.f32 %v5127, %v5127
    %v5202 = vmul.f32 %v5132, %v5132
    %v5203 = vmul.f32 %v5137, %v5137
    %v5204 = vmul.f32 %v5142, %v5142
    %v5205 = vmul.f32 %v5147, %v5147
    %v5206 = vmul.f32 %v5152, %v5152
    %v5207 = vmul.f32 %v5157, %v5157
    %v5208 = vmul.f32 %v5162, %v5162
    %v5209 = vmul.f32 %v5167, %v5167
    %v5210 = vmul.f32 %v5172, %v5172
    %v5211 = vmul.f32 %v5177, %v5177
    %v5212 = vmul.f32 %v5182, %v5182
    %v5213 = vmul.f32 %v5187, %v5187
    %v5214 = vmul.f32 %v5192, %v5192
    %v5215 = vmul.f32 %v5197, %v5197
    %5216 = vadd.xlane.f32.xlu0 %v5200
    %v5217 = vpop.xlane.xlu0 %5216
    %5218 = vadd.xlane.f32.xlu0 %v5201
    %v5219 = vpop.xlane.xlu0 %5218
    %5220 = vadd.xlane.f32.xlu0 %v5202
    %v5221 = vpop.xlane.xlu0 %5220
    %5222 = vadd.xlane.f32.xlu0 %v5203
    %v5223 = vpop.xlane.xlu0 %5222
    %5224 = vadd.xlane.f32.xlu0 %v5204
    %v5225 = vpop.xlane.xlu0 %5224
    %5226 = vadd.xlane.f32.xlu0 %v5205
    %v5227 = vpop.xlane.xlu0 %5226
    %5228 = vadd.xlane.f32.xlu0 %v5206
    %v5229 = vpop.xlane.xlu0 %5228
    %5230 = vadd.xlane.f32.xlu0 %v5207
    %v5231 = vpop.xlane.xlu0 %5230
    %5232 = vadd.xlane.f32.xlu0 %v5208
    %v5233 = vpop.xlane.xlu0 %5232
    %5234 = vadd.xlane.f32.xlu0 %v5209
    %v5235 = vpop.xlane.xlu0 %5234
    %5236 = vadd.xlane.f32.xlu0 %v5210
    %v5237 = vpop.xlane.xlu0 %5236
    %5238 = vadd.xlane.f32.xlu0 %v5211
    %v5239 = vpop.xlane.xlu0 %5238
    %5240 = vadd.xlane.f32.xlu0 %v5212
    %v5241 = vpop.xlane.xlu0 %5240
    %5242 = vadd.xlane.f32.xlu0 %v5213
    %v5243 = vpop.xlane.xlu0 %5242
    %5244 = vadd.xlane.f32.xlu0 %v5214
    %v5245 = vpop.xlane.xlu0 %5244
    %5246 = vadd.xlane.f32.xlu0 %v5215
    %v5247 = vpop.xlane.xlu0 %5246
    %v5248 = vmul.f32 %v5122, 2.0
    %v5249 = vmul.f32 %v5127, 2.0
    %v5250 = vmul.f32 %v5132, 2.0
    %v5251 = vmul.f32 %v5137, 2.0
    %v5252 = vmul.f32 %v5142, 2.0
    %v5253 = vmul.f32 %v5147, 2.0
    %v5254 = vmul.f32 %v5152, 2.0
    %v5255 = vmul.f32 %v5157, 2.0
    %v5256 = vmul.f32 %v5162, 2.0
    %v5257 = vmul.f32 %v5167, 2.0
    %v5258 = vmul.f32 %v5172, 2.0
    %v5259 = vmul.f32 %v5177, 2.0
    %v5260 = vmul.f32 %v5182, 2.0
    %v5261 = vmul.f32 %v5187, 2.0
    %v5262 = vmul.f32 %v5192, 2.0
    %v5263 = vmul.f32 %v5197, 2.0
    %v5264 = vmul.f32 %v5248, %v5122
    %v5265 = vmul.f32 %v5249, %v5127
    %v5266 = vmul.f32 %v5250, %v5132
    %v5267 = vmul.f32 %v5251, %v5137
    %v5268 = vmul.f32 %v5252, %v5142
    %v5269 = vmul.f32 %v5253, %v5147
    %v5270 = vmul.f32 %v5254, %v5152
    %v5271 = vmul.f32 %v5255, %v5157
    %v5272 = vmul.f32 %v5256, %v5162
    %v5273 = vmul.f32 %v5257, %v5167
    %v5274 = vmul.f32 %v5258, %v5172
    %v5275 = vmul.f32 %v5259, %v5177
    %v5276 = vmul.f32 %v5260, %v5182
    %v5277 = vmul.f32 %v5261, %v5187
    %v5278 = vmul.f32 %v5262, %v5192
    %v5279 = vmul.f32 %v5263, %v5197
    %v5280 = vsub.f32 %v5217, %v5264
    %v5281 = vsub.f32 %v5219, %v5265
    %v5282 = vsub.f32 %v5221, %v5266
    %v5283 = vsub.f32 %v5223, %v5267
    %v5284 = vsub.f32 %v5225, %v5268
    %v5285 = vsub.f32 %v5227, %v5269
    %v5286 = vsub.f32 %v5229, %v5270
    %v5287 = vsub.f32 %v5231, %v5271
    %v5288 = vsub.f32 %v5233, %v5272
    %v5289 = vsub.f32 %v5235, %v5273
    %v5290 = vsub.f32 %v5237, %v5274
    %v5291 = vsub.f32 %v5239, %v5275
    %v5292 = vsub.f32 %v5241, %v5276
    %v5293 = vsub.f32 %v5243, %v5277
    %v5294 = vsub.f32 %v5245, %v5278
    %v5295 = vsub.f32 %v5247, %v5279
    %v5296 = vand.u32 2147483647, %v5280
    %v5297 = vand.u32 2147483647, %v5281
    %v5298 = vand.u32 2147483647, %v5282
    %v5299 = vand.u32 2147483647, %v5283
    %v5300 = vand.u32 2147483647, %v5284
    %v5301 = vand.u32 2147483647, %v5285
    %v5302 = vand.u32 2147483647, %v5286
    %v5303 = vand.u32 2147483647, %v5287
    %v5304 = vand.u32 2147483647, %v5288
    %v5305 = vand.u32 2147483647, %v5289
    %v5306 = vand.u32 2147483647, %v5290
    %v5307 = vand.u32 2147483647, %v5291
    %v5308 = vand.u32 2147483647, %v5292
    %v5309 = vand.u32 2147483647, %v5293
    %v5310 = vand.u32 2147483647, %v5294
    %v5311 = vand.u32 2147483647, %v5295
    %v5312 = vmax.f32 %v5296, 1e-08
    %v5313 = vmax.f32 %v5297, 1e-08
    %v5314 = vmax.f32 %v5298, 1e-08
    %v5315 = vmax.f32 %v5299, 1e-08
    %v5316 = vmax.f32 %v5300, 1e-08
    %v5317 = vmax.f32 %v5301, 1e-08
    %v5318 = vmax.f32 %v5302, 1e-08
    %v5319 = vmax.f32 %v5303, 1e-08
    %v5320 = vmax.f32 %v5304, 1e-08
    %v5321 = vmax.f32 %v5305, 1e-08
    %v5322 = vmax.f32 %v5306, 1e-08
    %v5323 = vmax.f32 %v5307, 1e-08
    %v5324 = vmax.f32 %v5308, 1e-08
    %v5325 = vmax.f32 %v5309, 1e-08
    %v5326 = vmax.f32 %v5310, 1e-08
    %v5327 = vmax.f32 %v5311, 1e-08
    %v5328 = vrsqrt.pop %v5312
    %v5329 = vrsqrt.pop %v5313
    %v5330 = vrsqrt.pop %v5314
    %v5331 = vrsqrt.pop %v5315
    %v5332 = vrsqrt.pop %v5316
    %v5333 = vrsqrt.pop %v5317
    %v5334 = vrsqrt.pop %v5318
    %v5335 = vrsqrt.pop %v5319
    %v5336 = vrsqrt.pop %v5320
    %v5337 = vrsqrt.pop %v5321
    %v5338 = vrsqrt.pop %v5322
    %v5339 = vrsqrt.pop %v5323
    %v5340 = vrsqrt.pop %v5324
    %v5341 = vrsqrt.pop %v5325
    %v5342 = vrsqrt.pop %v5326
    %v5343 = vrsqrt.pop %v5327
    %5345 = vset.pattern.permute.xlu0 0
    %5346 = vperm.xlu0 %5345, %v5328
    %v5347 = vpop.permute.xlu0 %5346
    %5350 = vset.pattern.permute.xlu0 0
    %5351 = vperm.xlu0 %5350, %v5329
    %v5352 = vpop.permute.xlu0 %5351
    %5355 = vset.pattern.permute.xlu0 0
    %5356 = vperm.xlu0 %5355, %v5330
    %v5357 = vpop.permute.xlu0 %5356
    %5360 = vset.pattern.permute.xlu0 0
    %5361 = vperm.xlu0 %5360, %v5331
    %v5362 = vpop.permute.xlu0 %5361
    %5365 = vset.pattern.permute.xlu0 0
    %5366 = vperm.xlu0 %5365, %v5332
    %v5367 = vpop.permute.xlu0 %5366
    %5370 = vset.pattern.permute.xlu0 0
    %5371 = vperm.xlu0 %5370, %v5333
    %v5372 = vpop.permute.xlu0 %5371
    %5375 = vset.pattern.permute.xlu0 0
    %5376 = vperm.xlu0 %5375, %v5334
    %v5377 = vpop.permute.xlu0 %5376
    %5380 = vset.pattern.permute.xlu0 0
    %5381 = vperm.xlu0 %5380, %v5335
    %v5382 = vpop.permute.xlu0 %5381
    %5385 = vset.pattern.permute.xlu0 0
    %5386 = vperm.xlu0 %5385, %v5336
    %v5387 = vpop.permute.xlu0 %5386
    %5390 = vset.pattern.permute.xlu0 0
    %5391 = vperm.xlu0 %5390, %v5337
    %v5392 = vpop.permute.xlu0 %5391
    %5395 = vset.pattern.permute.xlu0 0
    %5396 = vperm.xlu0 %5395, %v5338
    %v5397 = vpop.permute.xlu0 %5396
    %5400 = vset.pattern.permute.xlu0 0
    %5401 = vperm.xlu0 %5400, %v5339
    %v5402 = vpop.permute.xlu0 %5401
    %5405 = vset.pattern.permute.xlu0 0
    %5406 = vperm.xlu0 %5405, %v5340
    %v5407 = vpop.permute.xlu0 %5406
    %5410 = vset.pattern.permute.xlu0 0
    %5411 = vperm.xlu0 %5410, %v5341
    %v5412 = vpop.permute.xlu0 %5411
    %5415 = vset.pattern.permute.xlu0 0
    %5416 = vperm.xlu0 %5415, %v5342
    %v5417 = vpop.permute.xlu0 %5416
    %5420 = vset.pattern.permute.xlu0 0
    %5421 = vperm.xlu0 %5420, %v5343
    %v5422 = vpop.permute.xlu0 %5421
    %v5424 = vmul.f32 %v5122, %v5347
    %v5425 = vmul.f32 %v5127, %v5352
    %v5426 = vmul.f32 %v5132, %v5357
    %v5427 = vmul.f32 %v5137, %v5362
    %v5428 = vmul.f32 %v5142, %v5367
    %v5429 = vmul.f32 %v5147, %v5372
    %v5430 = vmul.f32 %v5152, %v5377
    %v5431 = vmul.f32 %v5157, %v5382
    %v5432 = vmul.f32 %v5162, %v5387
    %v5433 = vmul.f32 %v5167, %v5392
    %v5434 = vmul.f32 %v5172, %v5397
    %v5435 = vmul.f32 %v5177, %v5402
    %v5436 = vmul.f32 %v5182, %v5407
    %v5437 = vmul.f32 %v5187, %v5412
    %v5438 = vmul.f32 %v5192, %v5417
    %v5439 = vmul.f32 %v5197, %v5422
    %5440 = vst [vmem:[%s17] sm:$0xff] %v5424
    %5441 = vst [vmem:[%s17 + $0x8] sm:$0xff] %v5425
    %5442 = vst [vmem:[%s17 + $0x10] sm:$0xff] %v5426
    %5443 = vst [vmem:[%s17 + $0x18] sm:$0xff] %v5427
    %5444 = vst [vmem:[%s17 + $0x20] sm:$0xff] %v5428
    %5445 = vst [vmem:[%s17 + $0x28] sm:$0xff] %v5429
    %5446 = vst [vmem:[%s17 + $0x30] sm:$0xff] %v5430
    %5447 = vst [vmem:[%s17 + $0x38] sm:$0xff] %v5431
    %5448 = vst [vmem:[%s17 + $0x40] sm:$0xff] %v5432
    %5449 = vst [vmem:[%s17 + $0x48] sm:$0xff] %v5433
    %5450 = vst [vmem:[%s17 + $0x50] sm:$0xff] %v5434
    %5451 = vst [vmem:[%s17 + $0x58] sm:$0xff] %v5435
    %5452 = vst [vmem:[%s17 + $0x60] sm:$0xff] %v5436
    %5453 = vst [vmem:[%s17 + $0x68] sm:$0xff] %v5437
    %5454 = vst [vmem:[%s17 + $0x70] sm:$0xff] %v5438
    %5455 = vst [vmem:[%s17 + $0x78] sm:$0xff] %v5439
    %5456 = vmatprep.subr.mxu0 0.0
    %5457 = vmatpush1.msra.mxu0 %v4862
    %5458 = vmatprep.subr.mxu0 0.0
    %5459 = vmatpush1.msra.mxu0 %v4863
    %5460 = vmatprep.subr.mxu0 0.0
    %5461 = vmatpush1.msra.mxu0 %v4864
    %5462 = vmatprep.subr.mxu0 0.0
    %5463 = vmatpush1.msra.mxu0 %v4865
    %5464 = vmatprep.subr.mxu0 0.0
    %5465 = vmatpush1.msra.mxu0 %v4866
    %5466 = vmatprep.subr.mxu0 0.0
    %5467 = vmatpush1.msra.mxu0 %v4867
    %5468 = vmatprep.subr.mxu0 0.0
    %5469 = vmatpush1.msra.mxu0 %v4868
    %5470 = vmatprep.subr.mxu0 0.0
    %5471 = vmatpush1.msra.mxu0 %v4869
    %5472 = vmatprep.subr.mxu0 0.0
    %5473 = vmatpush1.msra.mxu0 %v4870
    %5474 = vmatprep.subr.mxu0 0.0
    %5475 = vmatpush1.msra.mxu0 %v4871
    %5476 = vmatprep.subr.mxu0 0.0
    %5477 = vmatpush1.msra.mxu0 %v4872
    %5478 = vmatprep.subr.mxu0 0.0
    %5479 = vmatpush1.msra.mxu0 %v4873
    %5480 = vmatprep.subr.mxu0 0.0
    %5481 = vmatpush1.msra.mxu0 %v4874
    %5482 = vmatprep.subr.mxu0 0.0
    %5483 = vmatpush1.msra.mxu0 %v4875
    %5484 = vmatprep.subr.mxu0 0.0
    %5485 = vmatpush1.msra.mxu0 %v4876
    %5486 = vmatprep.subr.mxu0 0.0
    %5487 = vmatpush1.msra.mxu0 %v4877
    %5488 = vmatprep.subr.mxu0 0.0
    %5489 = vmatpush1.msra.mxu0 0.0
    %5490 = vmatprep.subr.mxu0 0.0
    %5491 = vmatpush1.msra.mxu0 0.0
    %5492 = vmatprep.subr.mxu0 0.0
    %5493 = vmatpush1.msra.mxu0 0.0
    %5494 = vmatprep.subr.mxu0 0.0
    %5495 = vmatpush1.msra.mxu0 0.0
    %5496 = vmatprep.subr.mxu0 0.0
    %5497 = vmatpush1.msra.mxu0 0.0
    %5498 = vmatprep.subr.mxu0 0.0
    %5499 = vmatpush1.msra.mxu0 0.0
    %5500 = vmatprep.subr.mxu0 0.0
    %5501 = vmatpush1.msra.mxu0 0.0
    %5502 = vmatprep.subr.mxu0 0.0
    %5503 = vmatpush1.msra.mxu0 0.0
    %5504 = vmatprep.subr.mxu0 0.0
    %5505 = vmatpush1.msra.mxu0 0.0
    %5506 = vmatprep.subr.mxu0 0.0
    %5507 = vmatpush1.msra.mxu0 0.0
    %5508 = vmatprep.subr.mxu0 0.0
    %5509 = vmatpush1.msra.mxu0 0.0
    %5510 = vmatprep.subr.mxu0 0.0
    %5511 = vmatpush1.msra.mxu0 0.0
    %5512 = vmatprep.subr.mxu0 0.0
    %5513 = vmatpush1.msra.mxu0 0.0
    %5514 = vmatprep.subr.mxu0 0.0
    %5515 = vmatpush1.msra.mxu0 0.0
    %5516 = vmatprep.subr.mxu0 0.0
    %5517 = vmatpush1.msra.mxu0 0.0
    %5518 = vmatprep.subr.mxu0 0.0
    %5519 = vmatpush1.msra.mxu0 0.0
    %5520 = vmatprep.mubr.f32.mxu0 0.0
    %5521 = vmatmul.mubr.f32.gmra.mrb[0].mxu0 %v1901
    %v5522 = vpop.f32.mrb[0].mxu0
    %v5523 = vadd.f32 0.0, %v5522
    %v5524 = vpop.f32.mrb[0].mxu0
    %5525 = vmatprep.mubr.f32.mxu0 0.0
    %5526 = vmatmul.mubr.f32.gmra.mrb[0].mxu0 %v1902
    %v5527 = vpop.f32.mrb[0].mxu0
    %v5528 = vadd.f32 0.0, %v5527
    %v5529 = vpop.f32.mrb[0].mxu0
    %5530 = vmatprep.mubr.f32.mxu0 0.0
    %5531 = vmatmul.mubr.f32.gmra.mrb[0].mxu0 %v1903
    %v5532 = vpop.f32.mrb[0].mxu0
    %v5533 = vadd.f32 0.0, %v5532
    %v5534 = vpop.f32.mrb[0].mxu0
    %5535 = vmatprep.mubr.f32.mxu0 0.0
    %5536 = vmatmul.mubr.f32.gmra.mrb[0].mxu0 %v1904
    %v5537 = vpop.f32.mrb[0].mxu0
    %v5538 = vadd.f32 0.0, %v5537
    %v5539 = vpop.f32.mrb[0].mxu0
    %5540 = vdwg.mxu0
    %5541 = vmax.xlane.f32.xlu0 %v5523
    %v5542 = vpop.xlane.xlu0 %5541
    %5543 = vmax.xlane.f32.xlu0 %v5528
    %v5544 = vpop.xlane.xlu0 %5543
    %5545 = vmax.xlane.f32.xlu0 %v5533
    %v5546 = vpop.xlane.xlu0 %5545
    %5547 = vmax.xlane.f32.xlu0 %v5538
    %v5548 = vpop.xlane.xlu0 %5547
    %vm5549 = vcmp.ge.f32.partialorder %v5523, %v5542
    %vm5550 = vcmp.ge.f32.partialorder %v5528, %v5544
    %vm5551 = vcmp.ge.f32.partialorder %v5533, %v5546
    %vm5552 = vcmp.ge.f32.partialorder %v5538, %v5548
    %v5553 = vsel %vm5549, %v173, 128
    %v5554 = vsel %vm5550, %v173, 128
    %v5555 = vsel %vm5551, %v173, 128
    %v5556 = vsel %vm5552, %v173, 128
    %v5557 = vand.u32 %v5553, 65535
    %v5558 = vshra.s32 %v5553, 16
    %v5559 = vcvt.s32.f32 %v5557
    %v5560 = vcvt.s32.f32 %v5558
    %5561 = vmin.xlane.f32.xlu0 %v5560
    %v5562 = vpop.xlane.xlu0 %5561
    %vm5563 = vcmp.eq.f32.partialorder %v5560, %v5562
    %v5564 = vsel %vm5563, %v5559, inf
    %5565 = vmin.xlane.f32.xlu0 %v5564
    %v5566 = vpop.xlane.xlu0 %5565
    %v5567 = vcvt.f32.s32 %v5566
    %v5568 = vcvt.f32.s32 %v5562
    %v5569 = vshll.u32 %v5568, 16
    %v5570 = vadd.s32 %v5569, %v5567
    %v5571 = vand.u32 %v5554, 65535
    %v5572 = vshra.s32 %v5554, 16
    %v5573 = vcvt.s32.f32 %v5571
    %v5574 = vcvt.s32.f32 %v5572
    %5575 = vmin.xlane.f32.xlu0 %v5574
    %v5576 = vpop.xlane.xlu0 %5575
    %vm5577 = vcmp.eq.f32.partialorder %v5574, %v5576
    %v5578 = vsel %vm5577, %v5573, inf
    %5579 = vmin.xlane.f32.xlu0 %v5578
    %v5580 = vpop.xlane.xlu0 %5579
    %v5581 = vcvt.f32.s32 %v5580
    %v5582 = vcvt.f32.s32 %v5576
    %v5583 = vshll.u32 %v5582, 16
    %v5584 = vadd.s32 %v5583, %v5581
    %v5585 = vand.u32 %v5555, 65535
    %v5586 = vshra.s32 %v5555, 16
    %v5587 = vcvt.s32.f32 %v5585
    %v5588 = vcvt.s32.f32 %v5586
    %5589 = vmin.xlane.f32.xlu0 %v5588
    %v5590 = vpop.xlane.xlu0 %5589
    %vm5591 = vcmp.eq.f32.partialorder %v5588, %v5590
    %v5592 = vsel %vm5591, %v5587, inf
    %5593 = vmin.xlane.f32.xlu0 %v5592
    %v5594 = vpop.xlane.xlu0 %5593
    %v5595 = vcvt.f32.s32 %v5594
    %v5596 = vcvt.f32.s32 %v5590
    %v5597 = vshll.u32 %v5596, 16
    %v5598 = vadd.s32 %v5597, %v5595
    %v5599 = vand.u32 %v5556, 65535
    %v5600 = vshra.s32 %v5556, 16
    %v5601 = vcvt.s32.f32 %v5599
    %v5602 = vcvt.s32.f32 %v5600
    %5603 = vmin.xlane.f32.xlu0 %v5602
    %v5604 = vpop.xlane.xlu0 %5603
    %vm5605 = vcmp.eq.f32.partialorder %v5602, %v5604
    %v5606 = vsel %vm5605, %v5601, inf
    %5607 = vmin.xlane.f32.xlu0 %v5606
    %v5608 = vpop.xlane.xlu0 %5607
    %v5609 = vcvt.f32.s32 %v5608
    %v5610 = vcvt.f32.s32 %v5604
    %v5611 = vshll.u32 %v5610, 16
    %v5612 = vadd.s32 %v5611, %v5609
    %vm5613 = vcmp.eq.s32.totalorder %v173, %v5570
    %vm5614 = vcmp.eq.s32.totalorder %v173, %v5584
    %vm5615 = vcmp.eq.s32.totalorder %v173, %v5598
    %vm5616 = vcmp.eq.s32.totalorder %v173, %v5612
    %v5617 = vsel %vm5613, 1.0, 0.0
    %v5618 = vsel %vm5614, 1.0, 0.0
    %v5619 = vsel %vm5615, 1.0, 0.0
    %v5620 = vsel %vm5616, 1.0, 0.0
    %5621 = vst [vmem:[%s20] sm:$0xff] %v5617
    %5622 = vst [vmem:[%s20 + $0x8] sm:$0xff] %v5618
    %5623 = vst [vmem:[%s20 + $0x10] sm:$0xff] %v5619
    %5624 = vst [vmem:[%s20 + $0x18] sm:$0xff] %v5620
    %v5625 = vadd.f32 %v5424, %v5425
    %v5626 = vadd.f32 %v5625, %v5426
    %v5627 = vadd.f32 %v5626, %v5427
    %v5628 = vadd.f32 %v5627, %v5428
    %v5629 = vadd.f32 %v5628, %v5429
    %v5630 = vadd.f32 %v5629, %v5430
    %v5631 = vadd.f32 %v5630, %v5431
    %v5632 = vadd.f32 %v5631, %v5432
    %v5633 = vadd.f32 %v5632, %v5433
    %v5634 = vadd.f32 %v5633, %v5434
    %v5635 = vadd.f32 %v5634, %v5435
    %v5636 = vadd.f32 %v5635, %v5436
    %v5637 = vadd.f32 %v5636, %v5437
    %v5638 = vadd.f32 %v5637, %v5438
    %v5639 = vadd.f32 %v5638, %v5439
    %v5640 = vrot.slane %v5639, 4
    %v5641 = vadd.f32 %v5639, %v5640
    %v5642 = vrot.slane %v5641, 2
    %v5643 = vadd.f32 %v5641, %v5642
    %v5644 = vrot.slane %v5643, 1
    %v5645 = vadd.f32 %v5643, %v5644
    %v5646 = vmul.f32 %v5645, %v5645
    %5647 = vadd.xlane.f32.xlu0 %v5646
    %v5648 = vpop.xlane.xlu0 %5647
    %v5649 = vmul.f32 %v5645, 2.0
    %v5650 = vmul.f32 %v5649, %v5645
    %v5651 = vsub.f32 %v5648, %v5650
    %v5652 = vand.u32 2147483647, %v5651
    %v5653 = vmax.f32 %v5652, 1e-08
    %v5654 = vrsqrt.pop %v5653
    %5656 = vset.pattern.permute.xlu0 0
    %5657 = vperm.xlu0 %5656, %v5654
    %v5658 = vpop.permute.xlu0 %5657
    %v5660 = vmul.f32 %v5645, %v5658
    %5661 = vst [vmem:[#allocation18] sm:$0x1] %v5660
    // Predicated region
    $region98: #{forward.1} parent=1 // pred_check
      _
    $region99: #{forward.1} parent=1 // pred_check_branch
      %5663 = sbr.rel (0) target = $region101
    $region100: #{forward.1} parent=1 // pred_region
      _
    $region101: #{forward.1} parent=1 // pred_fallthru
      _
    // Predicated region
    $region102: #{forward.1} parent=1 // pred_check
      _
    $region103: #{forward.1} parent=1 // pred_check_branch
      %5665 = sbr.rel (0) target = $region105
    $region104: #{forward.1} parent=1 // pred_region
      _
    $region105: #{forward.1} parent=1 // pred_fallthru
      _
    // Predicated region
    $region106: #{forward.1} parent=1 // pred_check
      _
    $region107: #{forward.1} parent=1 // pred_check_branch
      %5667 = sbr.rel (0) target = $region109
    $region108: #{forward.1} parent=1 // pred_region
      _
    $region109: #{forward.1} parent=1 // pred_fallthru
      _
    // Predicated region
    $region110: #{forward.1} parent=1 // pred_check
      _
    $region111: #{forward.1} parent=1 // pred_check_branch
      %5669 = sbr.rel (0) target = $region113
    $region112: #{forward.1} parent=1 // pred_region
      %s5671 = ssub.s32 16, 16
      %5672 = vsyncadd [#allocation5], %s5671
      %s5674 = sshll.u32 [#allocation18], 4
      %s5675 = int_to_ptr.vmem [resolvable:$true] %s5674
      %5677 = dma.vmem_to_hbm [thread:$0]  %s5675, 16, %s18, [#allocation5]
    $region113: #{forward.1} parent=1 // pred_fallthru
      _
    // Predicated region
    $region114: #{forward.1} parent=1 // pred_check
      _
    $region115: #{forward.1} parent=1 // pred_check_branch
      %5679 = sbr.rel (0) target = $region117
    $region116: #{forward.1} parent=1 // pred_region
      _
    $region117: #{forward.1} parent=1 // pred_fallthru
      _
    // Predicated region
    $region118: #{forward.1} parent=1 // pred_check
      _
    $region119: #{forward.1} parent=1 // pred_check_branch
      %5681 = sbr.rel (0) target = $region121
    $region120: #{forward.1} parent=1 // pred_region
      _
    $region121: #{forward.1} parent=1 // pred_fallthru
      _
    // Predicated region
    $region122: #{forward.1} parent=1 // pred_check
      _
    $region123: #{forward.1} parent=1 // pred_check_branch
      %5683 = sbr.rel (0) target = $region125
    $region124: #{forward.1} parent=1 // pred_region
      _
    $region125: #{forward.1} parent=1 // pred_fallthru
      _
    // Predicated region
    $region126: #{forward.1} parent=1 // pred_check
      _
    $region127: #{forward.1} parent=1 // pred_check_branch
      %5685 = sbr.rel (0) target = $region129
    $region128: #{forward.1} parent=1 // pred_region
      _
    $region129: #{forward.1} parent=1 // pred_fallthru
      _
    // Predicated region
    $region130: #{forward.1} parent=1 // pred_check
      _
    $region131: #{forward.1} parent=1 // pred_check_branch
      %5687 = sbr.rel (0) target = $region133
    $region132: #{forward.1} parent=1 // pred_region
      _
    $region133: #{forward.1} parent=1 // pred_fallthru
      _
    // Predicated region
    $region134: #{forward.1} parent=1 // pred_check
      _
    $region135: #{forward.1} parent=1 // pred_check_branch
      %5689 = sbr.rel (0) target = $region137
    $region136: #{forward.1} parent=1 // pred_region
      %5690 = dma.done [#allocation5], 16
    $region137: #{forward.1} parent=1 // pred_fallthru
      _
    // Predicated region
    $region138: #{forward.1} parent=1 // pred_check
      _
    $region139: #{forward.1} parent=1 // pred_check_branch
      %5692 = sbr.rel (0) target = $region141
    $region140: #{forward.1} parent=1 // pred_region
      _
    $region141: #{forward.1} parent=1 // pred_fallthru
      _
    // Predicated region
    $region142: #{forward.1} parent=1 // pred_check
      _
    $region143: #{forward.1} parent=1 // pred_check_branch
      %5694 = sbr.rel (0) target = $region145
    $region144: #{forward.1} parent=1 // pred_region
      _
    $region145: #{forward.1} parent=1 // pred_fallthru
      _
    %5695 = vsyncpa [#allocation4], 1
    %5696 = vsyncpa [#allocation7], 1
    %5697 = vsyncpa [#allocation10], 1
    %5698 = vsyncpa [#allocation13], 1
    %5699 = vsyncpa [#allocation16], 1
    %5700 = vsyncpa [#allocation5], 1

</llo_original>
